<compile_context>
chip_gen: v5e
topology: v5e:2x2
jax: 0.10.0
libtpu: 0.0.40
codegen_flags: <defaults>
</compile_context>

<pallas_src>
import functools

import jax
import jax.numpy as jnp
from jax.experimental import pallas as pl
from jax.experimental.pallas import tpu as pltpu


# ---------------------------------------------------------------------------
# Pallas kernel: (M,K) @ (K,N) + bias, optional ReLU, optional L2-normalize
# ---------------------------------------------------------------------------
def _matmul_bias_kernel(a_ref, b_ref, bias_ref, o_ref, *, relu, normalize):
    acc = jnp.dot(a_ref[...], b_ref[...], preferred_element_type=jnp.float32)
    acc = acc + bias_ref[...]
    if relu:
        acc = jnp.maximum(acc, 0.0)
    if normalize:
        # Whole-tensor (Frobenius) norm, matching `yaw / torch.norm(yaw)`.
        s = jnp.sum(acc * acc, keepdims=True)          # (1, 1)
        acc = acc / jnp.sqrt(s)
    o_ref[...] = acc.astype(o_ref.dtype)


def matmul_bias(a, b, bias, *, relu=False, normalize=False, block_m=1024):
    """A @ B + bias (+ReLU / +whole-tensor normalize) with a Pallas MXU kernel.

    K and N are always taken as one full block (block dim == array dim is
    legal for any size); M is split only when it exceeds `block_m`, and is
    padded only in that case.
    """
    M, K = a.shape
    K2, N = b.shape
    assert K == K2

    # bf16 operands, f32 accumulation (perf-review item).
    a = a.astype(jnp.bfloat16)
    b = b.astype(jnp.bfloat16)
    bias2 = bias.reshape(1, N).astype(jnp.float32)

    if M > block_m:
        bm = block_m                       # multiple of 8/16 -> always legal
        grid_m = pl.cdiv(M, bm)
        Mp = grid_m * bm
        if Mp != M:                        # pad M only when actually splitting
            a = jnp.pad(a, ((0, Mp - M), (0, 0)))
    else:
        bm, grid_m, Mp = M, 1, M           # single block == full array dims

    assert not (normalize and grid_m > 1), "normalize needs a single M block"

    out = pl.pallas_call(
        functools.partial(_matmul_bias_kernel, relu=relu, normalize=normalize),
        out_shape=jax.ShapeDtypeStruct((Mp, N), jnp.float32),
        grid=(grid_m,),
        in_specs=[
            pl.BlockSpec((bm, K), lambda i: (i, 0)),
            pl.BlockSpec((K, N), lambda i: (0, 0)),
            pl.BlockSpec((1, N), lambda i: (0, 0)),
        ],
        out_specs=pl.BlockSpec((bm, N), lambda i: (i, 0)),
        compiler_params=pltpu.CompilerParams(
            dimension_semantics=("parallel",)),
    )(a, b, bias2)

    if Mp != M:
        out = out[:M]
    return out


# ---------------------------------------------------------------------------
# Conv2d (padding=0) via im2col in NHWC, matmul in Pallas
# ---------------------------------------------------------------------------
def conv2d_nhwc(x, w, b, stride, relu=False):
    """x: (B,H,W,C) NHWC activations; w: (Cout,Cin,kh,kw) PyTorch layout."""
    B, H, W, C = x.shape
    Cout, Cin, kh, kw = w.shape
    assert C == Cin
    Ho = (H - kh) // stride + 1
    Wo = (W - kw) // stride + 1

    # im2col: column order is (dh, dw, cin) to match the weight reordering.
    cols = []
    for dh in range(kh):
        for dw in range(kw):
            cols.append(x[:, dh:dh + (Ho - 1) * stride + 1:stride,
                             dw:dw + (Wo - 1) * stride + 1:stride, :])
    patches = jnp.concatenate(cols, axis=-1)               # (B,Ho,Wo,kh*kw*C)
    patches = patches.reshape(B * Ho * Wo, kh * kw * C)

    w_flat = w.transpose(2, 3, 1, 0).reshape(kh * kw * Cin, Cout)
    out = matmul_bias(patches, w_flat, b, relu=relu)        # (B*Ho*Wo, Cout)
    return out.reshape(B, Ho, Wo, Cout)


# ---------------------------------------------------------------------------
# Encoder forward
# ---------------------------------------------------------------------------
def encoder(p, img):
    """img: (B,3,64,64) NCHW float32 -> yaw: (B,2), normalized by ||yaw||_F."""
    B = img.shape[0]
    x = img.transpose(0, 2, 3, 1)                                   # NHWC once
    x = conv2d_nhwc(x, p['c1_w'], p['c1_b'], 2, relu=True)          # (B,31,31,32)
    x = conv2d_nhwc(x, p['c2_w'], p['c2_b'], 2, relu=True)          # (B,14,14,64)
    x = conv2d_nhwc(x, p['c3_w'], p['c3_b'], 2, relu=True)          # (B,6,6,128)
    x = conv2d_nhwc(x, p['c4_w'], p['c4_b'], 2, relu=True)          # (B,2,2,256)
    # Match PyTorch h.view(B, 1024) ordering (C,H,W flatten).
    h = x.transpose(0, 3, 1, 2).reshape(B, 1024)
    # TODO(synk): PyTorch prints torch.norm(yaw) here (host side effect only); omitted.
    # Linear(1024,2) with whole-tensor L2 normalization fused into the epilogue.
    yaw = matmul_bias(h, p['fc_w'].T, p['fc_b'], relu=False, normalize=True)
    return yaw


# ---------------------------------------------------------------------------
# Deterministic parameter init (PyTorch-shaped weights)
# ---------------------------------------------------------------------------
def init_params(key):
    specs = [
        # name, weight shape,        bias size, fan_in
        ('c1', (32, 3, 4, 4),   32,  3 * 16),
        ('c2', (64, 32, 4, 4),  64,  32 * 16),
        ('c3', (128, 64, 4, 4), 128, 64 * 16),
        ('c4', (256, 128, 4, 4), 256, 128 * 16),
        ('fc', (2, 1024),       2,   1024),
    ]
    keys = jax.random.split(key, 2 * len(specs))
    p = {}
    for i, (name, wshape, bsize, fan_in) in enumerate(specs):
        scale = 1.0 / jnp.sqrt(jnp.float32(fan_in))
        p[name + '_w'] = scale * jax.random.normal(keys[2 * i], wshape, jnp.float32)
        p[name + '_b'] = 0.01 * jax.random.normal(keys[2 * i + 1], (bsize,), jnp.float32)
    return p


if __name__ == "__main__":
    key = jax.random.PRNGKey(0)
    pkey, ikey = jax.random.split(key)
    params = init_params(pkey)
    # Spatial size must be 64x64: the module hardcodes the 1024 flatten
    # (256 channels * 2 * 2 after four stride-2 convs).
    img = jax.random.uniform(ikey, (2, 3, 64, 64), jnp.float32)

    yaw = jax.jit(encoder)(params, img)
    jax.block_until_ready(yaw)
    assert yaw.shape == (2, 2)
    assert bool(jnp.all(jnp.isfinite(yaw)))
    print("KERNEL_OK")
</pallas_src>

<mosaic_0001>
module attributes {stable_mosaic.version = 11 : i64} {
  func.func @_matmul_bias_kernel(%arg0: i32, %arg1: memref<1024x48xbf16, #tpu.memory_space<vmem>>, %arg2: memref<48x32xbf16, #tpu.memory_space<vmem>>, %arg3: memref<1x32xf32, #tpu.memory_space<vmem>>, %arg4: memref<1024x32xf32, #tpu.memory_space<vmem>>) attributes {dimension_semantics = [#tpu.dimension_semantics<parallel>], iteration_bounds = array<i64: 2>, scalar_prefetch = 0 : i64, scratch_operands = 0 : i64, tpu.core_type = #tpu.core_type<tc>, window_params = [{transform_indices = @transform_0, window_bounds = array<i64: 1024, 48>}, {pipeline_mode = #tpu.pipeline_mode<synchronous>, transform_indices = @transform_1, window_bounds = array<i64: 48, 32>}, {pipeline_mode = #tpu.pipeline_mode<synchronous>, transform_indices = @transform_2, window_bounds = array<i64: 1, 32>}, {transform_indices = @transform_3, window_bounds = array<i64: 1024, 32>}]} {
    %c0 = arith.constant 0 : index
    %c0_0 = arith.constant 0 : index
    %0 = vector.load %arg1[%c0, %c0_0] : memref<1024x48xbf16, #tpu.memory_space<vmem>>, vector<1024x48xbf16>
    %c0_1 = arith.constant 0 : index
    %c0_2 = arith.constant 0 : index
    %1 = vector.load %arg2[%c0_1, %c0_2] : memref<48x32xbf16, #tpu.memory_space<vmem>>, vector<48x32xbf16>
    %cst = arith.constant dense<0.000000e+00> : vector<1024x32xf32>
    %2 = tpu.matmul %0, %1, %cst {dimension_numbers = #tpu.dot_dimension_numbers<[1], [0], [0], [1], [0, 0, 1, 1], [], []>} : vector<1024x48xbf16>, vector<48x32xbf16>, vector<1024x32xf32> -> vector<1024x32xf32>
    %c0_3 = arith.constant 0 : index
    %c0_4 = arith.constant 0 : index
    %3 = vector.load %arg3[%c0_3, %c0_4] : memref<1x32xf32, #tpu.memory_space<vmem>>, vector<1x32xf32>
    %4 = vector.broadcast %3 : vector<1x32xf32> to vector<1024x32xf32>
    %5 = arith.addf %2, %4 : vector<1024x32xf32>
    %cst_5 = arith.constant 0.000000e+00 : f32
    %6 = vector.broadcast %cst_5 : f32 to vector<1024x32xf32>
    %7 = arith.maximumf %5, %6 : vector<1024x32xf32>
    %c0_6 = arith.constant 0 : index
    %c0_7 = arith.constant 0 : index
    %8 = vector.load %arg4[%c0_6, %c0_7] : memref<1024x32xf32, #tpu.memory_space<vmem>>, vector<1024x32xf32>
    tpu.vector_store %arg4[%c0_6, %c0_7], %7 {strides = array<i32>} : memref<1024x32xf32, #tpu.memory_space<vmem>>, vector<1024x32xf32>,
    return
  }
  func.func @transform_0(%arg0: i32) -> (i32, i32) {
    %c0_i32 = arith.constant 0 : i32
    %c0_i32_0 = arith.constant 0 : i32
    return %arg0, %c0_i32 : i32, i32
  }
  func.func @transform_1(%arg0: i32) -> (i32, i32) {
    %c0_i32 = arith.constant 0 : i32
    %c0_i32_0 = arith.constant 0 : i32
    %c0_i32_1 = arith.constant 0 : i32
    return %c0_i32, %c0_i32_0 : i32, i32
  }
  func.func @transform_2(%arg0: i32) -> (i32, i32) {
    %c0_i32 = arith.constant 0 : i32
    %c0_i32_0 = arith.constant 0 : i32
    %c0_i32_1 = arith.constant 0 : i32
    return %c0_i32, %c0_i32_0 : i32, i32
  }
  func.func @transform_3(%arg0: i32) -> (i32, i32) {
    %c0_i32 = arith.constant 0 : i32
    %c0_i32_0 = arith.constant 0 : i32
    return %arg0, %c0_i32 : i32, i32
  }
}

module attributes {stable_mosaic.version = 11 : i64} {
  func.func @_matmul_bias_kernel(%arg0: i32, %arg1: memref<392x512xbf16, #tpu.memory_space<vmem>>, %arg2: memref<512x64xbf16, #tpu.memory_space<vmem>>, %arg3: memref<1x64xf32, #tpu.memory_space<vmem>>, %arg4: memref<392x64xf32, #tpu.memory_space<vmem>>) attributes {dimension_semantics = [#tpu.dimension_semantics<parallel>], iteration_bounds = array<i64: 1>, scalar_prefetch = 0 : i64, scratch_operands = 0 : i64, tpu.core_type = #tpu.core_type<tc>, window_params = [{transform_indices = @transform_0, window_bounds = array<i64: 392, 512>}, {pipeline_mode = #tpu.pipeline_mode<synchronous>, transform_indices = @transform_1, window_bounds = array<i64: 512, 64>}, {pipeline_mode = #tpu.pipeline_mode<synchronous>, transform_indices = @transform_2, window_bounds = array<i64: 1, 64>}, {transform_indices = @transform_3, window_bounds = array<i64: 392, 64>}]} {
    %c0 = arith.constant 0 : index
    %c0_0 = arith.constant 0 : index
    %0 = vector.load %arg1[%c0, %c0_0] : memref<392x512xbf16, #tpu.memory_space<vmem>>, vector<392x512xbf16>
    %c0_1 = arith.constant 0 : index
    %c0_2 = arith.constant 0 : index
    %1 = vector.load %arg2[%c0_1, %c0_2] : memref<512x64xbf16, #tpu.memory_space<vmem>>, vector<512x64xbf16>
    %cst = arith.constant dense<0.000000e+00> : vector<392x64xf32>
    %2 = tpu.matmul %0, %1, %cst {dimension_numbers = #tpu.dot_dimension_numbers<[1], [0], [0], [1], [0, 0, 1, 1], [], []>} : vector<392x512xbf16>, vector<512x64xbf16>, vector<392x64xf32> -> vector<392x64xf32>
    %c0_3 = arith.constant 0 : index
    %c0_4 = arith.constant 0 : index
    %3 = vector.load %arg3[%c0_3, %c0_4] : memref<1x64xf32, #tpu.memory_space<vmem>>, vector<1x64xf32>
    %4 = vector.broadcast %3 : vector<1x64xf32> to vector<392x64xf32>
    %5 = arith.addf %2, %4 : vector<392x64xf32>
    %cst_5 = arith.constant 0.000000e+00 : f32
    %6 = vector.broadcast %cst_5 : f32 to vector<392x64xf32>
    %7 = arith.maximumf %5, %6 : vector<392x64xf32>
    %c0_6 = arith.constant 0 : index
    %c0_7 = arith.constant 0 : index
    %8 = vector.load %arg4[%c0_6, %c0_7] : memref<392x64xf32, #tpu.memory_space<vmem>>, vector<392x64xf32>
    tpu.vector_store %arg4[%c0_6, %c0_7], %7 {strides = array<i32>} : memref<392x64xf32, #tpu.memory_space<vmem>>, vector<392x64xf32>,
    return
  }
  func.func @transform_0(%arg0: i32) -> (i32, i32) {
    %c0_i32 = arith.constant 0 : i32
    %c0_i32_0 = arith.constant 0 : i32
    return %arg0, %c0_i32 : i32, i32
  }
  func.func @transform_1(%arg0: i32) -> (i32, i32) {
    %c0_i32 = arith.constant 0 : i32
    %c0_i32_0 = arith.constant 0 : i32
    %c0_i32_1 = arith.constant 0 : i32
    return %c0_i32, %c0_i32_0 : i32, i32
  }
  func.func @transform_2(%arg0: i32) -> (i32, i32) {
    %c0_i32 = arith.constant 0 : i32
    %c0_i32_0 = arith.constant 0 : i32
    %c0_i32_1 = arith.constant 0 : i32
    return %c0_i32, %c0_i32_0 : i32, i32
  }
  func.func @transform_3(%arg0: i32) -> (i32, i32) {
    %c0_i32 = arith.constant 0 : i32
    %c0_i32_0 = arith.constant 0 : i32
    return %arg0, %c0_i32 : i32, i32
  }
}

module attributes {stable_mosaic.version = 11 : i64} {
  func.func @_matmul_bias_kernel(%arg0: i32, %arg1: memref<72x1024xbf16, #tpu.memory_space<vmem>>, %arg2: memref<1024x128xbf16, #tpu.memory_space<vmem>>, %arg3: memref<1x128xf32, #tpu.memory_space<vmem>>, %arg4: memref<72x128xf32, #tpu.memory_space<vmem>>) attributes {dimension_semantics = [#tpu.dimension_semantics<parallel>], iteration_bounds = array<i64: 1>, scalar_prefetch = 0 : i64, scratch_operands = 0 : i64, tpu.core_type = #tpu.core_type<tc>, window_params = [{transform_indices = @transform_0, window_bounds = array<i64: 72, 1024>}, {pipeline_mode = #tpu.pipeline_mode<synchronous>, transform_indices = @transform_1, window_bounds = array<i64: 1024, 128>}, {pipeline_mode = #tpu.pipeline_mode<synchronous>, transform_indices = @transform_2, window_bounds = array<i64: 1, 128>}, {transform_indices = @transform_3, window_bounds = array<i64: 72, 128>}]} {
    %c0 = arith.constant 0 : index
    %c0_0 = arith.constant 0 : index
    %0 = vector.load %arg1[%c0, %c0_0] : memref<72x1024xbf16, #tpu.memory_space<vmem>>, vector<72x1024xbf16>
    %c0_1 = arith.constant 0 : index
    %c0_2 = arith.constant 0 : index
    %1 = vector.load %arg2[%c0_1, %c0_2] : memref<1024x128xbf16, #tpu.memory_space<vmem>>, vector<1024x128xbf16>
    %cst = arith.constant dense<0.000000e+00> : vector<72x128xf32>
    %2 = tpu.matmul %0, %1, %cst {dimension_numbers = #tpu.dot_dimension_numbers<[1], [0], [0], [1], [0, 0, 1, 1], [], []>} : vector<72x1024xbf16>, vector<1024x128xbf16>, vector<72x128xf32> -> vector<72x128xf32>
    %c0_3 = arith.constant 0 : index
    %c0_4 = arith.constant 0 : index
    %3 = vector.load %arg3[%c0_3, %c0_4] : memref<1x128xf32, #tpu.memory_space<vmem>>, vector<1x128xf32>
    %4 = vector.broadcast %3 : vector<1x128xf32> to vector<72x128xf32>
    %5 = arith.addf %2, %4 : vector<72x128xf32>
    %cst_5 = arith.constant 0.000000e+00 : f32
    %6 = vector.broadcast %cst_5 : f32 to vector<72x128xf32>
    %7 = arith.maximumf %5, %6 : vector<72x128xf32>
    %c0_6 = arith.constant 0 : index
    %c0_7 = arith.constant 0 : index
    %8 = vector.load %arg4[%c0_6, %c0_7] : memref<72x128xf32, #tpu.memory_space<vmem>>, vector<72x128xf32>
    tpu.vector_store %arg4[%c0_6, %c0_7], %7 {strides = array<i32>} : memref<72x128xf32, #tpu.memory_space<vmem>>, vector<72x128xf32>,
    return
  }
  func.func @transform_0(%arg0: i32) -> (i32, i32) {
    %c0_i32 = arith.constant 0 : i32
    %c0_i32_0 = arith.constant 0 : i32
    return %arg0, %c0_i32 : i32, i32
  }
  func.func @transform_1(%arg0: i32) -> (i32, i32) {
    %c0_i32 = arith.constant 0 : i32
    %c0_i32_0 = arith.constant 0 : i32
    %c0_i32_1 = arith.constant 0 : i32
    return %c0_i32, %c0_i32_0 : i32, i32
  }
  func.func @transform_2(%arg0: i32) -> (i32, i32) {
    %c0_i32 = arith.constant 0 : i32
    %c0_i32_0 = arith.constant 0 : i32
    %c0_i32_1 = arith.constant 0 : i32
    return %c0_i32, %c0_i32_0 : i32, i32
  }
  func.func @transform_3(%arg0: i32) -> (i32, i32) {
    %c0_i32 = arith.constant 0 : i32
    %c0_i32_0 = arith.constant 0 : i32
    return %arg0, %c0_i32 : i32, i32
  }
}

module attributes {stable_mosaic.version = 11 : i64} {
  func.func @_matmul_bias_kernel(%arg0: i32, %arg1: memref<8x2048xbf16, #tpu.memory_space<vmem>>, %arg2: memref<2048x256xbf16, #tpu.memory_space<vmem>>, %arg3: memref<1x256xf32, #tpu.memory_space<vmem>>, %arg4: memref<8x256xf32, #tpu.memory_space<vmem>>) attributes {dimension_semantics = [#tpu.dimension_semantics<parallel>], iteration_bounds = array<i64: 1>, scalar_prefetch = 0 : i64, scratch_operands = 0 : i64, tpu.core_type = #tpu.core_type<tc>, window_params = [{transform_indices = @transform_0, window_bounds = array<i64: 8, 2048>}, {pipeline_mode = #tpu.pipeline_mode<synchronous>, transform_indices = @transform_1, window_bounds = array<i64: 2048, 256>}, {pipeline_mode = #tpu.pipeline_mode<synchronous>, transform_indices = @transform_2, window_bounds = array<i64: 1, 256>}, {transform_indices = @transform_3, window_bounds = array<i64: 8, 256>}]} {
    %c0 = arith.constant 0 : index
    %c0_0 = arith.constant 0 : index
    %0 = vector.load %arg1[%c0, %c0_0] : memref<8x2048xbf16, #tpu.memory_space<vmem>>, vector<8x2048xbf16>
    %c0_1 = arith.constant 0 : index
    %c0_2 = arith.constant 0 : index
    %1 = vector.load %arg2[%c0_1, %c0_2] : memref<2048x256xbf16, #tpu.memory_space<vmem>>, vector<2048x256xbf16>
    %cst = arith.constant dense<0.000000e+00> : vector<8x256xf32>
    %2 = tpu.matmul %0, %1, %cst {dimension_numbers = #tpu.dot_dimension_numbers<[1], [0], [0], [1], [0, 0, 1, 1], [], []>} : vector<8x2048xbf16>, vector<2048x256xbf16>, vector<8x256xf32> -> vector<8x256xf32>
    %c0_3 = arith.constant 0 : index
    %c0_4 = arith.constant 0 : index
    %3 = vector.load %arg3[%c0_3, %c0_4] : memref<1x256xf32, #tpu.memory_space<vmem>>, vector<1x256xf32>
    %4 = vector.broadcast %3 : vector<1x256xf32> to vector<8x256xf32>
    %5 = arith.addf %2, %4 : vector<8x256xf32>
    %cst_5 = arith.constant 0.000000e+00 : f32
    %6 = vector.broadcast %cst_5 : f32 to vector<8x256xf32>
    %7 = arith.maximumf %5, %6 : vector<8x256xf32>
    %c0_6 = arith.constant 0 : index
    %c0_7 = arith.constant 0 : index
    %8 = vector.load %arg4[%c0_6, %c0_7] : memref<8x256xf32, #tpu.memory_space<vmem>>, vector<8x256xf32>
    tpu.vector_store %arg4[%c0_6, %c0_7], %7 {strides = array<i32>} : memref<8x256xf32, #tpu.memory_space<vmem>>, vector<8x256xf32>,
    return
  }
  func.func @transform_0(%arg0: i32) -> (i32, i32) {
    %c0_i32 = arith.constant 0 : i32
    %c0_i32_0 = arith.constant 0 : i32
    return %arg0, %c0_i32 : i32, i32
  }
  func.func @transform_1(%arg0: i32) -> (i32, i32) {
    %c0_i32 = arith.constant 0 : i32
    %c0_i32_0 = arith.constant 0 : i32
    %c0_i32_1 = arith.constant 0 : i32
    return %c0_i32, %c0_i32_0 : i32, i32
  }
  func.func @transform_2(%arg0: i32) -> (i32, i32) {
    %c0_i32 = arith.constant 0 : i32
    %c0_i32_0 = arith.constant 0 : i32
    %c0_i32_1 = arith.constant 0 : i32
    return %c0_i32, %c0_i32_0 : i32, i32
  }
  func.func @transform_3(%arg0: i32) -> (i32, i32) {
    %c0_i32 = arith.constant 0 : i32
    %c0_i32_0 = arith.constant 0 : i32
    return %arg0, %c0_i32 : i32, i32
  }
}

module attributes {stable_mosaic.version = 11 : i64} {
  func.func @_matmul_bias_kernel(%arg0: i32, %arg1: memref<2x1024xbf16, #tpu.memory_space<vmem>>, %arg2: memref<1024x2xbf16, #tpu.memory_space<vmem>>, %arg3: memref<1x2xf32, #tpu.memory_space<vmem>>, %arg4: memref<2x2xf32, #tpu.memory_space<vmem>>) attributes {dimension_semantics = [#tpu.dimension_semantics<parallel>], iteration_bounds = array<i64: 1>, scalar_prefetch = 0 : i64, scratch_operands = 0 : i64, tpu.core_type = #tpu.core_type<tc>, window_params = [{transform_indices = @transform_0, window_bounds = array<i64: 2, 1024>}, {pipeline_mode = #tpu.pipeline_mode<synchronous>, transform_indices = @transform_1, window_bounds = array<i64: 1024, 2>}, {pipeline_mode = #tpu.pipeline_mode<synchronous>, transform_indices = @transform_2, window_bounds = array<i64: 1, 2>}, {transform_indices = @transform_3, window_bounds = array<i64: 2, 2>}]} {
    %c0 = arith.constant 0 : index
    %c0_0 = arith.constant 0 : index
    %0 = vector.load %arg1[%c0, %c0_0] : memref<2x1024xbf16, #tpu.memory_space<vmem>>, vector<2x1024xbf16>
    %c0_1 = arith.constant 0 : index
    %c0_2 = arith.constant 0 : index
    %1 = vector.load %arg2[%c0_1, %c0_2] : memref<1024x2xbf16, #tpu.memory_space<vmem>>, vector<1024x2xbf16>
    %cst = arith.constant dense<0.000000e+00> : vector<2x2xf32>
    %2 = tpu.matmul %0, %1, %cst {dimension_numbers = #tpu.dot_dimension_numbers<[1], [0], [0], [1], [0, 0, 1, 1], [], []>} : vector<2x1024xbf16>, vector<1024x2xbf16>, vector<2x2xf32> -> vector<2x2xf32>
    %c0_3 = arith.constant 0 : index
    %c0_4 = arith.constant 0 : index
    %3 = vector.load %arg3[%c0_3, %c0_4] : memref<1x2xf32, #tpu.memory_space<vmem>>, vector<1x2xf32>
    %4 = vector.broadcast %3 : vector<1x2xf32> to vector<2x2xf32>
    %5 = arith.addf %2, %4 : vector<2x2xf32>
    %6 = arith.mulf %5, %5 : vector<2x2xf32>
    %7 = vector.shape_cast %6 : vector<2x2xf32> to vector<1x2x2xf32>
    %cst_5 = arith.constant dense<0.000000e+00> : vector<1xf32>
    %8 = vector.multi_reduction <add>, %7, %cst_5 [1, 2] : vector<1x2x2xf32> to vector<1xf32>
    %9 = vector.shape_cast %8 : vector<1xf32> to vector<1x1x1xf32>
    %10 = vector.extract %9[0, 0, 0] : f32 from vector<1x1x1xf32>
    %11 = vector.broadcast %10 : f32 to vector<1x1xf32>
    %12 = math.sqrt %11 : vector<1x1xf32>
    %13 = vector.broadcast %12 : vector<1x1xf32> to vector<2x2xf32>
    %14 = arith.divf %5, %13 : vector<2x2xf32>
    %c0_6 = arith.constant 0 : index
    %c0_7 = arith.constant 0 : index
    %15 = vector.load %arg4[%c0_6, %c0_7] : memref<2x2xf32, #tpu.memory_space<vmem>>, vector<2x2xf32>
    tpu.vector_store %arg4[%c0_6, %c0_7], %14 {strides = array<i32>} : memref<2x2xf32, #tpu.memory_space<vmem>>, vector<2x2xf32>,
    return
  }
  func.func @transform_0(%arg0: i32) -> (i32, i32) {
    %c0_i32 = arith.constant 0 : i32
    %c0_i32_0 = arith.constant 0 : i32
    return %arg0, %c0_i32 : i32, i32
  }
  func.func @transform_1(%arg0: i32) -> (i32, i32) {
    %c0_i32 = arith.constant 0 : i32
    %c0_i32_0 = arith.constant 0 : i32
    %c0_i32_1 = arith.constant 0 : i32
    return %c0_i32, %c0_i32_0 : i32, i32
  }
  func.func @transform_2(%arg0: i32) -> (i32, i32) {
    %c0_i32 = arith.constant 0 : i32
    %c0_i32_0 = arith.constant 0 : i32
    %c0_i32_1 = arith.constant 0 : i32
    return %c0_i32, %c0_i32_0 : i32, i32
  }
  func.func @transform_3(%arg0: i32) -> (i32, i32) {
    %c0_i32 = arith.constant 0 : i32
    %c0_i32_0 = arith.constant 0 : i32
    return %arg0, %c0_i32 : i32, i32
  }
}

</mosaic_0001>

<llo_original>
// kernel: encoder.5
$region0: #{encoder.5}
  #allocation0 [shape = 'u32[]', space=smem, size = 0x4, offset = 0x4, fixed_abs, tag = 'smem constant byte address 0x4 - core index']
  #allocation1 [shape = 'u32[72,128]{1,0:T(1,128)}', space=vmem, size = 0x9000, scoped, tag = 'internal scratch']
  %s0 = inlined_call_operand.vmem [shape: bf16[2048,48], index: 0, kind: input, shape index: {}]
  %s1 = inlined_call_operand.vmem [shape: bf16[48,32], index: 1, kind: input, shape index: {}]
  %s2 = inlined_call_operand.vmem [shape: f32[1,32], index: 2, kind: input, shape index: {}]
  %s3 = inlined_call_operand.vmem [shape: f32[2048,32], index: 3, kind: output, shape index: {}]
  %s4 = sld [smem:[#allocation0]]
  $region45: #{encoder.5} parent=0
    _
  %s6 = ssub.s32 1, %s4
  %s7 = scalar_select 0, %s6, %s4
  loop: start=0, step=1, limit=4
  $region2: #{encoder.5} parent=0 // loop_pre_header
    _
  $region3: #{encoder.5} parent=0 // loop_header
    %s9 = sphi 0, %s13
    %p10 = scmp.ge.s32.totalorder %s9, 4
    %s19 = sphi 0, %s21
    %s22 = sphi 0, %s19
    %s23 = sphi 0, %s22
    %s39 = sphi 0, %s23
    %s43 = sphi 0, %s43
    %s45 = sphi 0, %s43
    %s46 = sphi 0, %s45
    %s60 = sphi 0, %s46
    %s64 = sphi 0, %s64
    %s66 = sphi 0, %s64
    %s67 = sphi 0, %s66
    %s81 = sphi 0, %s67
    %s87 = sphi 0, %s89
    %s90 = sphi 0, %s87
    %s91 = sphi 0, %s90
    %s107 = sphi 0, %s91
  $region4: #{encoder.5} parent=0 // loop_header_branch
    %12 = sbr.rel (%p10) target = $region8
  $region5: #{encoder.5} parent=0 // loop_body
    %s14 = ssub.s32 %s9, 1
    %s15 = ssub.s32 %s9, 2
    %s16 = sadd.s32 %s9, 1
    %s17 = ssub.s32 %s9, %s16
    %p18 = scmp.eq.s32.totalorder %s17, 0
    %s20 = sadd.s32 %s19, 1
    %s21 = scalar_select %p18, %s19, %s20
    %p24 = pneg %p18
    %p25 = scmp.eq.s32.totalorder %s9, 1
    %p26 = por %p24, %p25
    %p27 = scmp.ne.s32.totalorder %s19, %s22
    %p28 = scmp.eq.s32.totalorder %s9, 0
    %p29 = por %p27, %p28
    %p30 = scmp.ne.s32.totalorder %s19, %s22
    %p31 = scmp.eq.s32.totalorder %s14, 1
    %p32 = por %p30, %p31
    %p33 = scmp.ne.s32.totalorder %s22, %s23
    %p34 = scmp.eq.s32.totalorder %s14, 0
    %p35 = por %p33, %p34
    %p36 = scmp.ne.s32.totalorder %s22, %s23
    %p37 = scmp.eq.s32.totalorder %s15, 1
    %p38 = por %p36, %p37
    %p40 = scmp.ne.s32.totalorder %s23, %s39
    %p41 = scmp.eq.s32.totalorder %s15, 0
    %p42 = por %p40, %p41
    %s44 = sadd.s32 %s43, 1
    %p47 = scmp.eq.s32.totalorder %s9, 1
    %p48 = scmp.ne.s32.totalorder %s43, %s45
    %p49 = scmp.eq.s32.totalorder %s9, 0
    %p50 = por %p48, %p49
    %p51 = scmp.ne.s32.totalorder %s43, %s45
    %p52 = scmp.eq.s32.totalorder %s14, 1
    %p53 = por %p51, %p52
    %p54 = scmp.ne.s32.totalorder %s45, %s46
    %p55 = scmp.eq.s32.totalorder %s14, 0
    %p56 = por %p54, %p55
    %p57 = scmp.ne.s32.totalorder %s45, %s46
    %p58 = scmp.eq.s32.totalorder %s15, 1
    %p59 = por %p57, %p58
    %p61 = scmp.ne.s32.totalorder %s46, %s60
    %p62 = scmp.eq.s32.totalorder %s15, 0
    %p63 = por %p61, %p62
    %s65 = sadd.s32 %s64, 1
    %p68 = scmp.eq.s32.totalorder %s9, 1
    %p69 = scmp.ne.s32.totalorder %s64, %s66
    %p70 = scmp.eq.s32.totalorder %s9, 0
    %p71 = por %p69, %p70
    %p72 = scmp.ne.s32.totalorder %s64, %s66
    %p73 = scmp.eq.s32.totalorder %s14, 1
    %p74 = por %p72, %p73
    %p75 = scmp.ne.s32.totalorder %s66, %s67
    %p76 = scmp.eq.s32.totalorder %s14, 0
    %p77 = por %p75, %p76
    %p78 = scmp.ne.s32.totalorder %s66, %s67
    %p79 = scmp.eq.s32.totalorder %s15, 1
    %p80 = por %p78, %p79
    %p82 = scmp.ne.s32.totalorder %s67, %s81
    %p83 = scmp.eq.s32.totalorder %s15, 0
    %p84 = por %p82, %p83
    %s85 = ssub.s32 %s9, %s16
    %p86 = scmp.eq.s32.totalorder %s85, 0
    %s88 = sadd.s32 %s87, 1
    %s89 = scalar_select %p86, %s87, %s88
    %p92 = pneg %p86
    %p93 = scmp.eq.s32.totalorder %s9, 1
    %p94 = por %p92, %p93
    %p95 = scmp.ne.s32.totalorder %s87, %s90
    %p96 = scmp.eq.s32.totalorder %s9, 0
    %p97 = por %p95, %p96
    %p98 = scmp.ne.s32.totalorder %s87, %s90
    %p99 = scmp.eq.s32.totalorder %s14, 1
    %p100 = por %p98, %p99
    %p101 = scmp.ne.s32.totalorder %s90, %s91
    %p102 = scmp.eq.s32.totalorder %s14, 0
    %p103 = por %p101, %p102
    %p104 = scmp.ne.s32.totalorder %s90, %s91
    %p105 = scmp.eq.s32.totalorder %s15, 1
    %p106 = por %p104, %p105
    %p108 = scmp.ne.s32.totalorder %s91, %s107
    %p109 = scmp.eq.s32.totalorder %s15, 0
    %p110 = por %p108, %p109
    %p111 = scmp.le.s32.totalorder 1, %s9
    %p112 = scmp.lt.s32.totalorder %s9, 3
    %p113 = pnand %p111, %p112
    %p114 = pneg %p113
    // Predicated region
    $region9: #{encoder.5} parent=5 // pred_check
      _
    $region10: #{encoder.5} parent=5 // pred_check_branch
      %116 = sbr.rel (%p113) target = $region12
    $region11: #{encoder.5} parent=5 // pred_region
      %s117 = ssub.s32 %s9, 1
      // Predicated region
      $region13: #{encoder.5} parent=11 // pred_check
        %p118 = pneg %p56
      $region14: #{encoder.5} parent=11 // pred_check_branch
        %120 = sbr.rel (%p118) target = $region16
      $region15: #{encoder.5} parent=11 // pred_region
        _
      $region16: #{encoder.5} parent=11 // pred_fallthru
        _
      // Predicated region
      $region17: #{encoder.5} parent=11 // pred_check
        %p121 = pneg %p77
      $region18: #{encoder.5} parent=11 // pred_check_branch
        %123 = sbr.rel (%p121) target = $region20
      $region19: #{encoder.5} parent=11 // pred_region
        _
      $region20: #{encoder.5} parent=11 // pred_fallthru
        _
    $region12: #{encoder.5} parent=5 // pred_fallthru
      _
    %p124 = scmp.lt.s32.totalorder %s9, 2
    // Predicated region
    $region21: #{encoder.5} parent=5 // pred_check
      %p125 = pneg %p124
    $region22: #{encoder.5} parent=5 // pred_check_branch
      %127 = sbr.rel (%p125) target = $region24
    $region23: #{encoder.5} parent=5 // pred_region
      // Predicated region
      $region25: #{encoder.5} parent=23 // pred_check
        %p128 = pneg %p29
      $region26: #{encoder.5} parent=23 // pred_check_branch
        %130 = sbr.rel (%p128) target = $region28
      $region27: #{encoder.5} parent=23 // pred_region
        %s131 = smul.u32 128, %s9
        %p132 = scmp.lt.s32.totalorder %s131, 255
        %s133 = scalar_select %p132, %s131, 255
        %s134 = smul.addr %s133, 4
        %s135 = scalar_lea.vmem %s0, %s134
        %s136 = smul.u32 128, %s9
      $region28: #{encoder.5} parent=23 // pred_fallthru
        _
    $region24: #{encoder.5} parent=5 // pred_fallthru
      _
    %p137 = scmp.le.s32.totalorder 1, %s9
    %p138 = scmp.lt.s32.totalorder %s9, 3
    %p139 = pnand %p137, %p138
    %p140 = pneg %p139
    // Predicated region
    $region29: #{encoder.5} parent=5 // pred_check
      _
    $region30: #{encoder.5} parent=5 // pred_check_branch
      %142 = sbr.rel (%p139) target = $region32
    $region31: #{encoder.5} parent=5 // pred_region
      %s143 = ssub.s32 %s9, 1
      %s144 = smul.u32 128, %s14
      %p145 = scmp.lt.s32.totalorder %s144, 255
      %s146 = scalar_select %p145, %s144, 255
      %s147 = smul.addr %s146, 4
      %s148 = scalar_lea.vmem %s0, %s147
      %p149 = pneg %p35
      %p150 = pneg %p32
      %p151 = pneg %p56
      %p152 = pneg %p53
      %p153 = pneg %p77
      %p154 = pneg %p74
      %p155 = pneg %p103
      %p156 = pneg %p100
      %s157 = smul.u32 128, %s14
      %p158 = scmp.lt.s32.totalorder %s157, 255
      %s159 = scalar_select %p158, %s157, 255
      %s160 = smul.addr %s159, 8
      %s161 = scalar_lea.vmem %s3, %s160
      %s162 = smul.u32 128, %s14
      %p163 = scmp.lt.s32.totalorder %s162, 255
      %s164 = scalar_select %p163, %s162, 255
      %s165 = smul.addr %s164, 4
      %s166 = scalar_lea.vmem %s0, %s165
      %s167 = smul.u32 128, %s14
      %s168 = smul.u32 128, %s14
      %p169 = scmp.lt.s32.totalorder %s168, 255
      %s170 = scalar_select %p169, %s168, 255
      %s171 = smul.addr %s170, 8
      %s172 = scalar_lea.vmem %s3, %s171
      %s173 = smul.u32 128, %s14
      %v175 = vld [vmem:[%s166] sm:$0xf]
      %v176 = vld [vmem:[%s166 + $0x4] sm:$0xf]
      %v177 = vld [vmem:[%s166 + $0x8] sm:$0xf]
      %v178 = vld [vmem:[%s166 + $0xc] sm:$0xf]
      %v179 = vld [vmem:[%s166 + $0x10] sm:$0xf]
      %v180 = vld [vmem:[%s166 + $0x14] sm:$0xf]
      %v181 = vld [vmem:[%s166 + $0x18] sm:$0xf]
      %v182 = vld [vmem:[%s166 + $0x1c] sm:$0xf]
      %v183 = vld [vmem:[%s166 + $0x20] sm:$0xf]
      %v184 = vld [vmem:[%s166 + $0x24] sm:$0xf]
      %v185 = vld [vmem:[%s166 + $0x28] sm:$0xf]
      %v186 = vld [vmem:[%s166 + $0x2c] sm:$0xf]
      %v187 = vld [vmem:[%s166 + $0x30] sm:$0xf]
      %v188 = vld [vmem:[%s166 + $0x34] sm:$0xf]
      %v189 = vld [vmem:[%s166 + $0x38] sm:$0xf]
      %v190 = vld [vmem:[%s166 + $0x3c] sm:$0xf]
      %v191 = vld [vmem:[%s166 + $0x40] sm:$0xf]
      %v192 = vld [vmem:[%s166 + $0x44] sm:$0xf]
      %v193 = vld [vmem:[%s166 + $0x48] sm:$0xf]
      %v194 = vld [vmem:[%s166 + $0x4c] sm:$0xf]
      %v195 = vld [vmem:[%s166 + $0x50] sm:$0xf]
      %v196 = vld [vmem:[%s166 + $0x54] sm:$0xf]
      %v197 = vld [vmem:[%s166 + $0x58] sm:$0xf]
      %v198 = vld [vmem:[%s166 + $0x5c] sm:$0xf]
      %v199 = vld [vmem:[%s166 + $0x60] sm:$0xf]
      %v200 = vld [vmem:[%s166 + $0x64] sm:$0xf]
      %v201 = vld [vmem:[%s166 + $0x68] sm:$0xf]
      %v202 = vld [vmem:[%s166 + $0x6c] sm:$0xf]
      %v203 = vld [vmem:[%s166 + $0x70] sm:$0xf]
      %v204 = vld [vmem:[%s166 + $0x74] sm:$0xf]
      %v205 = vld [vmem:[%s166 + $0x78] sm:$0xf]
      %v206 = vld [vmem:[%s166 + $0x7c] sm:$0xf]
      %v207 = vld [vmem:[%s166 + $0x80] sm:$0xf]
      %v208 = vld [vmem:[%s166 + $0x84] sm:$0xf]
      %v209 = vld [vmem:[%s166 + $0x88] sm:$0xf]
      %v210 = vld [vmem:[%s166 + $0x8c] sm:$0xf]
      %v211 = vld [vmem:[%s166 + $0x90] sm:$0xf]
      %v212 = vld [vmem:[%s166 + $0x94] sm:$0xf]
      %v213 = vld [vmem:[%s166 + $0x98] sm:$0xf]
      %v214 = vld [vmem:[%s166 + $0x9c] sm:$0xf]
      %v215 = vld [vmem:[%s166 + $0xa0] sm:$0xf]
      %v216 = vld [vmem:[%s166 + $0xa4] sm:$0xf]
      %v217 = vld [vmem:[%s166 + $0xa8] sm:$0xf]
      %v218 = vld [vmem:[%s166 + $0xac] sm:$0xf]
      %v219 = vld [vmem:[%s166 + $0xb0] sm:$0xf]
      %v220 = vld [vmem:[%s166 + $0xb4] sm:$0xf]
      %v221 = vld [vmem:[%s166 + $0xb8] sm:$0xf]
      %v222 = vld [vmem:[%s166 + $0xbc] sm:$0xf]
      %v223 = vld [vmem:[%s166 + $0xc0] sm:$0xf]
      %v224 = vld [vmem:[%s166 + $0xc4] sm:$0xf]
      %v225 = vld [vmem:[%s166 + $0xc8] sm:$0xf]
      %v226 = vld [vmem:[%s166 + $0xcc] sm:$0xf]
      %v227 = vld [vmem:[%s166 + $0xd0] sm:$0xf]
      %v228 = vld [vmem:[%s166 + $0xd4] sm:$0xf]
      %v229 = vld [vmem:[%s166 + $0xd8] sm:$0xf]
      %v230 = vld [vmem:[%s166 + $0xdc] sm:$0xf]
      %v231 = vld [vmem:[%s166 + $0xe0] sm:$0xf]
      %v232 = vld [vmem:[%s166 + $0xe4] sm:$0xf]
      %v233 = vld [vmem:[%s166 + $0xe8] sm:$0xf]
      %v234 = vld [vmem:[%s166 + $0xec] sm:$0xf]
      %v235 = vld [vmem:[%s166 + $0xf0] sm:$0xf]
      %v236 = vld [vmem:[%s166 + $0xf4] sm:$0xf]
      %v237 = vld [vmem:[%s166 + $0xf8] sm:$0xf]
      %v238 = vld [vmem:[%s166 + $0xfc] sm:$0xf]
      %v239 = vld [vmem:[%s166 + $0x100] sm:$0xf]
      %v240 = vld [vmem:[%s166 + $0x104] sm:$0xf]
      %v241 = vld [vmem:[%s166 + $0x108] sm:$0xf]
      %v242 = vld [vmem:[%s166 + $0x10c] sm:$0xf]
      %v243 = vld [vmem:[%s166 + $0x110] sm:$0xf]
      %v244 = vld [vmem:[%s166 + $0x114] sm:$0xf]
      %v245 = vld [vmem:[%s166 + $0x118] sm:$0xf]
      %v246 = vld [vmem:[%s166 + $0x11c] sm:$0xf]
      %v247 = vld [vmem:[%s166 + $0x120] sm:$0xf]
      %v248 = vld [vmem:[%s166 + $0x124] sm:$0xf]
      %v249 = vld [vmem:[%s166 + $0x128] sm:$0xf]
      %v250 = vld [vmem:[%s166 + $0x12c] sm:$0xf]
      %v251 = vld [vmem:[%s166 + $0x130] sm:$0xf]
      %v252 = vld [vmem:[%s166 + $0x134] sm:$0xf]
      %v253 = vld [vmem:[%s166 + $0x138] sm:$0xf]
      %v254 = vld [vmem:[%s166 + $0x13c] sm:$0xf]
      %v255 = vld [vmem:[%s166 + $0x140] sm:$0xf]
      %v256 = vld [vmem:[%s166 + $0x144] sm:$0xf]
      %v257 = vld [vmem:[%s166 + $0x148] sm:$0xf]
      %v258 = vld [vmem:[%s166 + $0x14c] sm:$0xf]
      %v259 = vld [vmem:[%s166 + $0x150] sm:$0xf]
      %v260 = vld [vmem:[%s166 + $0x154] sm:$0xf]
      %v261 = vld [vmem:[%s166 + $0x158] sm:$0xf]
      %v262 = vld [vmem:[%s166 + $0x15c] sm:$0xf]
      %v263 = vld [vmem:[%s166 + $0x160] sm:$0xf]
      %v264 = vld [vmem:[%s166 + $0x164] sm:$0xf]
      %v265 = vld [vmem:[%s166 + $0x168] sm:$0xf]
      %v266 = vld [vmem:[%s166 + $0x16c] sm:$0xf]
      %v267 = vld [vmem:[%s166 + $0x170] sm:$0xf]
      %v268 = vld [vmem:[%s166 + $0x174] sm:$0xf]
      %v269 = vld [vmem:[%s166 + $0x178] sm:$0xf]
      %v270 = vld [vmem:[%s166 + $0x17c] sm:$0xf]
      %v271 = vld [vmem:[%s166 + $0x180] sm:$0xf]
      %v272 = vld [vmem:[%s166 + $0x184] sm:$0xf]
      %v273 = vld [vmem:[%s166 + $0x188] sm:$0xf]
      %v274 = vld [vmem:[%s166 + $0x18c] sm:$0xf]
      %v275 = vld [vmem:[%s166 + $0x190] sm:$0xf]
      %v276 = vld [vmem:[%s166 + $0x194] sm:$0xf]
      %v277 = vld [vmem:[%s166 + $0x198] sm:$0xf]
      %v278 = vld [vmem:[%s166 + $0x19c] sm:$0xf]
      %v279 = vld [vmem:[%s166 + $0x1a0] sm:$0xf]
      %v280 = vld [vmem:[%s166 + $0x1a4] sm:$0xf]
      %v281 = vld [vmem:[%s166 + $0x1a8] sm:$0xf]
      %v282 = vld [vmem:[%s166 + $0x1ac] sm:$0xf]
      %v283 = vld [vmem:[%s166 + $0x1b0] sm:$0xf]
      %v284 = vld [vmem:[%s166 + $0x1b4] sm:$0xf]
      %v285 = vld [vmem:[%s166 + $0x1b8] sm:$0xf]
      %v286 = vld [vmem:[%s166 + $0x1bc] sm:$0xf]
      %v287 = vld [vmem:[%s166 + $0x1c0] sm:$0xf]
      %v288 = vld [vmem:[%s166 + $0x1c4] sm:$0xf]
      %v289 = vld [vmem:[%s166 + $0x1c8] sm:$0xf]
      %v290 = vld [vmem:[%s166 + $0x1cc] sm:$0xf]
      %v291 = vld [vmem:[%s166 + $0x1d0] sm:$0xf]
      %v292 = vld [vmem:[%s166 + $0x1d4] sm:$0xf]
      %v293 = vld [vmem:[%s166 + $0x1d8] sm:$0xf]
      %v294 = vld [vmem:[%s166 + $0x1dc] sm:$0xf]
      %v295 = vld [vmem:[%s166 + $0x1e0] sm:$0xf]
      %v296 = vld [vmem:[%s166 + $0x1e4] sm:$0xf]
      %v297 = vld [vmem:[%s166 + $0x1e8] sm:$0xf]
      %v298 = vld [vmem:[%s166 + $0x1ec] sm:$0xf]
      %v299 = vld [vmem:[%s166 + $0x1f0] sm:$0xf]
      %v300 = vld [vmem:[%s166 + $0x1f4] sm:$0xf]
      %v301 = vld [vmem:[%s166 + $0x1f8] sm:$0xf]
      %v302 = vld [vmem:[%s166 + $0x1fc] sm:$0xf]
      %v303 = vld [vmem:[%s1] sm:$0xf]
      %v304 = vld [vmem:[%s1 + $0x4] sm:$0xf]
      %v305 = vld [vmem:[%s1 + $0x8] sm:$0xf]
      %v306 = vld [vmem:[%s1 + $0xc] sm:$0xf]
      %v307 = vld [vmem:[%s1 + $0x10] sm:$0xf]
      %v308 = vld [vmem:[%s1 + $0x14] sm:$0xf]
      %v309 = vld [vmem:[%s2] sm:$0x1]
      %v311 = vperm.slane %v309, 0
      %v441 = vunpack.c.l.b16 %v175
      %v442 = vunpack.c.l.b16 %v176
      %v443 = vunpack.c.l.b16 %v177
      %v444 = vunpack.c.l.b16 %v178
      %v445 = vunpack.c.l.b16 %v179
      %v446 = vunpack.c.l.b16 %v180
      %v447 = vunpack.c.l.b16 %v181
      %v448 = vunpack.c.l.b16 %v182
      %v449 = vunpack.c.l.b16 %v183
      %v450 = vunpack.c.l.b16 %v184
      %v451 = vunpack.c.l.b16 %v185
      %v452 = vunpack.c.l.b16 %v186
      %v453 = vunpack.c.l.b16 %v187
      %v454 = vunpack.c.l.b16 %v188
      %v455 = vunpack.c.l.b16 %v189
      %v456 = vunpack.c.l.b16 %v190
      %v457 = vunpack.c.l.b16 %v191
      %v458 = vunpack.c.l.b16 %v192
      %v459 = vunpack.c.l.b16 %v193
      %v460 = vunpack.c.l.b16 %v194
      %v461 = vunpack.c.l.b16 %v195
      %v462 = vunpack.c.l.b16 %v196
      %v463 = vunpack.c.l.b16 %v197
      %v464 = vunpack.c.l.b16 %v198
      %v465 = vunpack.c.l.b16 %v199
      %v466 = vunpack.c.l.b16 %v200
      %v467 = vunpack.c.l.b16 %v201
      %v468 = vunpack.c.l.b16 %v202
      %v469 = vunpack.c.l.b16 %v203
      %v470 = vunpack.c.l.b16 %v204
      %v471 = vunpack.c.l.b16 %v205
      %v472 = vunpack.c.l.b16 %v206
      %v473 = vunpack.c.l.b16 %v207
      %v474 = vunpack.c.l.b16 %v208
      %v475 = vunpack.c.l.b16 %v209
      %v476 = vunpack.c.l.b16 %v210
      %v477 = vunpack.c.l.b16 %v211
      %v478 = vunpack.c.l.b16 %v212
      %v479 = vunpack.c.l.b16 %v213
      %v480 = vunpack.c.l.b16 %v214
      %v481 = vunpack.c.l.b16 %v215
      %v482 = vunpack.c.l.b16 %v216
      %v483 = vunpack.c.l.b16 %v217
      %v484 = vunpack.c.l.b16 %v218
      %v485 = vunpack.c.l.b16 %v219
      %v486 = vunpack.c.l.b16 %v220
      %v487 = vunpack.c.l.b16 %v221
      %v488 = vunpack.c.l.b16 %v222
      %v489 = vunpack.c.l.b16 %v223
      %v490 = vunpack.c.l.b16 %v224
      %v491 = vunpack.c.l.b16 %v225
      %v492 = vunpack.c.l.b16 %v226
      %v493 = vunpack.c.l.b16 %v227
      %v494 = vunpack.c.l.b16 %v228
      %v495 = vunpack.c.l.b16 %v229
      %v496 = vunpack.c.l.b16 %v230
      %v497 = vunpack.c.l.b16 %v231
      %v498 = vunpack.c.l.b16 %v232
      %v499 = vunpack.c.l.b16 %v233
      %v500 = vunpack.c.l.b16 %v234
      %v501 = vunpack.c.l.b16 %v235
      %v502 = vunpack.c.l.b16 %v236
      %v503 = vunpack.c.l.b16 %v237
      %v504 = vunpack.c.l.b16 %v238
      %v505 = vunpack.c.l.b16 %v239
      %v506 = vunpack.c.l.b16 %v240
      %v507 = vunpack.c.l.b16 %v241
      %v508 = vunpack.c.l.b16 %v242
      %v509 = vunpack.c.l.b16 %v243
      %v510 = vunpack.c.l.b16 %v244
      %v511 = vunpack.c.l.b16 %v245
      %v512 = vunpack.c.l.b16 %v246
      %v513 = vunpack.c.l.b16 %v247
      %v514 = vunpack.c.l.b16 %v248
      %v515 = vunpack.c.l.b16 %v249
      %v516 = vunpack.c.l.b16 %v250
      %v517 = vunpack.c.l.b16 %v251
      %v518 = vunpack.c.l.b16 %v252
      %v519 = vunpack.c.l.b16 %v253
      %v520 = vunpack.c.l.b16 %v254
      %v521 = vunpack.c.l.b16 %v255
      %v522 = vunpack.c.l.b16 %v256
      %v523 = vunpack.c.l.b16 %v257
      %v524 = vunpack.c.l.b16 %v258
      %v525 = vunpack.c.l.b16 %v259
      %v526 = vunpack.c.l.b16 %v260
      %v527 = vunpack.c.l.b16 %v261
      %v528 = vunpack.c.l.b16 %v262
      %v529 = vunpack.c.l.b16 %v263
      %v530 = vunpack.c.l.b16 %v264
      %v531 = vunpack.c.l.b16 %v265
      %v532 = vunpack.c.l.b16 %v266
      %v533 = vunpack.c.l.b16 %v267
      %v534 = vunpack.c.l.b16 %v268
      %v535 = vunpack.c.l.b16 %v269
      %v536 = vunpack.c.l.b16 %v270
      %v537 = vunpack.c.l.b16 %v271
      %v538 = vunpack.c.l.b16 %v272
      %v539 = vunpack.c.l.b16 %v273
      %v540 = vunpack.c.l.b16 %v274
      %v541 = vunpack.c.l.b16 %v275
      %v542 = vunpack.c.l.b16 %v276
      %v543 = vunpack.c.l.b16 %v277
      %v544 = vunpack.c.l.b16 %v278
      %v545 = vunpack.c.l.b16 %v279
      %v546 = vunpack.c.l.b16 %v280
      %v547 = vunpack.c.l.b16 %v281
      %v548 = vunpack.c.l.b16 %v282
      %v549 = vunpack.c.l.b16 %v283
      %v550 = vunpack.c.l.b16 %v284
      %v551 = vunpack.c.l.b16 %v285
      %v552 = vunpack.c.l.b16 %v286
      %v553 = vunpack.c.l.b16 %v287
      %v554 = vunpack.c.l.b16 %v288
      %v555 = vunpack.c.l.b16 %v289
      %v556 = vunpack.c.l.b16 %v290
      %v557 = vunpack.c.l.b16 %v291
      %v558 = vunpack.c.l.b16 %v292
      %v559 = vunpack.c.l.b16 %v293
      %v560 = vunpack.c.l.b16 %v294
      %v561 = vunpack.c.l.b16 %v295
      %v562 = vunpack.c.l.b16 %v296
      %v563 = vunpack.c.l.b16 %v297
      %v564 = vunpack.c.l.b16 %v298
      %v565 = vunpack.c.l.b16 %v299
      %v566 = vunpack.c.l.b16 %v300
      %v567 = vunpack.c.l.b16 %v301
      %v568 = vunpack.c.l.b16 %v302
      %v569 = vpack.c.b16 %v442, %v441
      %v570 = vpack.c.b16 %v444, %v443
      %v571 = vpack.c.b16 %v446, %v445
      %v572 = vpack.c.b16 %v448, %v447
      %v573 = vpack.c.b16 %v450, %v449
      %v574 = vpack.c.b16 %v452, %v451
      %v575 = vpack.c.b16 %v454, %v453
      %v576 = vpack.c.b16 %v456, %v455
      %v577 = vpack.c.b16 %v458, %v457
      %v578 = vpack.c.b16 %v460, %v459
      %v579 = vpack.c.b16 %v462, %v461
      %v580 = vpack.c.b16 %v464, %v463
      %v581 = vpack.c.b16 %v466, %v465
      %v582 = vpack.c.b16 %v468, %v467
      %v583 = vpack.c.b16 %v470, %v469
      %v584 = vpack.c.b16 %v472, %v471
      %v585 = vpack.c.b16 %v474, %v473
      %v586 = vpack.c.b16 %v476, %v475
      %v587 = vpack.c.b16 %v478, %v477
      %v588 = vpack.c.b16 %v480, %v479
      %v589 = vpack.c.b16 %v482, %v481
      %v590 = vpack.c.b16 %v484, %v483
      %v591 = vpack.c.b16 %v486, %v485
      %v592 = vpack.c.b16 %v488, %v487
      %v593 = vpack.c.b16 %v490, %v489
      %v594 = vpack.c.b16 %v492, %v491
      %v595 = vpack.c.b16 %v494, %v493
      %v596 = vpack.c.b16 %v496, %v495
      %v597 = vpack.c.b16 %v498, %v497
      %v598 = vpack.c.b16 %v500, %v499
      %v599 = vpack.c.b16 %v502, %v501
      %v600 = vpack.c.b16 %v504, %v503
      %v601 = vpack.c.b16 %v506, %v505
      %v602 = vpack.c.b16 %v508, %v507
      %v603 = vpack.c.b16 %v510, %v509
      %v604 = vpack.c.b16 %v512, %v511
      %v605 = vpack.c.b16 %v514, %v513
      %v606 = vpack.c.b16 %v516, %v515
      %v607 = vpack.c.b16 %v518, %v517
      %v608 = vpack.c.b16 %v520, %v519
      %v609 = vpack.c.b16 %v522, %v521
      %v610 = vpack.c.b16 %v524, %v523
      %v611 = vpack.c.b16 %v526, %v525
      %v612 = vpack.c.b16 %v528, %v527
      %v613 = vpack.c.b16 %v530, %v529
      %v614 = vpack.c.b16 %v532, %v531
      %v615 = vpack.c.b16 %v534, %v533
      %v616 = vpack.c.b16 %v536, %v535
      %v617 = vpack.c.b16 %v538, %v537
      %v618 = vpack.c.b16 %v540, %v539
      %v619 = vpack.c.b16 %v542, %v541
      %v620 = vpack.c.b16 %v544, %v543
      %v621 = vpack.c.b16 %v546, %v545
      %v622 = vpack.c.b16 %v548, %v547
      %v623 = vpack.c.b16 %v550, %v549
      %v624 = vpack.c.b16 %v552, %v551
      %v625 = vpack.c.b16 %v554, %v553
      %v626 = vpack.c.b16 %v556, %v555
      %v627 = vpack.c.b16 %v558, %v557
      %v628 = vpack.c.b16 %v560, %v559
      %v629 = vpack.c.b16 %v562, %v561
      %v630 = vpack.c.b16 %v564, %v563
      %v631 = vpack.c.b16 %v566, %v565
      %v632 = vpack.c.b16 %v568, %v567
      %v639 = vunpack.c.l.b16 %v303
      %v640 = vunpack.c.l.b16 %v304
      %v641 = vunpack.c.l.b16 %v305
      %v642 = vunpack.c.l.b16 %v306
      %v643 = vunpack.c.l.b16 %v307
      %v644 = vunpack.c.l.b16 %v308
      %v645 = vpack.c.b16 %v640, %v639
      %v646 = vpack.c.b16 %v642, %v641
      %v647 = vpack.c.b16 %v644, %v643
      %vm651 = vcmask 392192
      %v653 = vsel %vm651, %v569, 0
      %v656 = vsel %vm651, %v570, 0
      %v659 = vsel %vm651, %v571, 0
      %v662 = vsel %vm651, %v572, 0
      %v665 = vsel %vm651, %v573, 0
      %v668 = vsel %vm651, %v574, 0
      %v671 = vsel %vm651, %v575, 0
      %v674 = vsel %vm651, %v576, 0
      %v677 = vsel %vm651, %v577, 0
      %v680 = vsel %vm651, %v578, 0
      %v683 = vsel %vm651, %v579, 0
      %v686 = vsel %vm651, %v580, 0
      %v689 = vsel %vm651, %v581, 0
      %v692 = vsel %vm651, %v582, 0
      %v695 = vsel %vm651, %v583, 0
      %v698 = vsel %vm651, %v584, 0
      %v701 = vsel %vm651, %v585, 0
      %v704 = vsel %vm651, %v586, 0
      %v707 = vsel %vm651, %v587, 0
      %v710 = vsel %vm651, %v588, 0
      %v713 = vsel %vm651, %v589, 0
      %v716 = vsel %vm651, %v590, 0
      %v719 = vsel %vm651, %v591, 0
      %v722 = vsel %vm651, %v592, 0
      %v725 = vsel %vm651, %v593, 0
      %v728 = vsel %vm651, %v594, 0
      %v731 = vsel %vm651, %v595, 0
      %v734 = vsel %vm651, %v596, 0
      %v737 = vsel %vm651, %v597, 0
      %v740 = vsel %vm651, %v598, 0
      %v743 = vsel %vm651, %v599, 0
      %v746 = vsel %vm651, %v600, 0
      %v749 = vsel %vm651, %v601, 0
      %v752 = vsel %vm651, %v602, 0
      %v755 = vsel %vm651, %v603, 0
      %v758 = vsel %vm651, %v604, 0
      %v761 = vsel %vm651, %v605, 0
      %v764 = vsel %vm651, %v606, 0
      %v767 = vsel %vm651, %v607, 0
      %v770 = vsel %vm651, %v608, 0
      %v773 = vsel %vm651, %v609, 0
      %v776 = vsel %vm651, %v610, 0
      %v779 = vsel %vm651, %v611, 0
      %v782 = vsel %vm651, %v612, 0
      %v785 = vsel %vm651, %v613, 0
      %v788 = vsel %vm651, %v614, 0
      %v791 = vsel %vm651, %v615, 0
      %v794 = vsel %vm651, %v616, 0
      %v797 = vsel %vm651, %v617, 0
      %v800 = vsel %vm651, %v618, 0
      %v803 = vsel %vm651, %v619, 0
      %v806 = vsel %vm651, %v620, 0
      %v809 = vsel %vm651, %v621, 0
      %v812 = vsel %vm651, %v622, 0
      %v815 = vsel %vm651, %v623, 0
      %v818 = vsel %vm651, %v624, 0
      %v821 = vsel %vm651, %v625, 0
      %v824 = vsel %vm651, %v626, 0
      %v827 = vsel %vm651, %v627, 0
      %v830 = vsel %vm651, %v628, 0
      %v833 = vsel %vm651, %v629, 0
      %v836 = vsel %vm651, %v630, 0
      %v839 = vsel %vm651, %v631, 0
      %v842 = vsel %vm651, %v632, 0
      %844 = vmatpush.bf16.msra.mxu0 0
      %845 = vmatpush.bf16.msra.mxu0 0
      %846 = vmatpush.bf16.msra.mxu0 0
      %847 = vmatpush.bf16.msra.mxu0 0
      %848 = vmatpush.bf16.msra.mxu0 0
      %849 = vmatpush.bf16.msra.mxu0 %v647
      %850 = vmatpush.bf16.msra.mxu0 %v646
      %851 = vmatpush.bf16.msra.mxu0 %v645
      %852 = vmatmul.bf16.gmra.mxu0 %v653
      %v853 = vpop.f32.mrf.mxu0
      %v854 = vadd.f32 %v311, %v853
      %v855 = vpop.f32.mrf.mxu0
      %v856 = vadd.f32 %v311, %v855
      %857 = vmatmul.bf16.gmra.mxu0 %v656
      %v858 = vpop.f32.mrf.mxu0
      %v859 = vadd.f32 %v311, %v858
      %v860 = vpop.f32.mrf.mxu0
      %v861 = vadd.f32 %v311, %v860
      %862 = vmatmul.bf16.gmra.mxu0 %v659
      %v863 = vpop.f32.mrf.mxu0
      %v864 = vadd.f32 %v311, %v863
      %v865 = vpop.f32.mrf.mxu0
      %v866 = vadd.f32 %v311, %v865
      %867 = vmatmul.bf16.gmra.mxu0 %v662
      %v868 = vpop.f32.mrf.mxu0
      %v869 = vadd.f32 %v311, %v868
      %v870 = vpop.f32.mrf.mxu0
      %v871 = vadd.f32 %v311, %v870
      %872 = vmatmul.bf16.gmra.mxu0 %v665
      %v873 = vpop.f32.mrf.mxu0
      %v874 = vadd.f32 %v311, %v873
      %v875 = vpop.f32.mrf.mxu0
      %v876 = vadd.f32 %v311, %v875
      %877 = vmatmul.bf16.gmra.mxu0 %v668
      %v878 = vpop.f32.mrf.mxu0
      %v879 = vadd.f32 %v311, %v878
      %v880 = vpop.f32.mrf.mxu0
      %v881 = vadd.f32 %v311, %v880
      %882 = vmatmul.bf16.gmra.mxu0 %v671
      %v883 = vpop.f32.mrf.mxu0
      %v884 = vadd.f32 %v311, %v883
      %v885 = vpop.f32.mrf.mxu0
      %v886 = vadd.f32 %v311, %v885
      %887 = vmatmul.bf16.gmra.mxu0 %v674
      %v888 = vpop.f32.mrf.mxu0
      %v889 = vadd.f32 %v311, %v888
      %v890 = vpop.f32.mrf.mxu0
      %v891 = vadd.f32 %v311, %v890
      %892 = vmatmul.bf16.gmra.mxu0 %v677
      %v893 = vpop.f32.mrf.mxu0
      %v894 = vadd.f32 %v311, %v893
      %v895 = vpop.f32.mrf.mxu0
      %v896 = vadd.f32 %v311, %v895
      %897 = vmatmul.bf16.gmra.mxu0 %v680
      %v898 = vpop.f32.mrf.mxu0
      %v899 = vadd.f32 %v311, %v898
      %v900 = vpop.f32.mrf.mxu0
      %v901 = vadd.f32 %v311, %v900
      %902 = vmatmul.bf16.gmra.mxu0 %v683
      %v903 = vpop.f32.mrf.mxu0
      %v904 = vadd.f32 %v311, %v903
      %v905 = vpop.f32.mrf.mxu0
      %v906 = vadd.f32 %v311, %v905
      %907 = vmatmul.bf16.gmra.mxu0 %v686
      %v908 = vpop.f32.mrf.mxu0
      %v909 = vadd.f32 %v311, %v908
      %v910 = vpop.f32.mrf.mxu0
      %v911 = vadd.f32 %v311, %v910
      %912 = vmatmul.bf16.gmra.mxu0 %v689
      %v913 = vpop.f32.mrf.mxu0
      %v914 = vadd.f32 %v311, %v913
      %v915 = vpop.f32.mrf.mxu0
      %v916 = vadd.f32 %v311, %v915
      %917 = vmatmul.bf16.gmra.mxu0 %v692
      %v918 = vpop.f32.mrf.mxu0
      %v919 = vadd.f32 %v311, %v918
      %v920 = vpop.f32.mrf.mxu0
      %v921 = vadd.f32 %v311, %v920
      %922 = vmatmul.bf16.gmra.mxu0 %v695
      %v923 = vpop.f32.mrf.mxu0
      %v924 = vadd.f32 %v311, %v923
      %v925 = vpop.f32.mrf.mxu0
      %v926 = vadd.f32 %v311, %v925
      %927 = vmatmul.bf16.gmra.mxu0 %v698
      %v928 = vpop.f32.mrf.mxu0
      %v929 = vadd.f32 %v311, %v928
      %v930 = vpop.f32.mrf.mxu0
      %v931 = vadd.f32 %v311, %v930
      %932 = vmatmul.bf16.gmra.mxu0 %v701
      %v933 = vpop.f32.mrf.mxu0
      %v934 = vadd.f32 %v311, %v933
      %v935 = vpop.f32.mrf.mxu0
      %v936 = vadd.f32 %v311, %v935
      %937 = vmatmul.bf16.gmra.mxu0 %v704
      %v938 = vpop.f32.mrf.mxu0
      %v939 = vadd.f32 %v311, %v938
      %v940 = vpop.f32.mrf.mxu0
      %v941 = vadd.f32 %v311, %v940
      %942 = vmatmul.bf16.gmra.mxu0 %v707
      %v943 = vpop.f32.mrf.mxu0
      %v944 = vadd.f32 %v311, %v943
      %v945 = vpop.f32.mrf.mxu0
      %v946 = vadd.f32 %v311, %v945
      %947 = vmatmul.bf16.gmra.mxu0 %v710
      %v948 = vpop.f32.mrf.mxu0
      %v949 = vadd.f32 %v311, %v948
      %v950 = vpop.f32.mrf.mxu0
      %v951 = vadd.f32 %v311, %v950
      %952 = vmatmul.bf16.gmra.mxu0 %v713
      %v953 = vpop.f32.mrf.mxu0
      %v954 = vadd.f32 %v311, %v953
      %v955 = vpop.f32.mrf.mxu0
      %v956 = vadd.f32 %v311, %v955
      %957 = vmatmul.bf16.gmra.mxu0 %v716
      %v958 = vpop.f32.mrf.mxu0
      %v959 = vadd.f32 %v311, %v958
      %v960 = vpop.f32.mrf.mxu0
      %v961 = vadd.f32 %v311, %v960
      %962 = vmatmul.bf16.gmra.mxu0 %v719
      %v963 = vpop.f32.mrf.mxu0
      %v964 = vadd.f32 %v311, %v963
      %v965 = vpop.f32.mrf.mxu0
      %v966 = vadd.f32 %v311, %v965
      %967 = vmatmul.bf16.gmra.mxu0 %v722
      %v968 = vpop.f32.mrf.mxu0
      %v969 = vadd.f32 %v311, %v968
      %v970 = vpop.f32.mrf.mxu0
      %v971 = vadd.f32 %v311, %v970
      %972 = vmatmul.bf16.gmra.mxu0 %v725
      %v973 = vpop.f32.mrf.mxu0
      %v974 = vadd.f32 %v311, %v973
      %v975 = vpop.f32.mrf.mxu0
      %v976 = vadd.f32 %v311, %v975
      %977 = vmatmul.bf16.gmra.mxu0 %v728
      %v978 = vpop.f32.mrf.mxu0
      %v979 = vadd.f32 %v311, %v978
      %v980 = vpop.f32.mrf.mxu0
      %v981 = vadd.f32 %v311, %v980
      %982 = vmatmul.bf16.gmra.mxu0 %v731
      %v983 = vpop.f32.mrf.mxu0
      %v984 = vadd.f32 %v311, %v983
      %v985 = vpop.f32.mrf.mxu0
      %v986 = vadd.f32 %v311, %v985
      %987 = vmatmul.bf16.gmra.mxu0 %v734
      %v988 = vpop.f32.mrf.mxu0
      %v989 = vadd.f32 %v311, %v988
      %v990 = vpop.f32.mrf.mxu0
      %v991 = vadd.f32 %v311, %v990
      %992 = vmatmul.bf16.gmra.mxu0 %v737
      %v993 = vpop.f32.mrf.mxu0
      %v994 = vadd.f32 %v311, %v993
      %v995 = vpop.f32.mrf.mxu0
      %v996 = vadd.f32 %v311, %v995
      %997 = vmatmul.bf16.gmra.mxu0 %v740
      %v998 = vpop.f32.mrf.mxu0
      %v999 = vadd.f32 %v311, %v998
      %v1000 = vpop.f32.mrf.mxu0
      %v1001 = vadd.f32 %v311, %v1000
      %1002 = vmatmul.bf16.gmra.mxu0 %v743
      %v1003 = vpop.f32.mrf.mxu0
      %v1004 = vadd.f32 %v311, %v1003
      %v1005 = vpop.f32.mrf.mxu0
      %v1006 = vadd.f32 %v311, %v1005
      %1007 = vmatmul.bf16.gmra.mxu0 %v746
      %v1008 = vpop.f32.mrf.mxu0
      %v1009 = vadd.f32 %v311, %v1008
      %v1010 = vpop.f32.mrf.mxu0
      %v1011 = vadd.f32 %v311, %v1010
      %1012 = vmatmul.bf16.gmra.mxu0 %v749
      %v1013 = vpop.f32.mrf.mxu0
      %v1014 = vadd.f32 %v311, %v1013
      %v1015 = vpop.f32.mrf.mxu0
      %v1016 = vadd.f32 %v311, %v1015
      %1017 = vmatmul.bf16.gmra.mxu0 %v752
      %v1018 = vpop.f32.mrf.mxu0
      %v1019 = vadd.f32 %v311, %v1018
      %v1020 = vpop.f32.mrf.mxu0
      %v1021 = vadd.f32 %v311, %v1020
      %1022 = vmatmul.bf16.gmra.mxu0 %v755
      %v1023 = vpop.f32.mrf.mxu0
      %v1024 = vadd.f32 %v311, %v1023
      %v1025 = vpop.f32.mrf.mxu0
      %v1026 = vadd.f32 %v311, %v1025
      %1027 = vmatmul.bf16.gmra.mxu0 %v758
      %v1028 = vpop.f32.mrf.mxu0
      %v1029 = vadd.f32 %v311, %v1028
      %v1030 = vpop.f32.mrf.mxu0
      %v1031 = vadd.f32 %v311, %v1030
      %1032 = vmatmul.bf16.gmra.mxu0 %v761
      %v1033 = vpop.f32.mrf.mxu0
      %v1034 = vadd.f32 %v311, %v1033
      %v1035 = vpop.f32.mrf.mxu0
      %v1036 = vadd.f32 %v311, %v1035
      %1037 = vmatmul.bf16.gmra.mxu0 %v764
      %v1038 = vpop.f32.mrf.mxu0
      %v1039 = vadd.f32 %v311, %v1038
      %v1040 = vpop.f32.mrf.mxu0
      %v1041 = vadd.f32 %v311, %v1040
      %1042 = vmatmul.bf16.gmra.mxu0 %v767
      %v1043 = vpop.f32.mrf.mxu0
      %v1044 = vadd.f32 %v311, %v1043
      %v1045 = vpop.f32.mrf.mxu0
      %v1046 = vadd.f32 %v311, %v1045
      %1047 = vmatmul.bf16.gmra.mxu0 %v770
      %v1048 = vpop.f32.mrf.mxu0
      %v1049 = vadd.f32 %v311, %v1048
      %v1050 = vpop.f32.mrf.mxu0
      %v1051 = vadd.f32 %v311, %v1050
      %1052 = vmatmul.bf16.gmra.mxu0 %v773
      %v1053 = vpop.f32.mrf.mxu0
      %v1054 = vadd.f32 %v311, %v1053
      %v1055 = vpop.f32.mrf.mxu0
      %v1056 = vadd.f32 %v311, %v1055
      %1057 = vmatmul.bf16.gmra.mxu0 %v776
      %v1058 = vpop.f32.mrf.mxu0
      %v1059 = vadd.f32 %v311, %v1058
      %v1060 = vpop.f32.mrf.mxu0
      %v1061 = vadd.f32 %v311, %v1060
      %1062 = vmatmul.bf16.gmra.mxu0 %v779
      %v1063 = vpop.f32.mrf.mxu0
      %v1064 = vadd.f32 %v311, %v1063
      %v1065 = vpop.f32.mrf.mxu0
      %v1066 = vadd.f32 %v311, %v1065
      %1067 = vmatmul.bf16.gmra.mxu0 %v782
      %v1068 = vpop.f32.mrf.mxu0
      %v1069 = vadd.f32 %v311, %v1068
      %v1070 = vpop.f32.mrf.mxu0
      %v1071 = vadd.f32 %v311, %v1070
      %1072 = vmatmul.bf16.gmra.mxu0 %v785
      %v1073 = vpop.f32.mrf.mxu0
      %v1074 = vadd.f32 %v311, %v1073
      %v1075 = vpop.f32.mrf.mxu0
      %v1076 = vadd.f32 %v311, %v1075
      %1077 = vmatmul.bf16.gmra.mxu0 %v788
      %v1078 = vpop.f32.mrf.mxu0
      %v1079 = vadd.f32 %v311, %v1078
      %v1080 = vpop.f32.mrf.mxu0
      %v1081 = vadd.f32 %v311, %v1080
      %1082 = vmatmul.bf16.gmra.mxu0 %v791
      %v1083 = vpop.f32.mrf.mxu0
      %v1084 = vadd.f32 %v311, %v1083
      %v1085 = vpop.f32.mrf.mxu0
      %v1086 = vadd.f32 %v311, %v1085
      %1087 = vmatmul.bf16.gmra.mxu0 %v794
      %v1088 = vpop.f32.mrf.mxu0
      %v1089 = vadd.f32 %v311, %v1088
      %v1090 = vpop.f32.mrf.mxu0
      %v1091 = vadd.f32 %v311, %v1090
      %1092 = vmatmul.bf16.gmra.mxu0 %v797
      %v1093 = vpop.f32.mrf.mxu0
      %v1094 = vadd.f32 %v311, %v1093
      %v1095 = vpop.f32.mrf.mxu0
      %v1096 = vadd.f32 %v311, %v1095
      %1097 = vmatmul.bf16.gmra.mxu0 %v800
      %v1098 = vpop.f32.mrf.mxu0
      %v1099 = vadd.f32 %v311, %v1098
      %v1100 = vpop.f32.mrf.mxu0
      %v1101 = vadd.f32 %v311, %v1100
      %1102 = vmatmul.bf16.gmra.mxu0 %v803
      %v1103 = vpop.f32.mrf.mxu0
      %v1104 = vadd.f32 %v311, %v1103
      %v1105 = vpop.f32.mrf.mxu0
      %v1106 = vadd.f32 %v311, %v1105
      %1107 = vmatmul.bf16.gmra.mxu0 %v806
      %v1108 = vpop.f32.mrf.mxu0
      %v1109 = vadd.f32 %v311, %v1108
      %v1110 = vpop.f32.mrf.mxu0
      %v1111 = vadd.f32 %v311, %v1110
      %1112 = vmatmul.bf16.gmra.mxu0 %v809
      %v1113 = vpop.f32.mrf.mxu0
      %v1114 = vadd.f32 %v311, %v1113
      %v1115 = vpop.f32.mrf.mxu0
      %v1116 = vadd.f32 %v311, %v1115
      %1117 = vmatmul.bf16.gmra.mxu0 %v812
      %v1118 = vpop.f32.mrf.mxu0
      %v1119 = vadd.f32 %v311, %v1118
      %v1120 = vpop.f32.mrf.mxu0
      %v1121 = vadd.f32 %v311, %v1120
      %1122 = vmatmul.bf16.gmra.mxu0 %v815
      %v1123 = vpop.f32.mrf.mxu0
      %v1124 = vadd.f32 %v311, %v1123
      %v1125 = vpop.f32.mrf.mxu0
      %v1126 = vadd.f32 %v311, %v1125
      %1127 = vmatmul.bf16.gmra.mxu0 %v818
      %v1128 = vpop.f32.mrf.mxu0
      %v1129 = vadd.f32 %v311, %v1128
      %v1130 = vpop.f32.mrf.mxu0
      %v1131 = vadd.f32 %v311, %v1130
      %1132 = vmatmul.bf16.gmra.mxu0 %v821
      %v1133 = vpop.f32.mrf.mxu0
      %v1134 = vadd.f32 %v311, %v1133
      %v1135 = vpop.f32.mrf.mxu0
      %v1136 = vadd.f32 %v311, %v1135
      %1137 = vmatmul.bf16.gmra.mxu0 %v824
      %v1138 = vpop.f32.mrf.mxu0
      %v1139 = vadd.f32 %v311, %v1138
      %v1140 = vpop.f32.mrf.mxu0
      %v1141 = vadd.f32 %v311, %v1140
      %1142 = vmatmul.bf16.gmra.mxu0 %v827
      %v1143 = vpop.f32.mrf.mxu0
      %v1144 = vadd.f32 %v311, %v1143
      %v1145 = vpop.f32.mrf.mxu0
      %v1146 = vadd.f32 %v311, %v1145
      %1147 = vmatmul.bf16.gmra.mxu0 %v830
      %v1148 = vpop.f32.mrf.mxu0
      %v1149 = vadd.f32 %v311, %v1148
      %v1150 = vpop.f32.mrf.mxu0
      %v1151 = vadd.f32 %v311, %v1150
      %1152 = vmatmul.bf16.gmra.mxu0 %v833
      %v1153 = vpop.f32.mrf.mxu0
      %v1154 = vadd.f32 %v311, %v1153
      %v1155 = vpop.f32.mrf.mxu0
      %v1156 = vadd.f32 %v311, %v1155
      %1157 = vmatmul.bf16.gmra.mxu0 %v836
      %v1158 = vpop.f32.mrf.mxu0
      %v1159 = vadd.f32 %v311, %v1158
      %v1160 = vpop.f32.mrf.mxu0
      %v1161 = vadd.f32 %v311, %v1160
      %1162 = vmatmul.bf16.gmra.mxu0 %v839
      %v1163 = vpop.f32.mrf.mxu0
      %v1164 = vadd.f32 %v311, %v1163
      %v1165 = vpop.f32.mrf.mxu0
      %v1166 = vadd.f32 %v311, %v1165
      %1167 = vmatmul.bf16.gmra.mxu0 %v842
      %v1168 = vpop.f32.mrf.mxu0
      %v1169 = vadd.f32 %v311, %v1168
      %v1170 = vpop.f32.mrf.mxu0
      %v1171 = vadd.f32 %v311, %v1170
      %1172 = vdwg.mxu0
      %v1173 = vmax.f32 %v854, 0.0
      %v1174 = vmax.f32 %v856, 0.0
      %v1175 = vmax.f32 %v859, 0.0
      %v1176 = vmax.f32 %v861, 0.0
      %v1177 = vmax.f32 %v864, 0.0
      %v1178 = vmax.f32 %v866, 0.0
      %v1179 = vmax.f32 %v869, 0.0
      %v1180 = vmax.f32 %v871, 0.0
      %v1181 = vmax.f32 %v874, 0.0
      %v1182 = vmax.f32 %v876, 0.0
      %v1183 = vmax.f32 %v879, 0.0
      %v1184 = vmax.f32 %v881, 0.0
      %v1185 = vmax.f32 %v884, 0.0
      %v1186 = vmax.f32 %v886, 0.0
      %v1187 = vmax.f32 %v889, 0.0
      %v1188 = vmax.f32 %v891, 0.0
      %v1189 = vmax.f32 %v894, 0.0
      %v1190 = vmax.f32 %v896, 0.0
      %v1191 = vmax.f32 %v899, 0.0
      %v1192 = vmax.f32 %v901, 0.0
      %v1193 = vmax.f32 %v904, 0.0
      %v1194 = vmax.f32 %v906, 0.0
      %v1195 = vmax.f32 %v909, 0.0
      %v1196 = vmax.f32 %v911, 0.0
      %v1197 = vmax.f32 %v914, 0.0
      %v1198 = vmax.f32 %v916, 0.0
      %v1199 = vmax.f32 %v919, 0.0
      %v1200 = vmax.f32 %v921, 0.0
      %v1201 = vmax.f32 %v924, 0.0
      %v1202 = vmax.f32 %v926, 0.0
      %v1203 = vmax.f32 %v929, 0.0
      %v1204 = vmax.f32 %v931, 0.0
      %v1205 = vmax.f32 %v934, 0.0
      %v1206 = vmax.f32 %v936, 0.0
      %v1207 = vmax.f32 %v939, 0.0
      %v1208 = vmax.f32 %v941, 0.0
      %v1209 = vmax.f32 %v944, 0.0
      %v1210 = vmax.f32 %v946, 0.0
      %v1211 = vmax.f32 %v949, 0.0
      %v1212 = vmax.f32 %v951, 0.0
      %v1213 = vmax.f32 %v954, 0.0
      %v1214 = vmax.f32 %v956, 0.0
      %v1215 = vmax.f32 %v959, 0.0
      %v1216 = vmax.f32 %v961, 0.0
      %v1217 = vmax.f32 %v964, 0.0
      %v1218 = vmax.f32 %v966, 0.0
      %v1219 = vmax.f32 %v969, 0.0
      %v1220 = vmax.f32 %v971, 0.0
      %v1221 = vmax.f32 %v974, 0.0
      %v1222 = vmax.f32 %v976, 0.0
      %v1223 = vmax.f32 %v979, 0.0
      %v1224 = vmax.f32 %v981, 0.0
      %v1225 = vmax.f32 %v984, 0.0
      %v1226 = vmax.f32 %v986, 0.0
      %v1227 = vmax.f32 %v989, 0.0
      %v1228 = vmax.f32 %v991, 0.0
      %v1229 = vmax.f32 %v994, 0.0
      %v1230 = vmax.f32 %v996, 0.0
      %v1231 = vmax.f32 %v999, 0.0
      %v1232 = vmax.f32 %v1001, 0.0
      %v1233 = vmax.f32 %v1004, 0.0
      %v1234 = vmax.f32 %v1006, 0.0
      %v1235 = vmax.f32 %v1009, 0.0
      %v1236 = vmax.f32 %v1011, 0.0
      %v1237 = vmax.f32 %v1014, 0.0
      %v1238 = vmax.f32 %v1016, 0.0
      %v1239 = vmax.f32 %v1019, 0.0
      %v1240 = vmax.f32 %v1021, 0.0
      %v1241 = vmax.f32 %v1024, 0.0
      %v1242 = vmax.f32 %v1026, 0.0
      %v1243 = vmax.f32 %v1029, 0.0
      %v1244 = vmax.f32 %v1031, 0.0
      %v1245 = vmax.f32 %v1034, 0.0
      %v1246 = vmax.f32 %v1036, 0.0
      %v1247 = vmax.f32 %v1039, 0.0
      %v1248 = vmax.f32 %v1041, 0.0
      %v1249 = vmax.f32 %v1044, 0.0
      %v1250 = vmax.f32 %v1046, 0.0
      %v1251 = vmax.f32 %v1049, 0.0
      %v1252 = vmax.f32 %v1051, 0.0
      %v1253 = vmax.f32 %v1054, 0.0
      %v1254 = vmax.f32 %v1056, 0.0
      %v1255 = vmax.f32 %v1059, 0.0
      %v1256 = vmax.f32 %v1061, 0.0
      %v1257 = vmax.f32 %v1064, 0.0
      %v1258 = vmax.f32 %v1066, 0.0
      %v1259 = vmax.f32 %v1069, 0.0
      %v1260 = vmax.f32 %v1071, 0.0
      %v1261 = vmax.f32 %v1074, 0.0
      %v1262 = vmax.f32 %v1076, 0.0
      %v1263 = vmax.f32 %v1079, 0.0
      %v1264 = vmax.f32 %v1081, 0.0
      %v1265 = vmax.f32 %v1084, 0.0
      %v1266 = vmax.f32 %v1086, 0.0
      %v1267 = vmax.f32 %v1089, 0.0
      %v1268 = vmax.f32 %v1091, 0.0
      %v1269 = vmax.f32 %v1094, 0.0
      %v1270 = vmax.f32 %v1096, 0.0
      %v1271 = vmax.f32 %v1099, 0.0
      %v1272 = vmax.f32 %v1101, 0.0
      %v1273 = vmax.f32 %v1104, 0.0
      %v1274 = vmax.f32 %v1106, 0.0
      %v1275 = vmax.f32 %v1109, 0.0
      %v1276 = vmax.f32 %v1111, 0.0
      %v1277 = vmax.f32 %v1114, 0.0
      %v1278 = vmax.f32 %v1116, 0.0
      %v1279 = vmax.f32 %v1119, 0.0
      %v1280 = vmax.f32 %v1121, 0.0
      %v1281 = vmax.f32 %v1124, 0.0
      %v1282 = vmax.f32 %v1126, 0.0
      %v1283 = vmax.f32 %v1129, 0.0
      %v1284 = vmax.f32 %v1131, 0.0
      %v1285 = vmax.f32 %v1134, 0.0
      %v1286 = vmax.f32 %v1136, 0.0
      %v1287 = vmax.f32 %v1139, 0.0
      %v1288 = vmax.f32 %v1141, 0.0
      %v1289 = vmax.f32 %v1144, 0.0
      %v1290 = vmax.f32 %v1146, 0.0
      %v1291 = vmax.f32 %v1149, 0.0
      %v1292 = vmax.f32 %v1151, 0.0
      %v1293 = vmax.f32 %v1154, 0.0
      %v1294 = vmax.f32 %v1156, 0.0
      %v1295 = vmax.f32 %v1159, 0.0
      %v1296 = vmax.f32 %v1161, 0.0
      %v1297 = vmax.f32 %v1164, 0.0
      %v1298 = vmax.f32 %v1166, 0.0
      %v1299 = vmax.f32 %v1169, 0.0
      %v1300 = vmax.f32 %v1171, 0.0
      %vm1301 = vcmask 261120
      %1302 = vst.msk [vmem:[%s172] sm:$0xff] %vm1301, %v1173
      %1303 = vst.msk [vmem:[%s172 + $0x8] sm:$0xff] %vm1301, %v1174
      %1304 = vst.msk [vmem:[%s172 + $0x10] sm:$0xff] %vm1301, %v1175
      %1305 = vst.msk [vmem:[%s172 + $0x18] sm:$0xff] %vm1301, %v1176
      %1306 = vst.msk [vmem:[%s172 + $0x20] sm:$0xff] %vm1301, %v1177
      %1307 = vst.msk [vmem:[%s172 + $0x28] sm:$0xff] %vm1301, %v1178
      %1308 = vst.msk [vmem:[%s172 + $0x30] sm:$0xff] %vm1301, %v1179
      %1309 = vst.msk [vmem:[%s172 + $0x38] sm:$0xff] %vm1301, %v1180
      %1310 = vst.msk [vmem:[%s172 + $0x40] sm:$0xff] %vm1301, %v1181
      %1311 = vst.msk [vmem:[%s172 + $0x48] sm:$0xff] %vm1301, %v1182
      %1312 = vst.msk [vmem:[%s172 + $0x50] sm:$0xff] %vm1301, %v1183
      %1313 = vst.msk [vmem:[%s172 + $0x58] sm:$0xff] %vm1301, %v1184
      %1314 = vst.msk [vmem:[%s172 + $0x60] sm:$0xff] %vm1301, %v1185
      %1315 = vst.msk [vmem:[%s172 + $0x68] sm:$0xff] %vm1301, %v1186
      %1316 = vst.msk [vmem:[%s172 + $0x70] sm:$0xff] %vm1301, %v1187
      %1317 = vst.msk [vmem:[%s172 + $0x78] sm:$0xff] %vm1301, %v1188
      %1318 = vst.msk [vmem:[%s172 + $0x80] sm:$0xff] %vm1301, %v1189
      %1319 = vst.msk [vmem:[%s172 + $0x88] sm:$0xff] %vm1301, %v1190
      %1320 = vst.msk [vmem:[%s172 + $0x90] sm:$0xff] %vm1301, %v1191
      %1321 = vst.msk [vmem:[%s172 + $0x98] sm:$0xff] %vm1301, %v1192
      %1322 = vst.msk [vmem:[%s172 + $0xa0] sm:$0xff] %vm1301, %v1193
      %1323 = vst.msk [vmem:[%s172 + $0xa8] sm:$0xff] %vm1301, %v1194
      %1324 = vst.msk [vmem:[%s172 + $0xb0] sm:$0xff] %vm1301, %v1195
      %1325 = vst.msk [vmem:[%s172 + $0xb8] sm:$0xff] %vm1301, %v1196
      %1326 = vst.msk [vmem:[%s172 + $0xc0] sm:$0xff] %vm1301, %v1197
      %1327 = vst.msk [vmem:[%s172 + $0xc8] sm:$0xff] %vm1301, %v1198
      %1328 = vst.msk [vmem:[%s172 + $0xd0] sm:$0xff] %vm1301, %v1199
      %1329 = vst.msk [vmem:[%s172 + $0xd8] sm:$0xff] %vm1301, %v1200
      %1330 = vst.msk [vmem:[%s172 + $0xe0] sm:$0xff] %vm1301, %v1201
      %1331 = vst.msk [vmem:[%s172 + $0xe8] sm:$0xff] %vm1301, %v1202
      %1332 = vst.msk [vmem:[%s172 + $0xf0] sm:$0xff] %vm1301, %v1203
      %1333 = vst.msk [vmem:[%s172 + $0xf8] sm:$0xff] %vm1301, %v1204
      %1334 = vst.msk [vmem:[%s172 + $0x100] sm:$0xff] %vm1301, %v1205
      %1335 = vst.msk [vmem:[%s172 + $0x108] sm:$0xff] %vm1301, %v1206
      %1336 = vst.msk [vmem:[%s172 + $0x110] sm:$0xff] %vm1301, %v1207
      %1337 = vst.msk [vmem:[%s172 + $0x118] sm:$0xff] %vm1301, %v1208
      %1338 = vst.msk [vmem:[%s172 + $0x120] sm:$0xff] %vm1301, %v1209
      %1339 = vst.msk [vmem:[%s172 + $0x128] sm:$0xff] %vm1301, %v1210
      %1340 = vst.msk [vmem:[%s172 + $0x130] sm:$0xff] %vm1301, %v1211
      %1341 = vst.msk [vmem:[%s172 + $0x138] sm:$0xff] %vm1301, %v1212
      %1342 = vst.msk [vmem:[%s172 + $0x140] sm:$0xff] %vm1301, %v1213
      %1343 = vst.msk [vmem:[%s172 + $0x148] sm:$0xff] %vm1301, %v1214
      %1344 = vst.msk [vmem:[%s172 + $0x150] sm:$0xff] %vm1301, %v1215
      %1345 = vst.msk [vmem:[%s172 + $0x158] sm:$0xff] %vm1301, %v1216
      %1346 = vst.msk [vmem:[%s172 + $0x160] sm:$0xff] %vm1301, %v1217
      %1347 = vst.msk [vmem:[%s172 + $0x168] sm:$0xff] %vm1301, %v1218
      %1348 = vst.msk [vmem:[%s172 + $0x170] sm:$0xff] %vm1301, %v1219
      %1349 = vst.msk [vmem:[%s172 + $0x178] sm:$0xff] %vm1301, %v1220
      %1350 = vst.msk [vmem:[%s172 + $0x180] sm:$0xff] %vm1301, %v1221
      %1351 = vst.msk [vmem:[%s172 + $0x188] sm:$0xff] %vm1301, %v1222
      %1352 = vst.msk [vmem:[%s172 + $0x190] sm:$0xff] %vm1301, %v1223
      %1353 = vst.msk [vmem:[%s172 + $0x198] sm:$0xff] %vm1301, %v1224
      %1354 = vst.msk [vmem:[%s172 + $0x1a0] sm:$0xff] %vm1301, %v1225
      %1355 = vst.msk [vmem:[%s172 + $0x1a8] sm:$0xff] %vm1301, %v1226
      %1356 = vst.msk [vmem:[%s172 + $0x1b0] sm:$0xff] %vm1301, %v1227
      %1357 = vst.msk [vmem:[%s172 + $0x1b8] sm:$0xff] %vm1301, %v1228
      %1358 = vst.msk [vmem:[%s172 + $0x1c0] sm:$0xff] %vm1301, %v1229
      %1359 = vst.msk [vmem:[%s172 + $0x1c8] sm:$0xff] %vm1301, %v1230
      %1360 = vst.msk [vmem:[%s172 + $0x1d0] sm:$0xff] %vm1301, %v1231
      %1361 = vst.msk [vmem:[%s172 + $0x1d8] sm:$0xff] %vm1301, %v1232
      %1362 = vst.msk [vmem:[%s172 + $0x1e0] sm:$0xff] %vm1301, %v1233
      %1363 = vst.msk [vmem:[%s172 + $0x1e8] sm:$0xff] %vm1301, %v1234
      %1364 = vst.msk [vmem:[%s172 + $0x1f0] sm:$0xff] %vm1301, %v1235
      %1365 = vst.msk [vmem:[%s172 + $0x1f8] sm:$0xff] %vm1301, %v1236
      %1366 = vst.msk [vmem:[%s172 + $0x200] sm:$0xff] %vm1301, %v1237
      %1367 = vst.msk [vmem:[%s172 + $0x208] sm:$0xff] %vm1301, %v1238
      %1368 = vst.msk [vmem:[%s172 + $0x210] sm:$0xff] %vm1301, %v1239
      %1369 = vst.msk [vmem:[%s172 + $0x218] sm:$0xff] %vm1301, %v1240
      %1370 = vst.msk [vmem:[%s172 + $0x220] sm:$0xff] %vm1301, %v1241
      %1371 = vst.msk [vmem:[%s172 + $0x228] sm:$0xff] %vm1301, %v1242
      %1372 = vst.msk [vmem:[%s172 + $0x230] sm:$0xff] %vm1301, %v1243
      %1373 = vst.msk [vmem:[%s172 + $0x238] sm:$0xff] %vm1301, %v1244
      %1374 = vst.msk [vmem:[%s172 + $0x240] sm:$0xff] %vm1301, %v1245
      %1375 = vst.msk [vmem:[%s172 + $0x248] sm:$0xff] %vm1301, %v1246
      %1376 = vst.msk [vmem:[%s172 + $0x250] sm:$0xff] %vm1301, %v1247
      %1377 = vst.msk [vmem:[%s172 + $0x258] sm:$0xff] %vm1301, %v1248
      %1378 = vst.msk [vmem:[%s172 + $0x260] sm:$0xff] %vm1301, %v1249
      %1379 = vst.msk [vmem:[%s172 + $0x268] sm:$0xff] %vm1301, %v1250
      %1380 = vst.msk [vmem:[%s172 + $0x270] sm:$0xff] %vm1301, %v1251
      %1381 = vst.msk [vmem:[%s172 + $0x278] sm:$0xff] %vm1301, %v1252
      %1382 = vst.msk [vmem:[%s172 + $0x280] sm:$0xff] %vm1301, %v1253
      %1383 = vst.msk [vmem:[%s172 + $0x288] sm:$0xff] %vm1301, %v1254
      %1384 = vst.msk [vmem:[%s172 + $0x290] sm:$0xff] %vm1301, %v1255
      %1385 = vst.msk [vmem:[%s172 + $0x298] sm:$0xff] %vm1301, %v1256
      %1386 = vst.msk [vmem:[%s172 + $0x2a0] sm:$0xff] %vm1301, %v1257
      %1387 = vst.msk [vmem:[%s172 + $0x2a8] sm:$0xff] %vm1301, %v1258
      %1388 = vst.msk [vmem:[%s172 + $0x2b0] sm:$0xff] %vm1301, %v1259
      %1389 = vst.msk [vmem:[%s172 + $0x2b8] sm:$0xff] %vm1301, %v1260
      %1390 = vst.msk [vmem:[%s172 + $0x2c0] sm:$0xff] %vm1301, %v1261
      %1391 = vst.msk [vmem:[%s172 + $0x2c8] sm:$0xff] %vm1301, %v1262
      %1392 = vst.msk [vmem:[%s172 + $0x2d0] sm:$0xff] %vm1301, %v1263
      %1393 = vst.msk [vmem:[%s172 + $0x2d8] sm:$0xff] %vm1301, %v1264
      %1394 = vst.msk [vmem:[%s172 + $0x2e0] sm:$0xff] %vm1301, %v1265
      %1395 = vst.msk [vmem:[%s172 + $0x2e8] sm:$0xff] %vm1301, %v1266
      %1396 = vst.msk [vmem:[%s172 + $0x2f0] sm:$0xff] %vm1301, %v1267
      %1397 = vst.msk [vmem:[%s172 + $0x2f8] sm:$0xff] %vm1301, %v1268
      %1398 = vst.msk [vmem:[%s172 + $0x300] sm:$0xff] %vm1301, %v1269
      %1399 = vst.msk [vmem:[%s172 + $0x308] sm:$0xff] %vm1301, %v1270
      %1400 = vst.msk [vmem:[%s172 + $0x310] sm:$0xff] %vm1301, %v1271
      %1401 = vst.msk [vmem:[%s172 + $0x318] sm:$0xff] %vm1301, %v1272
      %1402 = vst.msk [vmem:[%s172 + $0x320] sm:$0xff] %vm1301, %v1273
      %1403 = vst.msk [vmem:[%s172 + $0x328] sm:$0xff] %vm1301, %v1274
      %1404 = vst.msk [vmem:[%s172 + $0x330] sm:$0xff] %vm1301, %v1275
      %1405 = vst.msk [vmem:[%s172 + $0x338] sm:$0xff] %vm1301, %v1276
      %1406 = vst.msk [vmem:[%s172 + $0x340] sm:$0xff] %vm1301, %v1277
      %1407 = vst.msk [vmem:[%s172 + $0x348] sm:$0xff] %vm1301, %v1278
      %1408 = vst.msk [vmem:[%s172 + $0x350] sm:$0xff] %vm1301, %v1279
      %1409 = vst.msk [vmem:[%s172 + $0x358] sm:$0xff] %vm1301, %v1280
      %1410 = vst.msk [vmem:[%s172 + $0x360] sm:$0xff] %vm1301, %v1281
      %1411 = vst.msk [vmem:[%s172 + $0x368] sm:$0xff] %vm1301, %v1282
      %1412 = vst.msk [vmem:[%s172 + $0x370] sm:$0xff] %vm1301, %v1283
      %1413 = vst.msk [vmem:[%s172 + $0x378] sm:$0xff] %vm1301, %v1284
      %1414 = vst.msk [vmem:[%s172 + $0x380] sm:$0xff] %vm1301, %v1285
      %1415 = vst.msk [vmem:[%s172 + $0x388] sm:$0xff] %vm1301, %v1286
      %1416 = vst.msk [vmem:[%s172 + $0x390] sm:$0xff] %vm1301, %v1287
      %1417 = vst.msk [vmem:[%s172 + $0x398] sm:$0xff] %vm1301, %v1288
      %1418 = vst.msk [vmem:[%s172 + $0x3a0] sm:$0xff] %vm1301, %v1289
      %1419 = vst.msk [vmem:[%s172 + $0x3a8] sm:$0xff] %vm1301, %v1290
      %1420 = vst.msk [vmem:[%s172 + $0x3b0] sm:$0xff] %vm1301, %v1291
      %1421 = vst.msk [vmem:[%s172 + $0x3b8] sm:$0xff] %vm1301, %v1292
      %1422 = vst.msk [vmem:[%s172 + $0x3c0] sm:$0xff] %vm1301, %v1293
      %1423 = vst.msk [vmem:[%s172 + $0x3c8] sm:$0xff] %vm1301, %v1294
      %1424 = vst.msk [vmem:[%s172 + $0x3d0] sm:$0xff] %vm1301, %v1295
      %1425 = vst.msk [vmem:[%s172 + $0x3d8] sm:$0xff] %vm1301, %v1296
      %1426 = vst.msk [vmem:[%s172 + $0x3e0] sm:$0xff] %vm1301, %v1297
      %1427 = vst.msk [vmem:[%s172 + $0x3e8] sm:$0xff] %vm1301, %v1298
      %1428 = vst.msk [vmem:[%s172 + $0x3f0] sm:$0xff] %vm1301, %v1299
      %1429 = vst.msk [vmem:[%s172 + $0x3f8] sm:$0xff] %vm1301, %v1300
      %s1430 = smul.u32 128, %s14
      %p1431 = scmp.lt.s32.totalorder %s1430, 255
      %s1432 = scalar_select %p1431, %s1430, 255
      %s1433 = smul.addr %s1432, 8
      %s1434 = scalar_lea.vmem %s3, %s1433
      // Predicated region
      $region33: #{encoder.5} parent=31 // pred_check
        %p1435 = pneg %p100
      $region34: #{encoder.5} parent=31 // pred_check_branch
        %1437 = sbr.rel (%p1435) target = $region36
      $region35: #{encoder.5} parent=31 // pred_region
        %s1438 = smul.u32 128, %s14
      $region36: #{encoder.5} parent=31 // pred_fallthru
        _
    $region32: #{encoder.5} parent=5 // pred_fallthru
      _
    %p1439 = scmp.le.s32.totalorder 2, %s9
    // Predicated region
    $region37: #{encoder.5} parent=5 // pred_check
      %p1440 = pneg %p1439
    $region38: #{encoder.5} parent=5 // pred_check_branch
      %1442 = sbr.rel (%p1440) target = $region40
    $region39: #{encoder.5} parent=5 // pred_region
      %s1443 = ssub.s32 %s9, 2
      // Predicated region
      $region41: #{encoder.5} parent=39 // pred_check
        %p1444 = pneg %p106
      $region42: #{encoder.5} parent=39 // pred_check_branch
        %1446 = sbr.rel (%p1444) target = $region44
      $region43: #{encoder.5} parent=39 // pred_region
        %s1447 = smul.u32 128, %s15
        %p1448 = scmp.lt.s32.totalorder %s1447, 255
        %s1449 = scalar_select %p1448, %s1447, 255
        %s1450 = smul.addr %s1449, 8
        %s1451 = scalar_lea.vmem %s3, %s1450
      $region44: #{encoder.5} parent=39 // pred_fallthru
        _
    $region40: #{encoder.5} parent=5 // pred_fallthru
      _
  $region6: #{encoder.5} parent=0 // loop_footer
    %s13 = sadd.s32 1, %s9
  $region7: #{encoder.5} parent=0 // loop_footer_branch
    %8 = sbr.rel target = $region3
  $region8: #{encoder.5} parent=0 // loop_exit
    _

// kernel: encoder.6
$region0: #{encoder.6}
  #allocation0 [shape = 'u32[]', space=smem, size = 0x4, offset = 0x4, fixed_abs, tag = 'smem constant byte address 0x4 - core index']
  #allocation1 [shape = 'u32[72,128]{1,0:T(1,128)}', space=vmem, size = 0x9000, scoped, tag = 'internal scratch']
  %s0 = inlined_call_operand.vmem [shape: bf16[392,512], index: 0, kind: input, shape index: {}]
  %s1 = inlined_call_operand.vmem [shape: bf16[512,64], index: 1, kind: input, shape index: {}]
  %s2 = inlined_call_operand.vmem [shape: f32[1,64], index: 2, kind: input, shape index: {}]
  %s3 = inlined_call_operand.vmem [shape: f32[392,64], index: 3, kind: output, shape index: {}]
  %s4 = sld [smem:[#allocation0]]
  $region22: #{encoder.6} parent=0
    _
  %s6 = ssub.s32 1, %s4
  %s7 = scalar_select 0, %s6, %s4
  // Predicated region
  $region2: #{encoder.6} parent=0 // pred_check
    _
  $region3: #{encoder.6} parent=0 // pred_check_branch
    %9 = sbr.rel (0) target = $region5
  $region4: #{encoder.6} parent=0 // pred_region
    _
  $region5: #{encoder.6} parent=0 // pred_fallthru
    _
  // Predicated region
  $region6: #{encoder.6} parent=0 // pred_check
    _
  $region7: #{encoder.6} parent=0 // pred_check_branch
    %11 = sbr.rel (0) target = $region9
  $region8: #{encoder.6} parent=0 // pred_region
    _
  $region9: #{encoder.6} parent=0 // pred_fallthru
    _
  // Predicated region
  $region10: #{encoder.6} parent=0 // pred_check
    _
  $region11: #{encoder.6} parent=0 // pred_check_branch
    %13 = sbr.rel (0) target = $region13
  $region12: #{encoder.6} parent=0 // pred_region
    _
  $region13: #{encoder.6} parent=0 // pred_fallthru
    _
  %v14 = vld [vmem:[%s0] sm:$0xff]
  %v15 = vld [vmem:[%s0 + $0x8] sm:$0xff]
  %v16 = vld [vmem:[%s0 + $0x10] sm:$0xff]
  %v17 = vld [vmem:[%s0 + $0x18] sm:$0xff]
  %v18 = vld [vmem:[%s0 + $0x20] sm:$0xff]
  %v19 = vld [vmem:[%s0 + $0x28] sm:$0xff]
  %v20 = vld [vmem:[%s0 + $0x30] sm:$0xff]
  %v21 = vld [vmem:[%s0 + $0x38] sm:$0xff]
  %v22 = vld [vmem:[%s0 + $0x40] sm:$0xff]
  %v23 = vld [vmem:[%s0 + $0x48] sm:$0xff]
  %v24 = vld [vmem:[%s0 + $0x50] sm:$0xff]
  %v25 = vld [vmem:[%s0 + $0x58] sm:$0xff]
  %v26 = vld [vmem:[%s0 + $0x60] sm:$0xff]
  %v27 = vld [vmem:[%s0 + $0x68] sm:$0xff]
  %v28 = vld [vmem:[%s0 + $0x70] sm:$0xff]
  %v29 = vld [vmem:[%s0 + $0x78] sm:$0xff]
  %v30 = vld [vmem:[%s0 + $0x80] sm:$0xff]
  %v31 = vld [vmem:[%s0 + $0x88] sm:$0xff]
  %v32 = vld [vmem:[%s0 + $0x90] sm:$0xff]
  %v33 = vld [vmem:[%s0 + $0x98] sm:$0xff]
  %v34 = vld [vmem:[%s0 + $0xa0] sm:$0xff]
  %v35 = vld [vmem:[%s0 + $0xa8] sm:$0xff]
  %v36 = vld [vmem:[%s0 + $0xb0] sm:$0xff]
  %v37 = vld [vmem:[%s0 + $0xb8] sm:$0xff]
  %v38 = vld [vmem:[%s0 + $0xc0] sm:$0xff]
  %v39 = vld [vmem:[%s0 + $0xc8] sm:$0xff]
  %v40 = vld [vmem:[%s0 + $0xd0] sm:$0xff]
  %v41 = vld [vmem:[%s0 + $0xd8] sm:$0xff]
  %v42 = vld [vmem:[%s0 + $0xe0] sm:$0xff]
  %v43 = vld [vmem:[%s0 + $0xe8] sm:$0xff]
  %v44 = vld [vmem:[%s0 + $0xf0] sm:$0xff]
  %v45 = vld [vmem:[%s0 + $0xf8] sm:$0xff]
  %v46 = vld [vmem:[%s0 + $0x100] sm:$0xff]
  %v47 = vld [vmem:[%s0 + $0x108] sm:$0xff]
  %v48 = vld [vmem:[%s0 + $0x110] sm:$0xff]
  %v49 = vld [vmem:[%s0 + $0x118] sm:$0xff]
  %v50 = vld [vmem:[%s0 + $0x120] sm:$0xff]
  %v51 = vld [vmem:[%s0 + $0x128] sm:$0xff]
  %v52 = vld [vmem:[%s0 + $0x130] sm:$0xff]
  %v53 = vld [vmem:[%s0 + $0x138] sm:$0xff]
  %v54 = vld [vmem:[%s0 + $0x140] sm:$0xff]
  %v55 = vld [vmem:[%s0 + $0x148] sm:$0xff]
  %v56 = vld [vmem:[%s0 + $0x150] sm:$0xff]
  %v57 = vld [vmem:[%s0 + $0x158] sm:$0xff]
  %v58 = vld [vmem:[%s0 + $0x160] sm:$0xff]
  %v59 = vld [vmem:[%s0 + $0x168] sm:$0xff]
  %v60 = vld [vmem:[%s0 + $0x170] sm:$0xff]
  %v61 = vld [vmem:[%s0 + $0x178] sm:$0xff]
  %v62 = vld [vmem:[%s0 + $0x180] sm:$0xff]
  %v63 = vld [vmem:[%s0 + $0x188] sm:$0xff]
  %v64 = vld [vmem:[%s0 + $0x190] sm:$0xff]
  %v65 = vld [vmem:[%s0 + $0x198] sm:$0xff]
  %v66 = vld [vmem:[%s0 + $0x1a0] sm:$0xff]
  %v67 = vld [vmem:[%s0 + $0x1a8] sm:$0xff]
  %v68 = vld [vmem:[%s0 + $0x1b0] sm:$0xff]
  %v69 = vld [vmem:[%s0 + $0x1b8] sm:$0xff]
  %v70 = vld [vmem:[%s0 + $0x1c0] sm:$0xff]
  %v71 = vld [vmem:[%s0 + $0x1c8] sm:$0xff]
  %v72 = vld [vmem:[%s0 + $0x1d0] sm:$0xff]
  %v73 = vld [vmem:[%s0 + $0x1d8] sm:$0xff]
  %v74 = vld [vmem:[%s0 + $0x1e0] sm:$0xff]
  %v75 = vld [vmem:[%s0 + $0x1e8] sm:$0xff]
  %v76 = vld [vmem:[%s0 + $0x1f0] sm:$0xff]
  %v77 = vld [vmem:[%s0 + $0x1f8] sm:$0xff]
  %v78 = vld [vmem:[%s0 + $0x200] sm:$0xff]
  %v79 = vld [vmem:[%s0 + $0x208] sm:$0xff]
  %v80 = vld [vmem:[%s0 + $0x210] sm:$0xff]
  %v81 = vld [vmem:[%s0 + $0x218] sm:$0xff]
  %v82 = vld [vmem:[%s0 + $0x220] sm:$0xff]
  %v83 = vld [vmem:[%s0 + $0x228] sm:$0xff]
  %v84 = vld [vmem:[%s0 + $0x230] sm:$0xff]
  %v85 = vld [vmem:[%s0 + $0x238] sm:$0xff]
  %v86 = vld [vmem:[%s0 + $0x240] sm:$0xff]
  %v87 = vld [vmem:[%s0 + $0x248] sm:$0xff]
  %v88 = vld [vmem:[%s0 + $0x250] sm:$0xff]
  %v89 = vld [vmem:[%s0 + $0x258] sm:$0xff]
  %v90 = vld [vmem:[%s0 + $0x260] sm:$0xff]
  %v91 = vld [vmem:[%s0 + $0x268] sm:$0xff]
  %v92 = vld [vmem:[%s0 + $0x270] sm:$0xff]
  %v93 = vld [vmem:[%s0 + $0x278] sm:$0xff]
  %v94 = vld [vmem:[%s0 + $0x280] sm:$0xff]
  %v95 = vld [vmem:[%s0 + $0x288] sm:$0xff]
  %v96 = vld [vmem:[%s0 + $0x290] sm:$0xff]
  %v97 = vld [vmem:[%s0 + $0x298] sm:$0xff]
  %v98 = vld [vmem:[%s0 + $0x2a0] sm:$0xff]
  %v99 = vld [vmem:[%s0 + $0x2a8] sm:$0xff]
  %v100 = vld [vmem:[%s0 + $0x2b0] sm:$0xff]
  %v101 = vld [vmem:[%s0 + $0x2b8] sm:$0xff]
  %v102 = vld [vmem:[%s0 + $0x2c0] sm:$0xff]
  %v103 = vld [vmem:[%s0 + $0x2c8] sm:$0xff]
  %v104 = vld [vmem:[%s0 + $0x2d0] sm:$0xff]
  %v105 = vld [vmem:[%s0 + $0x2d8] sm:$0xff]
  %v106 = vld [vmem:[%s0 + $0x2e0] sm:$0xff]
  %v107 = vld [vmem:[%s0 + $0x2e8] sm:$0xff]
  %v108 = vld [vmem:[%s0 + $0x2f0] sm:$0xff]
  %v109 = vld [vmem:[%s0 + $0x2f8] sm:$0xff]
  %v110 = vld [vmem:[%s0 + $0x300] sm:$0xff]
  %v111 = vld [vmem:[%s0 + $0x308] sm:$0xff]
  %v112 = vld [vmem:[%s1] sm:$0xf]
  %v113 = vld [vmem:[%s1 + $0x4] sm:$0xf]
  %v114 = vld [vmem:[%s1 + $0x8] sm:$0xf]
  %v115 = vld [vmem:[%s1 + $0xc] sm:$0xf]
  %v116 = vld [vmem:[%s1 + $0x10] sm:$0xf]
  %v117 = vld [vmem:[%s1 + $0x14] sm:$0xf]
  %v118 = vld [vmem:[%s1 + $0x18] sm:$0xf]
  %v119 = vld [vmem:[%s1 + $0x1c] sm:$0xf]
  %v120 = vld [vmem:[%s1 + $0x20] sm:$0xf]
  %v121 = vld [vmem:[%s1 + $0x24] sm:$0xf]
  %v122 = vld [vmem:[%s1 + $0x28] sm:$0xf]
  %v123 = vld [vmem:[%s1 + $0x2c] sm:$0xf]
  %v124 = vld [vmem:[%s1 + $0x30] sm:$0xf]
  %v125 = vld [vmem:[%s1 + $0x34] sm:$0xf]
  %v126 = vld [vmem:[%s1 + $0x38] sm:$0xf]
  %v127 = vld [vmem:[%s1 + $0x3c] sm:$0xf]
  %v128 = vld [vmem:[%s1 + $0x40] sm:$0xf]
  %v129 = vld [vmem:[%s1 + $0x44] sm:$0xf]
  %v130 = vld [vmem:[%s1 + $0x48] sm:$0xf]
  %v131 = vld [vmem:[%s1 + $0x4c] sm:$0xf]
  %v132 = vld [vmem:[%s1 + $0x50] sm:$0xf]
  %v133 = vld [vmem:[%s1 + $0x54] sm:$0xf]
  %v134 = vld [vmem:[%s1 + $0x58] sm:$0xf]
  %v135 = vld [vmem:[%s1 + $0x5c] sm:$0xf]
  %v136 = vld [vmem:[%s1 + $0x60] sm:$0xf]
  %v137 = vld [vmem:[%s1 + $0x64] sm:$0xf]
  %v138 = vld [vmem:[%s1 + $0x68] sm:$0xf]
  %v139 = vld [vmem:[%s1 + $0x6c] sm:$0xf]
  %v140 = vld [vmem:[%s1 + $0x70] sm:$0xf]
  %v141 = vld [vmem:[%s1 + $0x74] sm:$0xf]
  %v142 = vld [vmem:[%s1 + $0x78] sm:$0xf]
  %v143 = vld [vmem:[%s1 + $0x7c] sm:$0xf]
  %v144 = vld [vmem:[%s1 + $0x80] sm:$0xf]
  %v145 = vld [vmem:[%s1 + $0x84] sm:$0xf]
  %v146 = vld [vmem:[%s1 + $0x88] sm:$0xf]
  %v147 = vld [vmem:[%s1 + $0x8c] sm:$0xf]
  %v148 = vld [vmem:[%s1 + $0x90] sm:$0xf]
  %v149 = vld [vmem:[%s1 + $0x94] sm:$0xf]
  %v150 = vld [vmem:[%s1 + $0x98] sm:$0xf]
  %v151 = vld [vmem:[%s1 + $0x9c] sm:$0xf]
  %v152 = vld [vmem:[%s1 + $0xa0] sm:$0xf]
  %v153 = vld [vmem:[%s1 + $0xa4] sm:$0xf]
  %v154 = vld [vmem:[%s1 + $0xa8] sm:$0xf]
  %v155 = vld [vmem:[%s1 + $0xac] sm:$0xf]
  %v156 = vld [vmem:[%s1 + $0xb0] sm:$0xf]
  %v157 = vld [vmem:[%s1 + $0xb4] sm:$0xf]
  %v158 = vld [vmem:[%s1 + $0xb8] sm:$0xf]
  %v159 = vld [vmem:[%s1 + $0xbc] sm:$0xf]
  %v160 = vld [vmem:[%s1 + $0xc0] sm:$0xf]
  %v161 = vld [vmem:[%s1 + $0xc4] sm:$0xf]
  %v162 = vld [vmem:[%s1 + $0xc8] sm:$0xf]
  %v163 = vld [vmem:[%s1 + $0xcc] sm:$0xf]
  %v164 = vld [vmem:[%s1 + $0xd0] sm:$0xf]
  %v165 = vld [vmem:[%s1 + $0xd4] sm:$0xf]
  %v166 = vld [vmem:[%s1 + $0xd8] sm:$0xf]
  %v167 = vld [vmem:[%s1 + $0xdc] sm:$0xf]
  %v168 = vld [vmem:[%s1 + $0xe0] sm:$0xf]
  %v169 = vld [vmem:[%s1 + $0xe4] sm:$0xf]
  %v170 = vld [vmem:[%s1 + $0xe8] sm:$0xf]
  %v171 = vld [vmem:[%s1 + $0xec] sm:$0xf]
  %v172 = vld [vmem:[%s1 + $0xf0] sm:$0xf]
  %v173 = vld [vmem:[%s1 + $0xf4] sm:$0xf]
  %v174 = vld [vmem:[%s1 + $0xf8] sm:$0xf]
  %v175 = vld [vmem:[%s1 + $0xfc] sm:$0xf]
  %v176 = vld [vmem:[%s2] sm:$0x1]
  %v178 = vperm.slane %v176, 0
  %v278 = vunpack.c.l.b16 %v14
  %v279 = vunpack.c.h.b16 %v14
  %v280 = vunpack.c.l.b16 %v15
  %v281 = vunpack.c.h.b16 %v15
  %v282 = vunpack.c.l.b16 %v16
  %v283 = vunpack.c.h.b16 %v16
  %v284 = vunpack.c.l.b16 %v17
  %v285 = vunpack.c.h.b16 %v17
  %v286 = vunpack.c.l.b16 %v18
  %v287 = vunpack.c.h.b16 %v18
  %v288 = vunpack.c.l.b16 %v19
  %v289 = vunpack.c.h.b16 %v19
  %v290 = vunpack.c.l.b16 %v20
  %v291 = vunpack.c.h.b16 %v20
  %v292 = vunpack.c.l.b16 %v21
  %v293 = vunpack.c.h.b16 %v21
  %v294 = vunpack.c.l.b16 %v22
  %v295 = vunpack.c.h.b16 %v22
  %v296 = vunpack.c.l.b16 %v23
  %v297 = vunpack.c.h.b16 %v23
  %v298 = vunpack.c.l.b16 %v24
  %v299 = vunpack.c.h.b16 %v24
  %v300 = vunpack.c.l.b16 %v25
  %v301 = vunpack.c.h.b16 %v25
  %v302 = vunpack.c.l.b16 %v26
  %v303 = vunpack.c.h.b16 %v26
  %v304 = vunpack.c.l.b16 %v27
  %v305 = vunpack.c.h.b16 %v27
  %v306 = vunpack.c.l.b16 %v28
  %v307 = vunpack.c.h.b16 %v28
  %v308 = vunpack.c.l.b16 %v29
  %v309 = vunpack.c.h.b16 %v29
  %v310 = vunpack.c.l.b16 %v30
  %v311 = vunpack.c.h.b16 %v30
  %v312 = vunpack.c.l.b16 %v31
  %v313 = vunpack.c.h.b16 %v31
  %v314 = vunpack.c.l.b16 %v32
  %v315 = vunpack.c.h.b16 %v32
  %v316 = vunpack.c.l.b16 %v33
  %v317 = vunpack.c.h.b16 %v33
  %v318 = vunpack.c.l.b16 %v34
  %v319 = vunpack.c.h.b16 %v34
  %v320 = vunpack.c.l.b16 %v35
  %v321 = vunpack.c.h.b16 %v35
  %v322 = vunpack.c.l.b16 %v36
  %v323 = vunpack.c.h.b16 %v36
  %v324 = vunpack.c.l.b16 %v37
  %v325 = vunpack.c.h.b16 %v37
  %v326 = vunpack.c.l.b16 %v38
  %v327 = vunpack.c.h.b16 %v38
  %v328 = vunpack.c.l.b16 %v39
  %v329 = vunpack.c.h.b16 %v39
  %v330 = vunpack.c.l.b16 %v40
  %v331 = vunpack.c.h.b16 %v40
  %v332 = vunpack.c.l.b16 %v41
  %v333 = vunpack.c.h.b16 %v41
  %v334 = vunpack.c.l.b16 %v42
  %v335 = vunpack.c.h.b16 %v42
  %v336 = vunpack.c.l.b16 %v43
  %v337 = vunpack.c.h.b16 %v43
  %v338 = vunpack.c.l.b16 %v44
  %v339 = vunpack.c.h.b16 %v44
  %v340 = vunpack.c.l.b16 %v45
  %v341 = vunpack.c.h.b16 %v45
  %v342 = vunpack.c.l.b16 %v46
  %v343 = vunpack.c.h.b16 %v46
  %v344 = vunpack.c.l.b16 %v47
  %v345 = vunpack.c.h.b16 %v47
  %v346 = vunpack.c.l.b16 %v48
  %v347 = vunpack.c.h.b16 %v48
  %v348 = vunpack.c.l.b16 %v49
  %v349 = vunpack.c.h.b16 %v49
  %v350 = vunpack.c.l.b16 %v50
  %v351 = vunpack.c.h.b16 %v50
  %v352 = vunpack.c.l.b16 %v51
  %v353 = vunpack.c.h.b16 %v51
  %v354 = vunpack.c.l.b16 %v52
  %v355 = vunpack.c.h.b16 %v52
  %v356 = vunpack.c.l.b16 %v53
  %v357 = vunpack.c.h.b16 %v53
  %v358 = vunpack.c.l.b16 %v54
  %v359 = vunpack.c.h.b16 %v54
  %v360 = vunpack.c.l.b16 %v55
  %v361 = vunpack.c.h.b16 %v55
  %v362 = vunpack.c.l.b16 %v56
  %v363 = vunpack.c.h.b16 %v56
  %v364 = vunpack.c.l.b16 %v57
  %v365 = vunpack.c.h.b16 %v57
  %v366 = vunpack.c.l.b16 %v58
  %v367 = vunpack.c.h.b16 %v58
  %v368 = vunpack.c.l.b16 %v59
  %v369 = vunpack.c.h.b16 %v59
  %v370 = vunpack.c.l.b16 %v60
  %v371 = vunpack.c.h.b16 %v60
  %v372 = vunpack.c.l.b16 %v61
  %v373 = vunpack.c.h.b16 %v61
  %v374 = vunpack.c.l.b16 %v62
  %v375 = vunpack.c.h.b16 %v62
  %v376 = vunpack.c.l.b16 %v63
  %v377 = vunpack.c.h.b16 %v63
  %v378 = vunpack.c.l.b16 %v64
  %v379 = vunpack.c.h.b16 %v64
  %v380 = vunpack.c.l.b16 %v65
  %v381 = vunpack.c.h.b16 %v65
  %v382 = vunpack.c.l.b16 %v66
  %v383 = vunpack.c.h.b16 %v66
  %v384 = vunpack.c.l.b16 %v67
  %v385 = vunpack.c.h.b16 %v67
  %v386 = vunpack.c.l.b16 %v68
  %v387 = vunpack.c.h.b16 %v68
  %v388 = vunpack.c.l.b16 %v69
  %v389 = vunpack.c.h.b16 %v69
  %v390 = vunpack.c.l.b16 %v70
  %v391 = vunpack.c.h.b16 %v70
  %v392 = vunpack.c.l.b16 %v71
  %v393 = vunpack.c.h.b16 %v71
  %v394 = vunpack.c.l.b16 %v72
  %v395 = vunpack.c.h.b16 %v72
  %v396 = vunpack.c.l.b16 %v73
  %v397 = vunpack.c.h.b16 %v73
  %v398 = vunpack.c.l.b16 %v74
  %v399 = vunpack.c.h.b16 %v74
  %v400 = vunpack.c.l.b16 %v75
  %v401 = vunpack.c.h.b16 %v75
  %v402 = vunpack.c.l.b16 %v76
  %v403 = vunpack.c.h.b16 %v76
  %v404 = vunpack.c.l.b16 %v77
  %v405 = vunpack.c.h.b16 %v77
  %v406 = vunpack.c.l.b16 %v78
  %v407 = vunpack.c.h.b16 %v78
  %v408 = vunpack.c.l.b16 %v79
  %v409 = vunpack.c.h.b16 %v79
  %v410 = vunpack.c.l.b16 %v80
  %v411 = vunpack.c.h.b16 %v80
  %v412 = vunpack.c.l.b16 %v81
  %v413 = vunpack.c.h.b16 %v81
  %v414 = vunpack.c.l.b16 %v82
  %v415 = vunpack.c.h.b16 %v82
  %v416 = vunpack.c.l.b16 %v83
  %v417 = vunpack.c.h.b16 %v83
  %v418 = vunpack.c.l.b16 %v84
  %v419 = vunpack.c.h.b16 %v84
  %v420 = vunpack.c.l.b16 %v85
  %v421 = vunpack.c.h.b16 %v85
  %v422 = vunpack.c.l.b16 %v86
  %v423 = vunpack.c.h.b16 %v86
  %v424 = vunpack.c.l.b16 %v87
  %v425 = vunpack.c.h.b16 %v87
  %v426 = vunpack.c.l.b16 %v88
  %v427 = vunpack.c.h.b16 %v88
  %v428 = vunpack.c.l.b16 %v89
  %v429 = vunpack.c.h.b16 %v89
  %v430 = vunpack.c.l.b16 %v90
  %v431 = vunpack.c.h.b16 %v90
  %v432 = vunpack.c.l.b16 %v91
  %v433 = vunpack.c.h.b16 %v91
  %v434 = vunpack.c.l.b16 %v92
  %v435 = vunpack.c.h.b16 %v92
  %v436 = vunpack.c.l.b16 %v93
  %v437 = vunpack.c.h.b16 %v93
  %v438 = vunpack.c.l.b16 %v94
  %v439 = vunpack.c.h.b16 %v94
  %v440 = vunpack.c.l.b16 %v95
  %v441 = vunpack.c.h.b16 %v95
  %v442 = vunpack.c.l.b16 %v96
  %v443 = vunpack.c.h.b16 %v96
  %v444 = vunpack.c.l.b16 %v97
  %v445 = vunpack.c.h.b16 %v97
  %v446 = vunpack.c.l.b16 %v98
  %v447 = vunpack.c.h.b16 %v98
  %v448 = vunpack.c.l.b16 %v99
  %v449 = vunpack.c.h.b16 %v99
  %v450 = vunpack.c.l.b16 %v100
  %v451 = vunpack.c.h.b16 %v100
  %v452 = vunpack.c.l.b16 %v101
  %v453 = vunpack.c.h.b16 %v101
  %v454 = vunpack.c.l.b16 %v102
  %v455 = vunpack.c.h.b16 %v102
  %v456 = vunpack.c.l.b16 %v103
  %v457 = vunpack.c.h.b16 %v103
  %v458 = vunpack.c.l.b16 %v104
  %v459 = vunpack.c.h.b16 %v104
  %v460 = vunpack.c.l.b16 %v105
  %v461 = vunpack.c.h.b16 %v105
  %v462 = vunpack.c.l.b16 %v106
  %v463 = vunpack.c.h.b16 %v106
  %v464 = vunpack.c.l.b16 %v107
  %v465 = vunpack.c.h.b16 %v107
  %v466 = vunpack.c.l.b16 %v108
  %v467 = vunpack.c.h.b16 %v108
  %v468 = vunpack.c.l.b16 %v109
  %v469 = vunpack.c.h.b16 %v109
  %v470 = vunpack.c.l.b16 %v110
  %v471 = vunpack.c.h.b16 %v110
  %v472 = vunpack.c.l.b16 %v111
  %v473 = vunpack.c.h.b16 %v111
  %v474 = vpack.c.b16 %v282, %v278
  %v475 = vpack.c.b16 %v283, %v279
  %v476 = vpack.c.b16 %v284, %v280
  %v477 = vpack.c.b16 %v285, %v281
  %v478 = vpack.c.b16 %v290, %v286
  %v479 = vpack.c.b16 %v291, %v287
  %v480 = vpack.c.b16 %v292, %v288
  %v481 = vpack.c.b16 %v293, %v289
  %v482 = vpack.c.b16 %v298, %v294
  %v483 = vpack.c.b16 %v299, %v295
  %v484 = vpack.c.b16 %v300, %v296
  %v485 = vpack.c.b16 %v301, %v297
  %v486 = vpack.c.b16 %v306, %v302
  %v487 = vpack.c.b16 %v307, %v303
  %v488 = vpack.c.b16 %v308, %v304
  %v489 = vpack.c.b16 %v309, %v305
  %v490 = vpack.c.b16 %v314, %v310
  %v491 = vpack.c.b16 %v315, %v311
  %v492 = vpack.c.b16 %v316, %v312
  %v493 = vpack.c.b16 %v317, %v313
  %v494 = vpack.c.b16 %v322, %v318
  %v495 = vpack.c.b16 %v323, %v319
  %v496 = vpack.c.b16 %v324, %v320
  %v497 = vpack.c.b16 %v325, %v321
  %v498 = vpack.c.b16 %v330, %v326
  %v499 = vpack.c.b16 %v331, %v327
  %v500 = vpack.c.b16 %v332, %v328
  %v501 = vpack.c.b16 %v333, %v329
  %v502 = vpack.c.b16 %v338, %v334
  %v503 = vpack.c.b16 %v339, %v335
  %v504 = vpack.c.b16 %v340, %v336
  %v505 = vpack.c.b16 %v341, %v337
  %v506 = vpack.c.b16 %v346, %v342
  %v507 = vpack.c.b16 %v347, %v343
  %v508 = vpack.c.b16 %v348, %v344
  %v509 = vpack.c.b16 %v349, %v345
  %v510 = vpack.c.b16 %v354, %v350
  %v511 = vpack.c.b16 %v355, %v351
  %v512 = vpack.c.b16 %v356, %v352
  %v513 = vpack.c.b16 %v357, %v353
  %v514 = vpack.c.b16 %v362, %v358
  %v515 = vpack.c.b16 %v363, %v359
  %v516 = vpack.c.b16 %v364, %v360
  %v517 = vpack.c.b16 %v365, %v361
  %v518 = vpack.c.b16 %v370, %v366
  %v519 = vpack.c.b16 %v371, %v367
  %v520 = vpack.c.b16 %v372, %v368
  %v521 = vpack.c.b16 %v373, %v369
  %v522 = vpack.c.b16 %v378, %v374
  %v523 = vpack.c.b16 %v379, %v375
  %v524 = vpack.c.b16 %v380, %v376
  %v525 = vpack.c.b16 %v381, %v377
  %v526 = vpack.c.b16 %v386, %v382
  %v527 = vpack.c.b16 %v387, %v383
  %v528 = vpack.c.b16 %v388, %v384
  %v529 = vpack.c.b16 %v389, %v385
  %v530 = vpack.c.b16 %v394, %v390
  %v531 = vpack.c.b16 %v395, %v391
  %v532 = vpack.c.b16 %v396, %v392
  %v533 = vpack.c.b16 %v397, %v393
  %v534 = vpack.c.b16 %v402, %v398
  %v535 = vpack.c.b16 %v403, %v399
  %v536 = vpack.c.b16 %v404, %v400
  %v537 = vpack.c.b16 %v405, %v401
  %v538 = vpack.c.b16 %v410, %v406
  %v539 = vpack.c.b16 %v411, %v407
  %v540 = vpack.c.b16 %v412, %v408
  %v541 = vpack.c.b16 %v413, %v409
  %v542 = vpack.c.b16 %v418, %v414
  %v543 = vpack.c.b16 %v419, %v415
  %v544 = vpack.c.b16 %v420, %v416
  %v545 = vpack.c.b16 %v421, %v417
  %v546 = vpack.c.b16 %v426, %v422
  %v547 = vpack.c.b16 %v427, %v423
  %v548 = vpack.c.b16 %v428, %v424
  %v549 = vpack.c.b16 %v429, %v425
  %v550 = vpack.c.b16 %v434, %v430
  %v551 = vpack.c.b16 %v435, %v431
  %v552 = vpack.c.b16 %v436, %v432
  %v553 = vpack.c.b16 %v437, %v433
  %v554 = vpack.c.b16 %v442, %v438
  %v555 = vpack.c.b16 %v443, %v439
  %v556 = vpack.c.b16 %v444, %v440
  %v557 = vpack.c.b16 %v445, %v441
  %v558 = vpack.c.b16 %v450, %v446
  %v559 = vpack.c.b16 %v451, %v447
  %v560 = vpack.c.b16 %v452, %v448
  %v561 = vpack.c.b16 %v453, %v449
  %v562 = vpack.c.b16 %v458, %v454
  %v563 = vpack.c.b16 %v459, %v455
  %v564 = vpack.c.b16 %v460, %v456
  %v565 = vpack.c.b16 %v461, %v457
  %v566 = vpack.c.b16 %v466, %v462
  %v567 = vpack.c.b16 %v467, %v463
  %v568 = vpack.c.b16 %v468, %v464
  %v569 = vpack.c.b16 %v469, %v465
  %v570 = vpack.c.b16 %v470, %v470
  %v571 = vpack.c.b16 %v471, %v471
  %v572 = vpack.c.b16 %v472, %v472
  %v573 = vpack.c.b16 %v473, %v473
  %v738 = vunpack.c.l.b16 %v112
  %v739 = vunpack.c.l.b16 %v113
  %v740 = vunpack.c.l.b16 %v114
  %v741 = vunpack.c.l.b16 %v115
  %v742 = vunpack.c.l.b16 %v116
  %v743 = vunpack.c.l.b16 %v117
  %v744 = vunpack.c.l.b16 %v118
  %v745 = vunpack.c.l.b16 %v119
  %v746 = vunpack.c.l.b16 %v120
  %v747 = vunpack.c.l.b16 %v121
  %v748 = vunpack.c.l.b16 %v122
  %v749 = vunpack.c.l.b16 %v123
  %v750 = vunpack.c.l.b16 %v124
  %v751 = vunpack.c.l.b16 %v125
  %v752 = vunpack.c.l.b16 %v126
  %v753 = vunpack.c.l.b16 %v127
  %v754 = vunpack.c.l.b16 %v128
  %v755 = vunpack.c.l.b16 %v129
  %v756 = vunpack.c.l.b16 %v130
  %v757 = vunpack.c.l.b16 %v131
  %v758 = vunpack.c.l.b16 %v132
  %v759 = vunpack.c.l.b16 %v133
  %v760 = vunpack.c.l.b16 %v134
  %v761 = vunpack.c.l.b16 %v135
  %v762 = vunpack.c.l.b16 %v136
  %v763 = vunpack.c.l.b16 %v137
  %v764 = vunpack.c.l.b16 %v138
  %v765 = vunpack.c.l.b16 %v139
  %v766 = vunpack.c.l.b16 %v140
  %v767 = vunpack.c.l.b16 %v141
  %v768 = vunpack.c.l.b16 %v142
  %v769 = vunpack.c.l.b16 %v143
  %v770 = vunpack.c.l.b16 %v144
  %v771 = vunpack.c.l.b16 %v145
  %v772 = vunpack.c.l.b16 %v146
  %v773 = vunpack.c.l.b16 %v147
  %v774 = vunpack.c.l.b16 %v148
  %v775 = vunpack.c.l.b16 %v149
  %v776 = vunpack.c.l.b16 %v150
  %v777 = vunpack.c.l.b16 %v151
  %v778 = vunpack.c.l.b16 %v152
  %v779 = vunpack.c.l.b16 %v153
  %v780 = vunpack.c.l.b16 %v154
  %v781 = vunpack.c.l.b16 %v155
  %v782 = vunpack.c.l.b16 %v156
  %v783 = vunpack.c.l.b16 %v157
  %v784 = vunpack.c.l.b16 %v158
  %v785 = vunpack.c.l.b16 %v159
  %v786 = vunpack.c.l.b16 %v160
  %v787 = vunpack.c.l.b16 %v161
  %v788 = vunpack.c.l.b16 %v162
  %v789 = vunpack.c.l.b16 %v163
  %v790 = vunpack.c.l.b16 %v164
  %v791 = vunpack.c.l.b16 %v165
  %v792 = vunpack.c.l.b16 %v166
  %v793 = vunpack.c.l.b16 %v167
  %v794 = vunpack.c.l.b16 %v168
  %v795 = vunpack.c.l.b16 %v169
  %v796 = vunpack.c.l.b16 %v170
  %v797 = vunpack.c.l.b16 %v171
  %v798 = vunpack.c.l.b16 %v172
  %v799 = vunpack.c.l.b16 %v173
  %v800 = vunpack.c.l.b16 %v174
  %v801 = vunpack.c.l.b16 %v175
  %v802 = vpack.c.b16 %v739, %v738
  %v803 = vpack.c.b16 %v741, %v740
  %v804 = vpack.c.b16 %v743, %v742
  %v805 = vpack.c.b16 %v745, %v744
  %v806 = vpack.c.b16 %v747, %v746
  %v807 = vpack.c.b16 %v749, %v748
  %v808 = vpack.c.b16 %v751, %v750
  %v809 = vpack.c.b16 %v753, %v752
  %v810 = vpack.c.b16 %v755, %v754
  %v811 = vpack.c.b16 %v757, %v756
  %v812 = vpack.c.b16 %v759, %v758
  %v813 = vpack.c.b16 %v761, %v760
  %v814 = vpack.c.b16 %v763, %v762
  %v815 = vpack.c.b16 %v765, %v764
  %v816 = vpack.c.b16 %v767, %v766
  %v817 = vpack.c.b16 %v769, %v768
  %v818 = vpack.c.b16 %v771, %v770
  %v819 = vpack.c.b16 %v773, %v772
  %v820 = vpack.c.b16 %v775, %v774
  %v821 = vpack.c.b16 %v777, %v776
  %v822 = vpack.c.b16 %v779, %v778
  %v823 = vpack.c.b16 %v781, %v780
  %v824 = vpack.c.b16 %v783, %v782
  %v825 = vpack.c.b16 %v785, %v784
  %v826 = vpack.c.b16 %v787, %v786
  %v827 = vpack.c.b16 %v789, %v788
  %v828 = vpack.c.b16 %v791, %v790
  %v829 = vpack.c.b16 %v793, %v792
  %v830 = vpack.c.b16 %v795, %v794
  %v831 = vpack.c.b16 %v797, %v796
  %v832 = vpack.c.b16 %v799, %v798
  %v833 = vpack.c.b16 %v801, %v800
  %866 = vmatpush.bf16.msra.mxu0 %v809
  %867 = vmatpush.bf16.msra.mxu0 %v808
  %868 = vmatpush.bf16.msra.mxu0 %v807
  %869 = vmatpush.bf16.msra.mxu0 %v806
  %870 = vmatpush.bf16.msra.mxu0 %v805
  %871 = vmatpush.bf16.msra.mxu0 %v804
  %872 = vmatpush.bf16.msra.mxu0 %v803
  %873 = vmatpush.bf16.msra.mxu0 %v802
  %874 = vmatmul.bf16.gmra.mxu0 %v474
  %v875 = vpop.f32.mrf.mxu0
  %v876 = vadd.f32 %v178, %v875
  %v877 = vpop.f32.mrf.mxu0
  %v878 = vadd.f32 %v178, %v877
  %879 = vmatmul.bf16.gmra.mxu0 %v478
  %v880 = vpop.f32.mrf.mxu0
  %v881 = vadd.f32 %v178, %v880
  %v882 = vpop.f32.mrf.mxu0
  %v883 = vadd.f32 %v178, %v882
  %884 = vmatmul.bf16.gmra.mxu0 %v482
  %v885 = vpop.f32.mrf.mxu0
  %v886 = vadd.f32 %v178, %v885
  %v887 = vpop.f32.mrf.mxu0
  %v888 = vadd.f32 %v178, %v887
  %889 = vmatmul.bf16.gmra.mxu0 %v486
  %v890 = vpop.f32.mrf.mxu0
  %v891 = vadd.f32 %v178, %v890
  %v892 = vpop.f32.mrf.mxu0
  %v893 = vadd.f32 %v178, %v892
  %894 = vmatmul.bf16.gmra.mxu0 %v490
  %v895 = vpop.f32.mrf.mxu0
  %v896 = vadd.f32 %v178, %v895
  %v897 = vpop.f32.mrf.mxu0
  %v898 = vadd.f32 %v178, %v897
  %899 = vmatmul.bf16.gmra.mxu0 %v494
  %v900 = vpop.f32.mrf.mxu0
  %v901 = vadd.f32 %v178, %v900
  %v902 = vpop.f32.mrf.mxu0
  %v903 = vadd.f32 %v178, %v902
  %904 = vmatmul.bf16.gmra.mxu0 %v498
  %v905 = vpop.f32.mrf.mxu0
  %v906 = vadd.f32 %v178, %v905
  %v907 = vpop.f32.mrf.mxu0
  %v908 = vadd.f32 %v178, %v907
  %909 = vmatmul.bf16.gmra.mxu0 %v502
  %v910 = vpop.f32.mrf.mxu0
  %v911 = vadd.f32 %v178, %v910
  %v912 = vpop.f32.mrf.mxu0
  %v913 = vadd.f32 %v178, %v912
  %914 = vmatmul.bf16.gmra.mxu0 %v506
  %v915 = vpop.f32.mrf.mxu0
  %v916 = vadd.f32 %v178, %v915
  %v917 = vpop.f32.mrf.mxu0
  %v918 = vadd.f32 %v178, %v917
  %919 = vmatmul.bf16.gmra.mxu0 %v510
  %v920 = vpop.f32.mrf.mxu0
  %v921 = vadd.f32 %v178, %v920
  %v922 = vpop.f32.mrf.mxu0
  %v923 = vadd.f32 %v178, %v922
  %924 = vmatmul.bf16.gmra.mxu0 %v514
  %v925 = vpop.f32.mrf.mxu0
  %v926 = vadd.f32 %v178, %v925
  %v927 = vpop.f32.mrf.mxu0
  %v928 = vadd.f32 %v178, %v927
  %929 = vmatmul.bf16.gmra.mxu0 %v518
  %v930 = vpop.f32.mrf.mxu0
  %v931 = vadd.f32 %v178, %v930
  %v932 = vpop.f32.mrf.mxu0
  %v933 = vadd.f32 %v178, %v932
  %934 = vmatmul.bf16.gmra.mxu0 %v522
  %v935 = vpop.f32.mrf.mxu0
  %v936 = vadd.f32 %v178, %v935
  %v937 = vpop.f32.mrf.mxu0
  %v938 = vadd.f32 %v178, %v937
  %939 = vmatmul.bf16.gmra.mxu0 %v526
  %v940 = vpop.f32.mrf.mxu0
  %v941 = vadd.f32 %v178, %v940
  %v942 = vpop.f32.mrf.mxu0
  %v943 = vadd.f32 %v178, %v942
  %944 = vmatmul.bf16.gmra.mxu0 %v530
  %v945 = vpop.f32.mrf.mxu0
  %v946 = vadd.f32 %v178, %v945
  %v947 = vpop.f32.mrf.mxu0
  %v948 = vadd.f32 %v178, %v947
  %949 = vmatmul.bf16.gmra.mxu0 %v534
  %v950 = vpop.f32.mrf.mxu0
  %v951 = vadd.f32 %v178, %v950
  %v952 = vpop.f32.mrf.mxu0
  %v953 = vadd.f32 %v178, %v952
  %954 = vmatmul.bf16.gmra.mxu0 %v538
  %v955 = vpop.f32.mrf.mxu0
  %v956 = vadd.f32 %v178, %v955
  %v957 = vpop.f32.mrf.mxu0
  %v958 = vadd.f32 %v178, %v957
  %959 = vmatmul.bf16.gmra.mxu0 %v542
  %v960 = vpop.f32.mrf.mxu0
  %v961 = vadd.f32 %v178, %v960
  %v962 = vpop.f32.mrf.mxu0
  %v963 = vadd.f32 %v178, %v962
  %964 = vmatmul.bf16.gmra.mxu0 %v546
  %v965 = vpop.f32.mrf.mxu0
  %v966 = vadd.f32 %v178, %v965
  %v967 = vpop.f32.mrf.mxu0
  %v968 = vadd.f32 %v178, %v967
  %969 = vmatmul.bf16.gmra.mxu0 %v550
  %v970 = vpop.f32.mrf.mxu0
  %v971 = vadd.f32 %v178, %v970
  %v972 = vpop.f32.mrf.mxu0
  %v973 = vadd.f32 %v178, %v972
  %974 = vmatmul.bf16.gmra.mxu0 %v554
  %v975 = vpop.f32.mrf.mxu0
  %v976 = vadd.f32 %v178, %v975
  %v977 = vpop.f32.mrf.mxu0
  %v978 = vadd.f32 %v178, %v977
  %979 = vmatmul.bf16.gmra.mxu0 %v558
  %v980 = vpop.f32.mrf.mxu0
  %v981 = vadd.f32 %v178, %v980
  %v982 = vpop.f32.mrf.mxu0
  %v983 = vadd.f32 %v178, %v982
  %984 = vmatmul.bf16.gmra.mxu0 %v562
  %v985 = vpop.f32.mrf.mxu0
  %v986 = vadd.f32 %v178, %v985
  %v987 = vpop.f32.mrf.mxu0
  %v988 = vadd.f32 %v178, %v987
  %989 = vmatmul.bf16.gmra.mxu0 %v566
  %v990 = vpop.f32.mrf.mxu0
  %v991 = vadd.f32 %v178, %v990
  %v992 = vpop.f32.mrf.mxu0
  %v993 = vadd.f32 %v178, %v992
  %994 = vmatmul.bf16.gmra.mxu0 %v570
  %v995 = vpop.f32.mrf.mxu0
  %v996 = vadd.f32 %v178, %v995
  %v997 = vpop.f32.mrf.mxu0
  %998 = vdwg.mxu0
  %999 = vmatpush.bf16.msra.mxu0 %v817
  %1000 = vmatpush.bf16.msra.mxu0 %v816
  %1001 = vmatpush.bf16.msra.mxu0 %v815
  %1002 = vmatpush.bf16.msra.mxu0 %v814
  %1003 = vmatpush.bf16.msra.mxu0 %v813
  %1004 = vmatpush.bf16.msra.mxu0 %v812
  %1005 = vmatpush.bf16.msra.mxu0 %v811
  %1006 = vmatpush.bf16.msra.mxu0 %v810
  %1007 = vmatmul.bf16.gmra.mxu0 %v475
  %v1008 = vpop.f32.mrf.mxu0
  %v1009 = vadd.f32 %v876, %v1008
  %v1010 = vpop.f32.mrf.mxu0
  %v1011 = vadd.f32 %v878, %v1010
  %1012 = vmatmul.bf16.gmra.mxu0 %v479
  %v1013 = vpop.f32.mrf.mxu0
  %v1014 = vadd.f32 %v881, %v1013
  %v1015 = vpop.f32.mrf.mxu0
  %v1016 = vadd.f32 %v883, %v1015
  %1017 = vmatmul.bf16.gmra.mxu0 %v483
  %v1018 = vpop.f32.mrf.mxu0
  %v1019 = vadd.f32 %v886, %v1018
  %v1020 = vpop.f32.mrf.mxu0
  %v1021 = vadd.f32 %v888, %v1020
  %1022 = vmatmul.bf16.gmra.mxu0 %v487
  %v1023 = vpop.f32.mrf.mxu0
  %v1024 = vadd.f32 %v891, %v1023
  %v1025 = vpop.f32.mrf.mxu0
  %v1026 = vadd.f32 %v893, %v1025
  %1027 = vmatmul.bf16.gmra.mxu0 %v491
  %v1028 = vpop.f32.mrf.mxu0
  %v1029 = vadd.f32 %v896, %v1028
  %v1030 = vpop.f32.mrf.mxu0
  %v1031 = vadd.f32 %v898, %v1030
  %1032 = vmatmul.bf16.gmra.mxu0 %v495
  %v1033 = vpop.f32.mrf.mxu0
  %v1034 = vadd.f32 %v901, %v1033
  %v1035 = vpop.f32.mrf.mxu0
  %v1036 = vadd.f32 %v903, %v1035
  %1037 = vmatmul.bf16.gmra.mxu0 %v499
  %v1038 = vpop.f32.mrf.mxu0
  %v1039 = vadd.f32 %v906, %v1038
  %v1040 = vpop.f32.mrf.mxu0
  %v1041 = vadd.f32 %v908, %v1040
  %1042 = vmatmul.bf16.gmra.mxu0 %v503
  %v1043 = vpop.f32.mrf.mxu0
  %v1044 = vadd.f32 %v911, %v1043
  %v1045 = vpop.f32.mrf.mxu0
  %v1046 = vadd.f32 %v913, %v1045
  %1047 = vmatmul.bf16.gmra.mxu0 %v507
  %v1048 = vpop.f32.mrf.mxu0
  %v1049 = vadd.f32 %v916, %v1048
  %v1050 = vpop.f32.mrf.mxu0
  %v1051 = vadd.f32 %v918, %v1050
  %1052 = vmatmul.bf16.gmra.mxu0 %v511
  %v1053 = vpop.f32.mrf.mxu0
  %v1054 = vadd.f32 %v921, %v1053
  %v1055 = vpop.f32.mrf.mxu0
  %v1056 = vadd.f32 %v923, %v1055
  %1057 = vmatmul.bf16.gmra.mxu0 %v515
  %v1058 = vpop.f32.mrf.mxu0
  %v1059 = vadd.f32 %v926, %v1058
  %v1060 = vpop.f32.mrf.mxu0
  %v1061 = vadd.f32 %v928, %v1060
  %1062 = vmatmul.bf16.gmra.mxu0 %v519
  %v1063 = vpop.f32.mrf.mxu0
  %v1064 = vadd.f32 %v931, %v1063
  %v1065 = vpop.f32.mrf.mxu0
  %v1066 = vadd.f32 %v933, %v1065
  %1067 = vmatmul.bf16.gmra.mxu0 %v523
  %v1068 = vpop.f32.mrf.mxu0
  %v1069 = vadd.f32 %v936, %v1068
  %v1070 = vpop.f32.mrf.mxu0
  %v1071 = vadd.f32 %v938, %v1070
  %1072 = vmatmul.bf16.gmra.mxu0 %v527
  %v1073 = vpop.f32.mrf.mxu0
  %v1074 = vadd.f32 %v941, %v1073
  %v1075 = vpop.f32.mrf.mxu0
  %v1076 = vadd.f32 %v943, %v1075
  %1077 = vmatmul.bf16.gmra.mxu0 %v531
  %v1078 = vpop.f32.mrf.mxu0
  %v1079 = vadd.f32 %v946, %v1078
  %v1080 = vpop.f32.mrf.mxu0
  %v1081 = vadd.f32 %v948, %v1080
  %1082 = vmatmul.bf16.gmra.mxu0 %v535
  %v1083 = vpop.f32.mrf.mxu0
  %v1084 = vadd.f32 %v951, %v1083
  %v1085 = vpop.f32.mrf.mxu0
  %v1086 = vadd.f32 %v953, %v1085
  %1087 = vmatmul.bf16.gmra.mxu0 %v539
  %v1088 = vpop.f32.mrf.mxu0
  %v1089 = vadd.f32 %v956, %v1088
  %v1090 = vpop.f32.mrf.mxu0
  %v1091 = vadd.f32 %v958, %v1090
  %1092 = vmatmul.bf16.gmra.mxu0 %v543
  %v1093 = vpop.f32.mrf.mxu0
  %v1094 = vadd.f32 %v961, %v1093
  %v1095 = vpop.f32.mrf.mxu0
  %v1096 = vadd.f32 %v963, %v1095
  %1097 = vmatmul.bf16.gmra.mxu0 %v547
  %v1098 = vpop.f32.mrf.mxu0
  %v1099 = vadd.f32 %v966, %v1098
  %v1100 = vpop.f32.mrf.mxu0
  %v1101 = vadd.f32 %v968, %v1100
  %1102 = vmatmul.bf16.gmra.mxu0 %v551
  %v1103 = vpop.f32.mrf.mxu0
  %v1104 = vadd.f32 %v971, %v1103
  %v1105 = vpop.f32.mrf.mxu0
  %v1106 = vadd.f32 %v973, %v1105
  %1107 = vmatmul.bf16.gmra.mxu0 %v555
  %v1108 = vpop.f32.mrf.mxu0
  %v1109 = vadd.f32 %v976, %v1108
  %v1110 = vpop.f32.mrf.mxu0
  %v1111 = vadd.f32 %v978, %v1110
  %1112 = vmatmul.bf16.gmra.mxu0 %v559
  %v1113 = vpop.f32.mrf.mxu0
  %v1114 = vadd.f32 %v981, %v1113
  %v1115 = vpop.f32.mrf.mxu0
  %v1116 = vadd.f32 %v983, %v1115
  %1117 = vmatmul.bf16.gmra.mxu0 %v563
  %v1118 = vpop.f32.mrf.mxu0
  %v1119 = vadd.f32 %v986, %v1118
  %v1120 = vpop.f32.mrf.mxu0
  %v1121 = vadd.f32 %v988, %v1120
  %1122 = vmatmul.bf16.gmra.mxu0 %v567
  %v1123 = vpop.f32.mrf.mxu0
  %v1124 = vadd.f32 %v991, %v1123
  %v1125 = vpop.f32.mrf.mxu0
  %v1126 = vadd.f32 %v993, %v1125
  %1127 = vmatmul.bf16.gmra.mxu0 %v571
  %v1128 = vpop.f32.mrf.mxu0
  %v1129 = vadd.f32 %v996, %v1128
  %v1130 = vpop.f32.mrf.mxu0
  %1131 = vdwg.mxu0
  %1132 = vmatpush.bf16.msra.mxu0 %v825
  %1133 = vmatpush.bf16.msra.mxu0 %v824
  %1134 = vmatpush.bf16.msra.mxu0 %v823
  %1135 = vmatpush.bf16.msra.mxu0 %v822
  %1136 = vmatpush.bf16.msra.mxu0 %v821
  %1137 = vmatpush.bf16.msra.mxu0 %v820
  %1138 = vmatpush.bf16.msra.mxu0 %v819
  %1139 = vmatpush.bf16.msra.mxu0 %v818
  %1140 = vmatmul.bf16.gmra.mxu0 %v476
  %v1141 = vpop.f32.mrf.mxu0
  %v1142 = vadd.f32 %v1009, %v1141
  %v1143 = vpop.f32.mrf.mxu0
  %v1144 = vadd.f32 %v1011, %v1143
  %1145 = vmatmul.bf16.gmra.mxu0 %v480
  %v1146 = vpop.f32.mrf.mxu0
  %v1147 = vadd.f32 %v1014, %v1146
  %v1148 = vpop.f32.mrf.mxu0
  %v1149 = vadd.f32 %v1016, %v1148
  %1150 = vmatmul.bf16.gmra.mxu0 %v484
  %v1151 = vpop.f32.mrf.mxu0
  %v1152 = vadd.f32 %v1019, %v1151
  %v1153 = vpop.f32.mrf.mxu0
  %v1154 = vadd.f32 %v1021, %v1153
  %1155 = vmatmul.bf16.gmra.mxu0 %v488
  %v1156 = vpop.f32.mrf.mxu0
  %v1157 = vadd.f32 %v1024, %v1156
  %v1158 = vpop.f32.mrf.mxu0
  %v1159 = vadd.f32 %v1026, %v1158
  %1160 = vmatmul.bf16.gmra.mxu0 %v492
  %v1161 = vpop.f32.mrf.mxu0
  %v1162 = vadd.f32 %v1029, %v1161
  %v1163 = vpop.f32.mrf.mxu0
  %v1164 = vadd.f32 %v1031, %v1163
  %1165 = vmatmul.bf16.gmra.mxu0 %v496
  %v1166 = vpop.f32.mrf.mxu0
  %v1167 = vadd.f32 %v1034, %v1166
  %v1168 = vpop.f32.mrf.mxu0
  %v1169 = vadd.f32 %v1036, %v1168
  %1170 = vmatmul.bf16.gmra.mxu0 %v500
  %v1171 = vpop.f32.mrf.mxu0
  %v1172 = vadd.f32 %v1039, %v1171
  %v1173 = vpop.f32.mrf.mxu0
  %v1174 = vadd.f32 %v1041, %v1173
  %1175 = vmatmul.bf16.gmra.mxu0 %v504
  %v1176 = vpop.f32.mrf.mxu0
  %v1177 = vadd.f32 %v1044, %v1176
  %v1178 = vpop.f32.mrf.mxu0
  %v1179 = vadd.f32 %v1046, %v1178
  %1180 = vmatmul.bf16.gmra.mxu0 %v508
  %v1181 = vpop.f32.mrf.mxu0
  %v1182 = vadd.f32 %v1049, %v1181
  %v1183 = vpop.f32.mrf.mxu0
  %v1184 = vadd.f32 %v1051, %v1183
  %1185 = vmatmul.bf16.gmra.mxu0 %v512
  %v1186 = vpop.f32.mrf.mxu0
  %v1187 = vadd.f32 %v1054, %v1186
  %v1188 = vpop.f32.mrf.mxu0
  %v1189 = vadd.f32 %v1056, %v1188
  %1190 = vmatmul.bf16.gmra.mxu0 %v516
  %v1191 = vpop.f32.mrf.mxu0
  %v1192 = vadd.f32 %v1059, %v1191
  %v1193 = vpop.f32.mrf.mxu0
  %v1194 = vadd.f32 %v1061, %v1193
  %1195 = vmatmul.bf16.gmra.mxu0 %v520
  %v1196 = vpop.f32.mrf.mxu0
  %v1197 = vadd.f32 %v1064, %v1196
  %v1198 = vpop.f32.mrf.mxu0
  %v1199 = vadd.f32 %v1066, %v1198
  %1200 = vmatmul.bf16.gmra.mxu0 %v524
  %v1201 = vpop.f32.mrf.mxu0
  %v1202 = vadd.f32 %v1069, %v1201
  %v1203 = vpop.f32.mrf.mxu0
  %v1204 = vadd.f32 %v1071, %v1203
  %1205 = vmatmul.bf16.gmra.mxu0 %v528
  %v1206 = vpop.f32.mrf.mxu0
  %v1207 = vadd.f32 %v1074, %v1206
  %v1208 = vpop.f32.mrf.mxu0
  %v1209 = vadd.f32 %v1076, %v1208
  %1210 = vmatmul.bf16.gmra.mxu0 %v532
  %v1211 = vpop.f32.mrf.mxu0
  %v1212 = vadd.f32 %v1079, %v1211
  %v1213 = vpop.f32.mrf.mxu0
  %v1214 = vadd.f32 %v1081, %v1213
  %1215 = vmatmul.bf16.gmra.mxu0 %v536
  %v1216 = vpop.f32.mrf.mxu0
  %v1217 = vadd.f32 %v1084, %v1216
  %v1218 = vpop.f32.mrf.mxu0
  %v1219 = vadd.f32 %v1086, %v1218
  %1220 = vmatmul.bf16.gmra.mxu0 %v540
  %v1221 = vpop.f32.mrf.mxu0
  %v1222 = vadd.f32 %v1089, %v1221
  %v1223 = vpop.f32.mrf.mxu0
  %v1224 = vadd.f32 %v1091, %v1223
  %1225 = vmatmul.bf16.gmra.mxu0 %v544
  %v1226 = vpop.f32.mrf.mxu0
  %v1227 = vadd.f32 %v1094, %v1226
  %v1228 = vpop.f32.mrf.mxu0
  %v1229 = vadd.f32 %v1096, %v1228
  %1230 = vmatmul.bf16.gmra.mxu0 %v548
  %v1231 = vpop.f32.mrf.mxu0
  %v1232 = vadd.f32 %v1099, %v1231
  %v1233 = vpop.f32.mrf.mxu0
  %v1234 = vadd.f32 %v1101, %v1233
  %1235 = vmatmul.bf16.gmra.mxu0 %v552
  %v1236 = vpop.f32.mrf.mxu0
  %v1237 = vadd.f32 %v1104, %v1236
  %v1238 = vpop.f32.mrf.mxu0
  %v1239 = vadd.f32 %v1106, %v1238
  %1240 = vmatmul.bf16.gmra.mxu0 %v556
  %v1241 = vpop.f32.mrf.mxu0
  %v1242 = vadd.f32 %v1109, %v1241
  %v1243 = vpop.f32.mrf.mxu0
  %v1244 = vadd.f32 %v1111, %v1243
  %1245 = vmatmul.bf16.gmra.mxu0 %v560
  %v1246 = vpop.f32.mrf.mxu0
  %v1247 = vadd.f32 %v1114, %v1246
  %v1248 = vpop.f32.mrf.mxu0
  %v1249 = vadd.f32 %v1116, %v1248
  %1250 = vmatmul.bf16.gmra.mxu0 %v564
  %v1251 = vpop.f32.mrf.mxu0
  %v1252 = vadd.f32 %v1119, %v1251
  %v1253 = vpop.f32.mrf.mxu0
  %v1254 = vadd.f32 %v1121, %v1253
  %1255 = vmatmul.bf16.gmra.mxu0 %v568
  %v1256 = vpop.f32.mrf.mxu0
  %v1257 = vadd.f32 %v1124, %v1256
  %v1258 = vpop.f32.mrf.mxu0
  %v1259 = vadd.f32 %v1126, %v1258
  %1260 = vmatmul.bf16.gmra.mxu0 %v572
  %v1261 = vpop.f32.mrf.mxu0
  %v1262 = vadd.f32 %v1129, %v1261
  %v1263 = vpop.f32.mrf.mxu0
  %1264 = vdwg.mxu0
  %1265 = vmatpush.bf16.msra.mxu0 %v833
  %1266 = vmatpush.bf16.msra.mxu0 %v832
  %1267 = vmatpush.bf16.msra.mxu0 %v831
  %1268 = vmatpush.bf16.msra.mxu0 %v830
  %1269 = vmatpush.bf16.msra.mxu0 %v829
  %1270 = vmatpush.bf16.msra.mxu0 %v828
  %1271 = vmatpush.bf16.msra.mxu0 %v827
  %1272 = vmatpush.bf16.msra.mxu0 %v826
  %1273 = vmatmul.bf16.gmra.mxu0 %v477
  %v1274 = vpop.f32.mrf.mxu0
  %v1275 = vadd.f32 %v1142, %v1274
  %v1276 = vpop.f32.mrf.mxu0
  %v1277 = vadd.f32 %v1144, %v1276
  %1278 = vmatmul.bf16.gmra.mxu0 %v481
  %v1279 = vpop.f32.mrf.mxu0
  %v1280 = vadd.f32 %v1147, %v1279
  %v1281 = vpop.f32.mrf.mxu0
  %v1282 = vadd.f32 %v1149, %v1281
  %1283 = vmatmul.bf16.gmra.mxu0 %v485
  %v1284 = vpop.f32.mrf.mxu0
  %v1285 = vadd.f32 %v1152, %v1284
  %v1286 = vpop.f32.mrf.mxu0
  %v1287 = vadd.f32 %v1154, %v1286
  %1288 = vmatmul.bf16.gmra.mxu0 %v489
  %v1289 = vpop.f32.mrf.mxu0
  %v1290 = vadd.f32 %v1157, %v1289
  %v1291 = vpop.f32.mrf.mxu0
  %v1292 = vadd.f32 %v1159, %v1291
  %1293 = vmatmul.bf16.gmra.mxu0 %v493
  %v1294 = vpop.f32.mrf.mxu0
  %v1295 = vadd.f32 %v1162, %v1294
  %v1296 = vpop.f32.mrf.mxu0
  %v1297 = vadd.f32 %v1164, %v1296
  %1298 = vmatmul.bf16.gmra.mxu0 %v497
  %v1299 = vpop.f32.mrf.mxu0
  %v1300 = vadd.f32 %v1167, %v1299
  %v1301 = vpop.f32.mrf.mxu0
  %v1302 = vadd.f32 %v1169, %v1301
  %1303 = vmatmul.bf16.gmra.mxu0 %v501
  %v1304 = vpop.f32.mrf.mxu0
  %v1305 = vadd.f32 %v1172, %v1304
  %v1306 = vpop.f32.mrf.mxu0
  %v1307 = vadd.f32 %v1174, %v1306
  %1308 = vmatmul.bf16.gmra.mxu0 %v505
  %v1309 = vpop.f32.mrf.mxu0
  %v1310 = vadd.f32 %v1177, %v1309
  %v1311 = vpop.f32.mrf.mxu0
  %v1312 = vadd.f32 %v1179, %v1311
  %1313 = vmatmul.bf16.gmra.mxu0 %v509
  %v1314 = vpop.f32.mrf.mxu0
  %v1315 = vadd.f32 %v1182, %v1314
  %v1316 = vpop.f32.mrf.mxu0
  %v1317 = vadd.f32 %v1184, %v1316
  %1318 = vmatmul.bf16.gmra.mxu0 %v513
  %v1319 = vpop.f32.mrf.mxu0
  %v1320 = vadd.f32 %v1187, %v1319
  %v1321 = vpop.f32.mrf.mxu0
  %v1322 = vadd.f32 %v1189, %v1321
  %1323 = vmatmul.bf16.gmra.mxu0 %v517
  %v1324 = vpop.f32.mrf.mxu0
  %v1325 = vadd.f32 %v1192, %v1324
  %v1326 = vpop.f32.mrf.mxu0
  %v1327 = vadd.f32 %v1194, %v1326
  %1328 = vmatmul.bf16.gmra.mxu0 %v521
  %v1329 = vpop.f32.mrf.mxu0
  %v1330 = vadd.f32 %v1197, %v1329
  %v1331 = vpop.f32.mrf.mxu0
  %v1332 = vadd.f32 %v1199, %v1331
  %1333 = vmatmul.bf16.gmra.mxu0 %v525
  %v1334 = vpop.f32.mrf.mxu0
  %v1335 = vadd.f32 %v1202, %v1334
  %v1336 = vpop.f32.mrf.mxu0
  %v1337 = vadd.f32 %v1204, %v1336
  %1338 = vmatmul.bf16.gmra.mxu0 %v529
  %v1339 = vpop.f32.mrf.mxu0
  %v1340 = vadd.f32 %v1207, %v1339
  %v1341 = vpop.f32.mrf.mxu0
  %v1342 = vadd.f32 %v1209, %v1341
  %1343 = vmatmul.bf16.gmra.mxu0 %v533
  %v1344 = vpop.f32.mrf.mxu0
  %v1345 = vadd.f32 %v1212, %v1344
  %v1346 = vpop.f32.mrf.mxu0
  %v1347 = vadd.f32 %v1214, %v1346
  %1348 = vmatmul.bf16.gmra.mxu0 %v537
  %v1349 = vpop.f32.mrf.mxu0
  %v1350 = vadd.f32 %v1217, %v1349
  %v1351 = vpop.f32.mrf.mxu0
  %v1352 = vadd.f32 %v1219, %v1351
  %1353 = vmatmul.bf16.gmra.mxu0 %v541
  %v1354 = vpop.f32.mrf.mxu0
  %v1355 = vadd.f32 %v1222, %v1354
  %v1356 = vpop.f32.mrf.mxu0
  %v1357 = vadd.f32 %v1224, %v1356
  %1358 = vmatmul.bf16.gmra.mxu0 %v545
  %v1359 = vpop.f32.mrf.mxu0
  %v1360 = vadd.f32 %v1227, %v1359
  %v1361 = vpop.f32.mrf.mxu0
  %v1362 = vadd.f32 %v1229, %v1361
  %1363 = vmatmul.bf16.gmra.mxu0 %v549
  %v1364 = vpop.f32.mrf.mxu0
  %v1365 = vadd.f32 %v1232, %v1364
  %v1366 = vpop.f32.mrf.mxu0
  %v1367 = vadd.f32 %v1234, %v1366
  %1368 = vmatmul.bf16.gmra.mxu0 %v553
  %v1369 = vpop.f32.mrf.mxu0
  %v1370 = vadd.f32 %v1237, %v1369
  %v1371 = vpop.f32.mrf.mxu0
  %v1372 = vadd.f32 %v1239, %v1371
  %1373 = vmatmul.bf16.gmra.mxu0 %v557
  %v1374 = vpop.f32.mrf.mxu0
  %v1375 = vadd.f32 %v1242, %v1374
  %v1376 = vpop.f32.mrf.mxu0
  %v1377 = vadd.f32 %v1244, %v1376
  %1378 = vmatmul.bf16.gmra.mxu0 %v561
  %v1379 = vpop.f32.mrf.mxu0
  %v1380 = vadd.f32 %v1247, %v1379
  %v1381 = vpop.f32.mrf.mxu0
  %v1382 = vadd.f32 %v1249, %v1381
  %1383 = vmatmul.bf16.gmra.mxu0 %v565
  %v1384 = vpop.f32.mrf.mxu0
  %v1385 = vadd.f32 %v1252, %v1384
  %v1386 = vpop.f32.mrf.mxu0
  %v1387 = vadd.f32 %v1254, %v1386
  %1388 = vmatmul.bf16.gmra.mxu0 %v569
  %v1389 = vpop.f32.mrf.mxu0
  %v1390 = vadd.f32 %v1257, %v1389
  %v1391 = vpop.f32.mrf.mxu0
  %v1392 = vadd.f32 %v1259, %v1391
  %1393 = vmatmul.bf16.gmra.mxu0 %v573
  %v1394 = vpop.f32.mrf.mxu0
  %v1395 = vadd.f32 %v1262, %v1394
  %v1396 = vpop.f32.mrf.mxu0
  %1397 = vdwg.mxu0
  %v1398 = vmax.f32 %v1275, 0.0
  %v1399 = vmax.f32 %v1277, 0.0
  %v1400 = vmax.f32 %v1280, 0.0
  %v1401 = vmax.f32 %v1282, 0.0
  %v1402 = vmax.f32 %v1285, 0.0
  %v1403 = vmax.f32 %v1287, 0.0
  %v1404 = vmax.f32 %v1290, 0.0
  %v1405 = vmax.f32 %v1292, 0.0
  %v1406 = vmax.f32 %v1295, 0.0
  %v1407 = vmax.f32 %v1297, 0.0
  %v1408 = vmax.f32 %v1300, 0.0
  %v1409 = vmax.f32 %v1302, 0.0
  %v1410 = vmax.f32 %v1305, 0.0
  %v1411 = vmax.f32 %v1307, 0.0
  %v1412 = vmax.f32 %v1310, 0.0
  %v1413 = vmax.f32 %v1312, 0.0
  %v1414 = vmax.f32 %v1315, 0.0
  %v1415 = vmax.f32 %v1317, 0.0
  %v1416 = vmax.f32 %v1320, 0.0
  %v1417 = vmax.f32 %v1322, 0.0
  %v1418 = vmax.f32 %v1325, 0.0
  %v1419 = vmax.f32 %v1327, 0.0
  %v1420 = vmax.f32 %v1330, 0.0
  %v1421 = vmax.f32 %v1332, 0.0
  %v1422 = vmax.f32 %v1335, 0.0
  %v1423 = vmax.f32 %v1337, 0.0
  %v1424 = vmax.f32 %v1340, 0.0
  %v1425 = vmax.f32 %v1342, 0.0
  %v1426 = vmax.f32 %v1345, 0.0
  %v1427 = vmax.f32 %v1347, 0.0
  %v1428 = vmax.f32 %v1350, 0.0
  %v1429 = vmax.f32 %v1352, 0.0
  %v1430 = vmax.f32 %v1355, 0.0
  %v1431 = vmax.f32 %v1357, 0.0
  %v1432 = vmax.f32 %v1360, 0.0
  %v1433 = vmax.f32 %v1362, 0.0
  %v1434 = vmax.f32 %v1365, 0.0
  %v1435 = vmax.f32 %v1367, 0.0
  %v1436 = vmax.f32 %v1370, 0.0
  %v1437 = vmax.f32 %v1372, 0.0
  %v1438 = vmax.f32 %v1375, 0.0
  %v1439 = vmax.f32 %v1377, 0.0
  %v1440 = vmax.f32 %v1380, 0.0
  %v1441 = vmax.f32 %v1382, 0.0
  %v1442 = vmax.f32 %v1385, 0.0
  %v1443 = vmax.f32 %v1387, 0.0
  %v1444 = vmax.f32 %v1390, 0.0
  %v1445 = vmax.f32 %v1392, 0.0
  %v1446 = vmax.f32 %v1395, 0.0
  %vm1447 = vcmask 523264
  %1448 = vst.msk [vmem:[%s3] sm:$0xff] %vm1447, %v1398
  %1449 = vst.msk [vmem:[%s3 + $0x8] sm:$0xff] %vm1447, %v1399
  %1450 = vst.msk [vmem:[%s3 + $0x10] sm:$0xff] %vm1447, %v1400
  %1451 = vst.msk [vmem:[%s3 + $0x18] sm:$0xff] %vm1447, %v1401
  %1452 = vst.msk [vmem:[%s3 + $0x20] sm:$0xff] %vm1447, %v1402
  %1453 = vst.msk [vmem:[%s3 + $0x28] sm:$0xff] %vm1447, %v1403
  %1454 = vst.msk [vmem:[%s3 + $0x30] sm:$0xff] %vm1447, %v1404
  %1455 = vst.msk [vmem:[%s3 + $0x38] sm:$0xff] %vm1447, %v1405
  %1456 = vst.msk [vmem:[%s3 + $0x40] sm:$0xff] %vm1447, %v1406
  %1457 = vst.msk [vmem:[%s3 + $0x48] sm:$0xff] %vm1447, %v1407
  %1458 = vst.msk [vmem:[%s3 + $0x50] sm:$0xff] %vm1447, %v1408
  %1459 = vst.msk [vmem:[%s3 + $0x58] sm:$0xff] %vm1447, %v1409
  %1460 = vst.msk [vmem:[%s3 + $0x60] sm:$0xff] %vm1447, %v1410
  %1461 = vst.msk [vmem:[%s3 + $0x68] sm:$0xff] %vm1447, %v1411
  %1462 = vst.msk [vmem:[%s3 + $0x70] sm:$0xff] %vm1447, %v1412
  %1463 = vst.msk [vmem:[%s3 + $0x78] sm:$0xff] %vm1447, %v1413
  %1464 = vst.msk [vmem:[%s3 + $0x80] sm:$0xff] %vm1447, %v1414
  %1465 = vst.msk [vmem:[%s3 + $0x88] sm:$0xff] %vm1447, %v1415
  %1466 = vst.msk [vmem:[%s3 + $0x90] sm:$0xff] %vm1447, %v1416
  %1467 = vst.msk [vmem:[%s3 + $0x98] sm:$0xff] %vm1447, %v1417
  %1468 = vst.msk [vmem:[%s3 + $0xa0] sm:$0xff] %vm1447, %v1418
  %1469 = vst.msk [vmem:[%s3 + $0xa8] sm:$0xff] %vm1447, %v1419
  %1470 = vst.msk [vmem:[%s3 + $0xb0] sm:$0xff] %vm1447, %v1420
  %1471 = vst.msk [vmem:[%s3 + $0xb8] sm:$0xff] %vm1447, %v1421
  %1472 = vst.msk [vmem:[%s3 + $0xc0] sm:$0xff] %vm1447, %v1422
  %1473 = vst.msk [vmem:[%s3 + $0xc8] sm:$0xff] %vm1447, %v1423
  %1474 = vst.msk [vmem:[%s3 + $0xd0] sm:$0xff] %vm1447, %v1424
  %1475 = vst.msk [vmem:[%s3 + $0xd8] sm:$0xff] %vm1447, %v1425
  %1476 = vst.msk [vmem:[%s3 + $0xe0] sm:$0xff] %vm1447, %v1426
  %1477 = vst.msk [vmem:[%s3 + $0xe8] sm:$0xff] %vm1447, %v1427
  %1478 = vst.msk [vmem:[%s3 + $0xf0] sm:$0xff] %vm1447, %v1428
  %1479 = vst.msk [vmem:[%s3 + $0xf8] sm:$0xff] %vm1447, %v1429
  %1480 = vst.msk [vmem:[%s3 + $0x100] sm:$0xff] %vm1447, %v1430
  %1481 = vst.msk [vmem:[%s3 + $0x108] sm:$0xff] %vm1447, %v1431
  %1482 = vst.msk [vmem:[%s3 + $0x110] sm:$0xff] %vm1447, %v1432
  %1483 = vst.msk [vmem:[%s3 + $0x118] sm:$0xff] %vm1447, %v1433
  %1484 = vst.msk [vmem:[%s3 + $0x120] sm:$0xff] %vm1447, %v1434
  %1485 = vst.msk [vmem:[%s3 + $0x128] sm:$0xff] %vm1447, %v1435
  %1486 = vst.msk [vmem:[%s3 + $0x130] sm:$0xff] %vm1447, %v1436
  %1487 = vst.msk [vmem:[%s3 + $0x138] sm:$0xff] %vm1447, %v1437
  %1488 = vst.msk [vmem:[%s3 + $0x140] sm:$0xff] %vm1447, %v1438
  %1489 = vst.msk [vmem:[%s3 + $0x148] sm:$0xff] %vm1447, %v1439
  %1490 = vst.msk [vmem:[%s3 + $0x150] sm:$0xff] %vm1447, %v1440
  %1491 = vst.msk [vmem:[%s3 + $0x158] sm:$0xff] %vm1447, %v1441
  %1492 = vst.msk [vmem:[%s3 + $0x160] sm:$0xff] %vm1447, %v1442
  %1493 = vst.msk [vmem:[%s3 + $0x168] sm:$0xff] %vm1447, %v1443
  %1494 = vst.msk [vmem:[%s3 + $0x170] sm:$0xff] %vm1447, %v1444
  %1495 = vst.msk [vmem:[%s3 + $0x178] sm:$0xff] %vm1447, %v1445
  %1496 = vst.msk [vmem:[%s3 + $0x180] sm:$0xff] %vm1447, %v1446
  // Predicated region
  $region14: #{encoder.6} parent=0 // pred_check
    _
  $region15: #{encoder.6} parent=0 // pred_check_branch
    %1498 = sbr.rel (0) target = $region17
  $region16: #{encoder.6} parent=0 // pred_region
    _
  $region17: #{encoder.6} parent=0 // pred_fallthru
    _
  // Predicated region
  $region18: #{encoder.6} parent=0 // pred_check
    _
  $region19: #{encoder.6} parent=0 // pred_check_branch
    %1500 = sbr.rel (0) target = $region21
  $region20: #{encoder.6} parent=0 // pred_region
    _
  $region21: #{encoder.6} parent=0 // pred_fallthru
    _

// kernel: encoder.7
$region0: #{encoder.7}
  #allocation0 [shape = 'u32[]', space=smem, size = 0x4, offset = 0x4, fixed_abs, tag = 'smem constant byte address 0x4 - core index']
  #allocation1 [shape = 'u32[72,128]{1,0:T(1,128)}', space=vmem, size = 0x9000, scoped, tag = 'internal scratch']
  %s0 = inlined_call_operand.vmem [shape: bf16[72,1024], index: 0, kind: input, shape index: {}]
  %s1 = inlined_call_operand.vmem [shape: bf16[1024,128], index: 1, kind: input, shape index: {}]
  %s2 = inlined_call_operand.vmem [shape: f32[1,128], index: 2, kind: input, shape index: {}]
  %s3 = inlined_call_operand.vmem [shape: f32[72,128], index: 3, kind: output, shape index: {}]
  %s4 = sld [smem:[#allocation0]]
  $region22: #{encoder.7} parent=0
    _
  %s6 = ssub.s32 1, %s4
  %s7 = scalar_select 0, %s6, %s4
  // Predicated region
  $region2: #{encoder.7} parent=0 // pred_check
    _
  $region3: #{encoder.7} parent=0 // pred_check_branch
    %9 = sbr.rel (0) target = $region5
  $region4: #{encoder.7} parent=0 // pred_region
    _
  $region5: #{encoder.7} parent=0 // pred_fallthru
    _
  // Predicated region
  $region6: #{encoder.7} parent=0 // pred_check
    _
  $region7: #{encoder.7} parent=0 // pred_check_branch
    %11 = sbr.rel (0) target = $region9
  $region8: #{encoder.7} parent=0 // pred_region
    _
  $region9: #{encoder.7} parent=0 // pred_fallthru
    _
  // Predicated region
  $region10: #{encoder.7} parent=0 // pred_check
    _
  $region11: #{encoder.7} parent=0 // pred_check_branch
    %13 = sbr.rel (0) target = $region13
  $region12: #{encoder.7} parent=0 // pred_region
    _
  $region13: #{encoder.7} parent=0 // pred_fallthru
    _
  %v14 = vld [vmem:[%s0] sm:$0xff]
  %v15 = vld [vmem:[%s0 + $0x8] sm:$0xff]
  %v16 = vld [vmem:[%s0 + $0x10] sm:$0xff]
  %v17 = vld [vmem:[%s0 + $0x18] sm:$0xff]
  %v18 = vld [vmem:[%s0 + $0x20] sm:$0xff]
  %v19 = vld [vmem:[%s0 + $0x28] sm:$0xff]
  %v20 = vld [vmem:[%s0 + $0x30] sm:$0xff]
  %v21 = vld [vmem:[%s0 + $0x38] sm:$0xff]
  %v22 = vld [vmem:[%s0 + $0x40] sm:$0xff]
  %v23 = vld [vmem:[%s0 + $0x48] sm:$0xff]
  %v24 = vld [vmem:[%s0 + $0x50] sm:$0xff]
  %v25 = vld [vmem:[%s0 + $0x58] sm:$0xff]
  %v26 = vld [vmem:[%s0 + $0x60] sm:$0xff]
  %v27 = vld [vmem:[%s0 + $0x68] sm:$0xff]
  %v28 = vld [vmem:[%s0 + $0x70] sm:$0xff]
  %v29 = vld [vmem:[%s0 + $0x78] sm:$0xff]
  %v30 = vld [vmem:[%s0 + $0x80] sm:$0xff]
  %v31 = vld [vmem:[%s0 + $0x88] sm:$0xff]
  %v32 = vld [vmem:[%s0 + $0x90] sm:$0xff]
  %v33 = vld [vmem:[%s0 + $0x98] sm:$0xff]
  %v34 = vld [vmem:[%s0 + $0xa0] sm:$0xff]
  %v35 = vld [vmem:[%s0 + $0xa8] sm:$0xff]
  %v36 = vld [vmem:[%s0 + $0xb0] sm:$0xff]
  %v37 = vld [vmem:[%s0 + $0xb8] sm:$0xff]
  %v38 = vld [vmem:[%s0 + $0xc0] sm:$0xff]
  %v39 = vld [vmem:[%s0 + $0xc8] sm:$0xff]
  %v40 = vld [vmem:[%s0 + $0xd0] sm:$0xff]
  %v41 = vld [vmem:[%s0 + $0xd8] sm:$0xff]
  %v42 = vld [vmem:[%s0 + $0xe0] sm:$0xff]
  %v43 = vld [vmem:[%s0 + $0xe8] sm:$0xff]
  %v44 = vld [vmem:[%s0 + $0xf0] sm:$0xff]
  %v45 = vld [vmem:[%s0 + $0xf8] sm:$0xff]
  %v46 = vld [vmem:[%s0 + $0x100] sm:$0xff]
  %v47 = vld [vmem:[%s0 + $0x108] sm:$0xff]
  %v48 = vld [vmem:[%s0 + $0x110] sm:$0xff]
  %v49 = vld [vmem:[%s0 + $0x118] sm:$0xff]
  %v50 = vld [vmem:[%s1] sm:$0xf]
  %v51 = vld [vmem:[%s1 + $0x4] sm:$0xf]
  %v52 = vld [vmem:[%s1 + $0x8] sm:$0xf]
  %v53 = vld [vmem:[%s1 + $0xc] sm:$0xf]
  %v54 = vld [vmem:[%s1 + $0x10] sm:$0xf]
  %v55 = vld [vmem:[%s1 + $0x14] sm:$0xf]
  %v56 = vld [vmem:[%s1 + $0x18] sm:$0xf]
  %v57 = vld [vmem:[%s1 + $0x1c] sm:$0xf]
  %v58 = vld [vmem:[%s1 + $0x20] sm:$0xf]
  %v59 = vld [vmem:[%s1 + $0x24] sm:$0xf]
  %v60 = vld [vmem:[%s1 + $0x28] sm:$0xf]
  %v61 = vld [vmem:[%s1 + $0x2c] sm:$0xf]
  %v62 = vld [vmem:[%s1 + $0x30] sm:$0xf]
  %v63 = vld [vmem:[%s1 + $0x34] sm:$0xf]
  %v64 = vld [vmem:[%s1 + $0x38] sm:$0xf]
  %v65 = vld [vmem:[%s1 + $0x3c] sm:$0xf]
  %v66 = vld [vmem:[%s1 + $0x40] sm:$0xf]
  %v67 = vld [vmem:[%s1 + $0x44] sm:$0xf]
  %v68 = vld [vmem:[%s1 + $0x48] sm:$0xf]
  %v69 = vld [vmem:[%s1 + $0x4c] sm:$0xf]
  %v70 = vld [vmem:[%s1 + $0x50] sm:$0xf]
  %v71 = vld [vmem:[%s1 + $0x54] sm:$0xf]
  %v72 = vld [vmem:[%s1 + $0x58] sm:$0xf]
  %v73 = vld [vmem:[%s1 + $0x5c] sm:$0xf]
  %v74 = vld [vmem:[%s1 + $0x60] sm:$0xf]
  %v75 = vld [vmem:[%s1 + $0x64] sm:$0xf]
  %v76 = vld [vmem:[%s1 + $0x68] sm:$0xf]
  %v77 = vld [vmem:[%s1 + $0x6c] sm:$0xf]
  %v78 = vld [vmem:[%s1 + $0x70] sm:$0xf]
  %v79 = vld [vmem:[%s1 + $0x74] sm:$0xf]
  %v80 = vld [vmem:[%s1 + $0x78] sm:$0xf]
  %v81 = vld [vmem:[%s1 + $0x7c] sm:$0xf]
  %v82 = vld [vmem:[%s1 + $0x80] sm:$0xf]
  %v83 = vld [vmem:[%s1 + $0x84] sm:$0xf]
  %v84 = vld [vmem:[%s1 + $0x88] sm:$0xf]
  %v85 = vld [vmem:[%s1 + $0x8c] sm:$0xf]
  %v86 = vld [vmem:[%s1 + $0x90] sm:$0xf]
  %v87 = vld [vmem:[%s1 + $0x94] sm:$0xf]
  %v88 = vld [vmem:[%s1 + $0x98] sm:$0xf]
  %v89 = vld [vmem:[%s1 + $0x9c] sm:$0xf]
  %v90 = vld [vmem:[%s1 + $0xa0] sm:$0xf]
  %v91 = vld [vmem:[%s1 + $0xa4] sm:$0xf]
  %v92 = vld [vmem:[%s1 + $0xa8] sm:$0xf]
  %v93 = vld [vmem:[%s1 + $0xac] sm:$0xf]
  %v94 = vld [vmem:[%s1 + $0xb0] sm:$0xf]
  %v95 = vld [vmem:[%s1 + $0xb4] sm:$0xf]
  %v96 = vld [vmem:[%s1 + $0xb8] sm:$0xf]
  %v97 = vld [vmem:[%s1 + $0xbc] sm:$0xf]
  %v98 = vld [vmem:[%s1 + $0xc0] sm:$0xf]
  %v99 = vld [vmem:[%s1 + $0xc4] sm:$0xf]
  %v100 = vld [vmem:[%s1 + $0xc8] sm:$0xf]
  %v101 = vld [vmem:[%s1 + $0xcc] sm:$0xf]
  %v102 = vld [vmem:[%s1 + $0xd0] sm:$0xf]
  %v103 = vld [vmem:[%s1 + $0xd4] sm:$0xf]
  %v104 = vld [vmem:[%s1 + $0xd8] sm:$0xf]
  %v105 = vld [vmem:[%s1 + $0xdc] sm:$0xf]
  %v106 = vld [vmem:[%s1 + $0xe0] sm:$0xf]
  %v107 = vld [vmem:[%s1 + $0xe4] sm:$0xf]
  %v108 = vld [vmem:[%s1 + $0xe8] sm:$0xf]
  %v109 = vld [vmem:[%s1 + $0xec] sm:$0xf]
  %v110 = vld [vmem:[%s1 + $0xf0] sm:$0xf]
  %v111 = vld [vmem:[%s1 + $0xf4] sm:$0xf]
  %v112 = vld [vmem:[%s1 + $0xf8] sm:$0xf]
  %v113 = vld [vmem:[%s1 + $0xfc] sm:$0xf]
  %v114 = vld [vmem:[%s1 + $0x100] sm:$0xf]
  %v115 = vld [vmem:[%s1 + $0x104] sm:$0xf]
  %v116 = vld [vmem:[%s1 + $0x108] sm:$0xf]
  %v117 = vld [vmem:[%s1 + $0x10c] sm:$0xf]
  %v118 = vld [vmem:[%s1 + $0x110] sm:$0xf]
  %v119 = vld [vmem:[%s1 + $0x114] sm:$0xf]
  %v120 = vld [vmem:[%s1 + $0x118] sm:$0xf]
  %v121 = vld [vmem:[%s1 + $0x11c] sm:$0xf]
  %v122 = vld [vmem:[%s1 + $0x120] sm:$0xf]
  %v123 = vld [vmem:[%s1 + $0x124] sm:$0xf]
  %v124 = vld [vmem:[%s1 + $0x128] sm:$0xf]
  %v125 = vld [vmem:[%s1 + $0x12c] sm:$0xf]
  %v126 = vld [vmem:[%s1 + $0x130] sm:$0xf]
  %v127 = vld [vmem:[%s1 + $0x134] sm:$0xf]
  %v128 = vld [vmem:[%s1 + $0x138] sm:$0xf]
  %v129 = vld [vmem:[%s1 + $0x13c] sm:$0xf]
  %v130 = vld [vmem:[%s1 + $0x140] sm:$0xf]
  %v131 = vld [vmem:[%s1 + $0x144] sm:$0xf]
  %v132 = vld [vmem:[%s1 + $0x148] sm:$0xf]
  %v133 = vld [vmem:[%s1 + $0x14c] sm:$0xf]
  %v134 = vld [vmem:[%s1 + $0x150] sm:$0xf]
  %v135 = vld [vmem:[%s1 + $0x154] sm:$0xf]
  %v136 = vld [vmem:[%s1 + $0x158] sm:$0xf]
  %v137 = vld [vmem:[%s1 + $0x15c] sm:$0xf]
  %v138 = vld [vmem:[%s1 + $0x160] sm:$0xf]
  %v139 = vld [vmem:[%s1 + $0x164] sm:$0xf]
  %v140 = vld [vmem:[%s1 + $0x168] sm:$0xf]
  %v141 = vld [vmem:[%s1 + $0x16c] sm:$0xf]
  %v142 = vld [vmem:[%s1 + $0x170] sm:$0xf]
  %v143 = vld [vmem:[%s1 + $0x174] sm:$0xf]
  %v144 = vld [vmem:[%s1 + $0x178] sm:$0xf]
  %v145 = vld [vmem:[%s1 + $0x17c] sm:$0xf]
  %v146 = vld [vmem:[%s1 + $0x180] sm:$0xf]
  %v147 = vld [vmem:[%s1 + $0x184] sm:$0xf]
  %v148 = vld [vmem:[%s1 + $0x188] sm:$0xf]
  %v149 = vld [vmem:[%s1 + $0x18c] sm:$0xf]
  %v150 = vld [vmem:[%s1 + $0x190] sm:$0xf]
  %v151 = vld [vmem:[%s1 + $0x194] sm:$0xf]
  %v152 = vld [vmem:[%s1 + $0x198] sm:$0xf]
  %v153 = vld [vmem:[%s1 + $0x19c] sm:$0xf]
  %v154 = vld [vmem:[%s1 + $0x1a0] sm:$0xf]
  %v155 = vld [vmem:[%s1 + $0x1a4] sm:$0xf]
  %v156 = vld [vmem:[%s1 + $0x1a8] sm:$0xf]
  %v157 = vld [vmem:[%s1 + $0x1ac] sm:$0xf]
  %v158 = vld [vmem:[%s1 + $0x1b0] sm:$0xf]
  %v159 = vld [vmem:[%s1 + $0x1b4] sm:$0xf]
  %v160 = vld [vmem:[%s1 + $0x1b8] sm:$0xf]
  %v161 = vld [vmem:[%s1 + $0x1bc] sm:$0xf]
  %v162 = vld [vmem:[%s1 + $0x1c0] sm:$0xf]
  %v163 = vld [vmem:[%s1 + $0x1c4] sm:$0xf]
  %v164 = vld [vmem:[%s1 + $0x1c8] sm:$0xf]
  %v165 = vld [vmem:[%s1 + $0x1cc] sm:$0xf]
  %v166 = vld [vmem:[%s1 + $0x1d0] sm:$0xf]
  %v167 = vld [vmem:[%s1 + $0x1d4] sm:$0xf]
  %v168 = vld [vmem:[%s1 + $0x1d8] sm:$0xf]
  %v169 = vld [vmem:[%s1 + $0x1dc] sm:$0xf]
  %v170 = vld [vmem:[%s1 + $0x1e0] sm:$0xf]
  %v171 = vld [vmem:[%s1 + $0x1e4] sm:$0xf]
  %v172 = vld [vmem:[%s1 + $0x1e8] sm:$0xf]
  %v173 = vld [vmem:[%s1 + $0x1ec] sm:$0xf]
  %v174 = vld [vmem:[%s1 + $0x1f0] sm:$0xf]
  %v175 = vld [vmem:[%s1 + $0x1f4] sm:$0xf]
  %v176 = vld [vmem:[%s1 + $0x1f8] sm:$0xf]
  %v177 = vld [vmem:[%s1 + $0x1fc] sm:$0xf]
  %v178 = vld [vmem:[%s2] sm:$0x1]
  %v180 = vperm.slane %v178, 0
  %v218 = vunpack.c.l.b16 %v14
  %v219 = vunpack.c.h.b16 %v14
  %v220 = vunpack.c.l.b16 %v15
  %v221 = vunpack.c.h.b16 %v15
  %v222 = vunpack.c.l.b16 %v16
  %v223 = vunpack.c.h.b16 %v16
  %v224 = vunpack.c.l.b16 %v17
  %v225 = vunpack.c.h.b16 %v17
  %v226 = vunpack.c.l.b16 %v18
  %v227 = vunpack.c.h.b16 %v18
  %v228 = vunpack.c.l.b16 %v19
  %v229 = vunpack.c.h.b16 %v19
  %v230 = vunpack.c.l.b16 %v20
  %v231 = vunpack.c.h.b16 %v20
  %v232 = vunpack.c.l.b16 %v21
  %v233 = vunpack.c.h.b16 %v21
  %v234 = vunpack.c.l.b16 %v22
  %v235 = vunpack.c.h.b16 %v22
  %v236 = vunpack.c.l.b16 %v23
  %v237 = vunpack.c.h.b16 %v23
  %v238 = vunpack.c.l.b16 %v24
  %v239 = vunpack.c.h.b16 %v24
  %v240 = vunpack.c.l.b16 %v25
  %v241 = vunpack.c.h.b16 %v25
  %v242 = vunpack.c.l.b16 %v26
  %v243 = vunpack.c.h.b16 %v26
  %v244 = vunpack.c.l.b16 %v27
  %v245 = vunpack.c.h.b16 %v27
  %v246 = vunpack.c.l.b16 %v28
  %v247 = vunpack.c.h.b16 %v28
  %v248 = vunpack.c.l.b16 %v29
  %v249 = vunpack.c.h.b16 %v29
  %v250 = vunpack.c.l.b16 %v30
  %v251 = vunpack.c.h.b16 %v30
  %v252 = vunpack.c.l.b16 %v31
  %v253 = vunpack.c.h.b16 %v31
  %v254 = vunpack.c.l.b16 %v32
  %v255 = vunpack.c.h.b16 %v32
  %v256 = vunpack.c.l.b16 %v33
  %v257 = vunpack.c.h.b16 %v33
  %v258 = vunpack.c.l.b16 %v34
  %v259 = vunpack.c.h.b16 %v34
  %v260 = vunpack.c.l.b16 %v35
  %v261 = vunpack.c.h.b16 %v35
  %v262 = vunpack.c.l.b16 %v36
  %v263 = vunpack.c.h.b16 %v36
  %v264 = vunpack.c.l.b16 %v37
  %v265 = vunpack.c.h.b16 %v37
  %v266 = vunpack.c.l.b16 %v38
  %v267 = vunpack.c.h.b16 %v38
  %v268 = vunpack.c.l.b16 %v39
  %v269 = vunpack.c.h.b16 %v39
  %v270 = vunpack.c.l.b16 %v40
  %v271 = vunpack.c.h.b16 %v40
  %v272 = vunpack.c.l.b16 %v41
  %v273 = vunpack.c.h.b16 %v41
  %v274 = vunpack.c.l.b16 %v42
  %v275 = vunpack.c.h.b16 %v42
  %v276 = vunpack.c.l.b16 %v43
  %v277 = vunpack.c.h.b16 %v43
  %v278 = vunpack.c.l.b16 %v44
  %v279 = vunpack.c.h.b16 %v44
  %v280 = vunpack.c.l.b16 %v45
  %v281 = vunpack.c.h.b16 %v45
  %v282 = vunpack.c.l.b16 %v46
  %v283 = vunpack.c.h.b16 %v46
  %v284 = vunpack.c.l.b16 %v47
  %v285 = vunpack.c.h.b16 %v47
  %v286 = vunpack.c.l.b16 %v48
  %v287 = vunpack.c.h.b16 %v48
  %v288 = vunpack.c.l.b16 %v49
  %v289 = vunpack.c.h.b16 %v49
  %v290 = vpack.c.b16 %v226, %v218
  %v291 = vpack.c.b16 %v227, %v219
  %v292 = vpack.c.b16 %v228, %v220
  %v293 = vpack.c.b16 %v229, %v221
  %v294 = vpack.c.b16 %v230, %v222
  %v295 = vpack.c.b16 %v231, %v223
  %v296 = vpack.c.b16 %v232, %v224
  %v297 = vpack.c.b16 %v233, %v225
  %v298 = vpack.c.b16 %v242, %v234
  %v299 = vpack.c.b16 %v243, %v235
  %v300 = vpack.c.b16 %v244, %v236
  %v301 = vpack.c.b16 %v245, %v237
  %v302 = vpack.c.b16 %v246, %v238
  %v303 = vpack.c.b16 %v247, %v239
  %v304 = vpack.c.b16 %v248, %v240
  %v305 = vpack.c.b16 %v249, %v241
  %v306 = vpack.c.b16 %v258, %v250
  %v307 = vpack.c.b16 %v259, %v251
  %v308 = vpack.c.b16 %v260, %v252
  %v309 = vpack.c.b16 %v261, %v253
  %v310 = vpack.c.b16 %v262, %v254
  %v311 = vpack.c.b16 %v263, %v255
  %v312 = vpack.c.b16 %v264, %v256
  %v313 = vpack.c.b16 %v265, %v257
  %v314 = vpack.c.b16 %v274, %v266
  %v315 = vpack.c.b16 %v275, %v267
  %v316 = vpack.c.b16 %v276, %v268
  %v317 = vpack.c.b16 %v277, %v269
  %v318 = vpack.c.b16 %v278, %v270
  %v319 = vpack.c.b16 %v279, %v271
  %v320 = vpack.c.b16 %v280, %v272
  %v321 = vpack.c.b16 %v281, %v273
  %v322 = vpack.c.b16 %v282, %v282
  %v323 = vpack.c.b16 %v283, %v283
  %v324 = vpack.c.b16 %v284, %v284
  %v325 = vpack.c.b16 %v285, %v285
  %v326 = vpack.c.b16 %v286, %v286
  %v327 = vpack.c.b16 %v287, %v287
  %v328 = vpack.c.b16 %v288, %v288
  %v329 = vpack.c.b16 %v289, %v289
  %v498 = vunpack.c.l.b16 %v50
  %v499 = vunpack.c.l.b16 %v51
  %v500 = vunpack.c.l.b16 %v52
  %v501 = vunpack.c.l.b16 %v53
  %v502 = vunpack.c.l.b16 %v54
  %v503 = vunpack.c.l.b16 %v55
  %v504 = vunpack.c.l.b16 %v56
  %v505 = vunpack.c.l.b16 %v57
  %v506 = vunpack.c.l.b16 %v58
  %v507 = vunpack.c.l.b16 %v59
  %v508 = vunpack.c.l.b16 %v60
  %v509 = vunpack.c.l.b16 %v61
  %v510 = vunpack.c.l.b16 %v62
  %v511 = vunpack.c.l.b16 %v63
  %v512 = vunpack.c.l.b16 %v64
  %v513 = vunpack.c.l.b16 %v65
  %v514 = vunpack.c.l.b16 %v66
  %v515 = vunpack.c.l.b16 %v67
  %v516 = vunpack.c.l.b16 %v68
  %v517 = vunpack.c.l.b16 %v69
  %v518 = vunpack.c.l.b16 %v70
  %v519 = vunpack.c.l.b16 %v71
  %v520 = vunpack.c.l.b16 %v72
  %v521 = vunpack.c.l.b16 %v73
  %v522 = vunpack.c.l.b16 %v74
  %v523 = vunpack.c.l.b16 %v75
  %v524 = vunpack.c.l.b16 %v76
  %v525 = vunpack.c.l.b16 %v77
  %v526 = vunpack.c.l.b16 %v78
  %v527 = vunpack.c.l.b16 %v79
  %v528 = vunpack.c.l.b16 %v80
  %v529 = vunpack.c.l.b16 %v81
  %v530 = vunpack.c.l.b16 %v82
  %v531 = vunpack.c.l.b16 %v83
  %v532 = vunpack.c.l.b16 %v84
  %v533 = vunpack.c.l.b16 %v85
  %v534 = vunpack.c.l.b16 %v86
  %v535 = vunpack.c.l.b16 %v87
  %v536 = vunpack.c.l.b16 %v88
  %v537 = vunpack.c.l.b16 %v89
  %v538 = vunpack.c.l.b16 %v90
  %v539 = vunpack.c.l.b16 %v91
  %v540 = vunpack.c.l.b16 %v92
  %v541 = vunpack.c.l.b16 %v93
  %v542 = vunpack.c.l.b16 %v94
  %v543 = vunpack.c.l.b16 %v95
  %v544 = vunpack.c.l.b16 %v96
  %v545 = vunpack.c.l.b16 %v97
  %v546 = vunpack.c.l.b16 %v98
  %v547 = vunpack.c.l.b16 %v99
  %v548 = vunpack.c.l.b16 %v100
  %v549 = vunpack.c.l.b16 %v101
  %v550 = vunpack.c.l.b16 %v102
  %v551 = vunpack.c.l.b16 %v103
  %v552 = vunpack.c.l.b16 %v104
  %v553 = vunpack.c.l.b16 %v105
  %v554 = vunpack.c.l.b16 %v106
  %v555 = vunpack.c.l.b16 %v107
  %v556 = vunpack.c.l.b16 %v108
  %v557 = vunpack.c.l.b16 %v109
  %v558 = vunpack.c.l.b16 %v110
  %v559 = vunpack.c.l.b16 %v111
  %v560 = vunpack.c.l.b16 %v112
  %v561 = vunpack.c.l.b16 %v113
  %v562 = vunpack.c.l.b16 %v114
  %v563 = vunpack.c.l.b16 %v115
  %v564 = vunpack.c.l.b16 %v116
  %v565 = vunpack.c.l.b16 %v117
  %v566 = vunpack.c.l.b16 %v118
  %v567 = vunpack.c.l.b16 %v119
  %v568 = vunpack.c.l.b16 %v120
  %v569 = vunpack.c.l.b16 %v121
  %v570 = vunpack.c.l.b16 %v122
  %v571 = vunpack.c.l.b16 %v123
  %v572 = vunpack.c.l.b16 %v124
  %v573 = vunpack.c.l.b16 %v125
  %v574 = vunpack.c.l.b16 %v126
  %v575 = vunpack.c.l.b16 %v127
  %v576 = vunpack.c.l.b16 %v128
  %v577 = vunpack.c.l.b16 %v129
  %v578 = vunpack.c.l.b16 %v130
  %v579 = vunpack.c.l.b16 %v131
  %v580 = vunpack.c.l.b16 %v132
  %v581 = vunpack.c.l.b16 %v133
  %v582 = vunpack.c.l.b16 %v134
  %v583 = vunpack.c.l.b16 %v135
  %v584 = vunpack.c.l.b16 %v136
  %v585 = vunpack.c.l.b16 %v137
  %v586 = vunpack.c.l.b16 %v138
  %v587 = vunpack.c.l.b16 %v139
  %v588 = vunpack.c.l.b16 %v140
  %v589 = vunpack.c.l.b16 %v141
  %v590 = vunpack.c.l.b16 %v142
  %v591 = vunpack.c.l.b16 %v143
  %v592 = vunpack.c.l.b16 %v144
  %v593 = vunpack.c.l.b16 %v145
  %v594 = vunpack.c.l.b16 %v146
  %v595 = vunpack.c.l.b16 %v147
  %v596 = vunpack.c.l.b16 %v148
  %v597 = vunpack.c.l.b16 %v149
  %v598 = vunpack.c.l.b16 %v150
  %v599 = vunpack.c.l.b16 %v151
  %v600 = vunpack.c.l.b16 %v152
  %v601 = vunpack.c.l.b16 %v153
  %v602 = vunpack.c.l.b16 %v154
  %v603 = vunpack.c.l.b16 %v155
  %v604 = vunpack.c.l.b16 %v156
  %v605 = vunpack.c.l.b16 %v157
  %v606 = vunpack.c.l.b16 %v158
  %v607 = vunpack.c.l.b16 %v159
  %v608 = vunpack.c.l.b16 %v160
  %v609 = vunpack.c.l.b16 %v161
  %v610 = vunpack.c.l.b16 %v162
  %v611 = vunpack.c.l.b16 %v163
  %v612 = vunpack.c.l.b16 %v164
  %v613 = vunpack.c.l.b16 %v165
  %v614 = vunpack.c.l.b16 %v166
  %v615 = vunpack.c.l.b16 %v167
  %v616 = vunpack.c.l.b16 %v168
  %v617 = vunpack.c.l.b16 %v169
  %v618 = vunpack.c.l.b16 %v170
  %v619 = vunpack.c.l.b16 %v171
  %v620 = vunpack.c.l.b16 %v172
  %v621 = vunpack.c.l.b16 %v173
  %v622 = vunpack.c.l.b16 %v174
  %v623 = vunpack.c.l.b16 %v175
  %v624 = vunpack.c.l.b16 %v176
  %v625 = vunpack.c.l.b16 %v177
  %v626 = vpack.c.b16 %v499, %v498
  %v627 = vpack.c.b16 %v501, %v500
  %v628 = vpack.c.b16 %v503, %v502
  %v629 = vpack.c.b16 %v505, %v504
  %v630 = vpack.c.b16 %v507, %v506
  %v631 = vpack.c.b16 %v509, %v508
  %v632 = vpack.c.b16 %v511, %v510
  %v633 = vpack.c.b16 %v513, %v512
  %v634 = vpack.c.b16 %v515, %v514
  %v635 = vpack.c.b16 %v517, %v516
  %v636 = vpack.c.b16 %v519, %v518
  %v637 = vpack.c.b16 %v521, %v520
  %v638 = vpack.c.b16 %v523, %v522
  %v639 = vpack.c.b16 %v525, %v524
  %v640 = vpack.c.b16 %v527, %v526
  %v641 = vpack.c.b16 %v529, %v528
  %v642 = vpack.c.b16 %v531, %v530
  %v643 = vpack.c.b16 %v533, %v532
  %v644 = vpack.c.b16 %v535, %v534
  %v645 = vpack.c.b16 %v537, %v536
  %v646 = vpack.c.b16 %v539, %v538
  %v647 = vpack.c.b16 %v541, %v540
  %v648 = vpack.c.b16 %v543, %v542
  %v649 = vpack.c.b16 %v545, %v544
  %v650 = vpack.c.b16 %v547, %v546
  %v651 = vpack.c.b16 %v549, %v548
  %v652 = vpack.c.b16 %v551, %v550
  %v653 = vpack.c.b16 %v553, %v552
  %v654 = vpack.c.b16 %v555, %v554
  %v655 = vpack.c.b16 %v557, %v556
  %v656 = vpack.c.b16 %v559, %v558
  %v657 = vpack.c.b16 %v561, %v560
  %v658 = vpack.c.b16 %v563, %v562
  %v659 = vpack.c.b16 %v565, %v564
  %v660 = vpack.c.b16 %v567, %v566
  %v661 = vpack.c.b16 %v569, %v568
  %v662 = vpack.c.b16 %v571, %v570
  %v663 = vpack.c.b16 %v573, %v572
  %v664 = vpack.c.b16 %v575, %v574
  %v665 = vpack.c.b16 %v577, %v576
  %v666 = vpack.c.b16 %v579, %v578
  %v667 = vpack.c.b16 %v581, %v580
  %v668 = vpack.c.b16 %v583, %v582
  %v669 = vpack.c.b16 %v585, %v584
  %v670 = vpack.c.b16 %v587, %v586
  %v671 = vpack.c.b16 %v589, %v588
  %v672 = vpack.c.b16 %v591, %v590
  %v673 = vpack.c.b16 %v593, %v592
  %v674 = vpack.c.b16 %v595, %v594
  %v675 = vpack.c.b16 %v597, %v596
  %v676 = vpack.c.b16 %v599, %v598
  %v677 = vpack.c.b16 %v601, %v600
  %v678 = vpack.c.b16 %v603, %v602
  %v679 = vpack.c.b16 %v605, %v604
  %v680 = vpack.c.b16 %v607, %v606
  %v681 = vpack.c.b16 %v609, %v608
  %v682 = vpack.c.b16 %v611, %v610
  %v683 = vpack.c.b16 %v613, %v612
  %v684 = vpack.c.b16 %v615, %v614
  %v685 = vpack.c.b16 %v617, %v616
  %v686 = vpack.c.b16 %v619, %v618
  %v687 = vpack.c.b16 %v621, %v620
  %v688 = vpack.c.b16 %v623, %v622
  %v689 = vpack.c.b16 %v625, %v624
  %754 = vmatpush.bf16.msra.mxu0 %v633
  %755 = vmatpush.bf16.msra.mxu0 %v632
  %756 = vmatpush.bf16.msra.mxu0 %v631
  %757 = vmatpush.bf16.msra.mxu0 %v630
  %758 = vmatpush.bf16.msra.mxu0 %v629
  %759 = vmatpush.bf16.msra.mxu0 %v628
  %760 = vmatpush.bf16.msra.mxu0 %v627
  %761 = vmatpush.bf16.msra.mxu0 %v626
  %762 = vmatmul.bf16.gmra.mxu0 %v290
  %v763 = vpop.f32.mrf.mxu0
  %v764 = vadd.f32 %v180, %v763
  %v765 = vpop.f32.mrf.mxu0
  %v766 = vadd.f32 %v180, %v765
  %767 = vmatmul.bf16.gmra.mxu0 %v298
  %v768 = vpop.f32.mrf.mxu0
  %v769 = vadd.f32 %v180, %v768
  %v770 = vpop.f32.mrf.mxu0
  %v771 = vadd.f32 %v180, %v770
  %772 = vmatmul.bf16.gmra.mxu0 %v306
  %v773 = vpop.f32.mrf.mxu0
  %v774 = vadd.f32 %v180, %v773
  %v775 = vpop.f32.mrf.mxu0
  %v776 = vadd.f32 %v180, %v775
  %777 = vmatmul.bf16.gmra.mxu0 %v314
  %v778 = vpop.f32.mrf.mxu0
  %v779 = vadd.f32 %v180, %v778
  %v780 = vpop.f32.mrf.mxu0
  %v781 = vadd.f32 %v180, %v780
  %782 = vmatmul.bf16.gmra.mxu0 %v322
  %v783 = vpop.f32.mrf.mxu0
  %v784 = vadd.f32 %v180, %v783
  %v785 = vpop.f32.mrf.mxu0
  %786 = vdwg.mxu0
  %787 = vmatpush.bf16.msra.mxu0 %v641
  %788 = vmatpush.bf16.msra.mxu0 %v640
  %789 = vmatpush.bf16.msra.mxu0 %v639
  %790 = vmatpush.bf16.msra.mxu0 %v638
  %791 = vmatpush.bf16.msra.mxu0 %v637
  %792 = vmatpush.bf16.msra.mxu0 %v636
  %793 = vmatpush.bf16.msra.mxu0 %v635
  %794 = vmatpush.bf16.msra.mxu0 %v634
  %795 = vmatmul.bf16.gmra.mxu0 %v291
  %v796 = vpop.f32.mrf.mxu0
  %v797 = vadd.f32 %v764, %v796
  %v798 = vpop.f32.mrf.mxu0
  %v799 = vadd.f32 %v766, %v798
  %800 = vmatmul.bf16.gmra.mxu0 %v299
  %v801 = vpop.f32.mrf.mxu0
  %v802 = vadd.f32 %v769, %v801
  %v803 = vpop.f32.mrf.mxu0
  %v804 = vadd.f32 %v771, %v803
  %805 = vmatmul.bf16.gmra.mxu0 %v307
  %v806 = vpop.f32.mrf.mxu0
  %v807 = vadd.f32 %v774, %v806
  %v808 = vpop.f32.mrf.mxu0
  %v809 = vadd.f32 %v776, %v808
  %810 = vmatmul.bf16.gmra.mxu0 %v315
  %v811 = vpop.f32.mrf.mxu0
  %v812 = vadd.f32 %v779, %v811
  %v813 = vpop.f32.mrf.mxu0
  %v814 = vadd.f32 %v781, %v813
  %815 = vmatmul.bf16.gmra.mxu0 %v323
  %v816 = vpop.f32.mrf.mxu0
  %v817 = vadd.f32 %v784, %v816
  %v818 = vpop.f32.mrf.mxu0
  %819 = vdwg.mxu0
  %820 = vmatpush.bf16.msra.mxu0 %v649
  %821 = vmatpush.bf16.msra.mxu0 %v648
  %822 = vmatpush.bf16.msra.mxu0 %v647
  %823 = vmatpush.bf16.msra.mxu0 %v646
  %824 = vmatpush.bf16.msra.mxu0 %v645
  %825 = vmatpush.bf16.msra.mxu0 %v644
  %826 = vmatpush.bf16.msra.mxu0 %v643
  %827 = vmatpush.bf16.msra.mxu0 %v642
  %828 = vmatmul.bf16.gmra.mxu0 %v292
  %v829 = vpop.f32.mrf.mxu0
  %v830 = vadd.f32 %v797, %v829
  %v831 = vpop.f32.mrf.mxu0
  %v832 = vadd.f32 %v799, %v831
  %833 = vmatmul.bf16.gmra.mxu0 %v300
  %v834 = vpop.f32.mrf.mxu0
  %v835 = vadd.f32 %v802, %v834
  %v836 = vpop.f32.mrf.mxu0
  %v837 = vadd.f32 %v804, %v836
  %838 = vmatmul.bf16.gmra.mxu0 %v308
  %v839 = vpop.f32.mrf.mxu0
  %v840 = vadd.f32 %v807, %v839
  %v841 = vpop.f32.mrf.mxu0
  %v842 = vadd.f32 %v809, %v841
  %843 = vmatmul.bf16.gmra.mxu0 %v316
  %v844 = vpop.f32.mrf.mxu0
  %v845 = vadd.f32 %v812, %v844
  %v846 = vpop.f32.mrf.mxu0
  %v847 = vadd.f32 %v814, %v846
  %848 = vmatmul.bf16.gmra.mxu0 %v324
  %v849 = vpop.f32.mrf.mxu0
  %v850 = vadd.f32 %v817, %v849
  %v851 = vpop.f32.mrf.mxu0
  %852 = vdwg.mxu0
  %853 = vmatpush.bf16.msra.mxu0 %v657
  %854 = vmatpush.bf16.msra.mxu0 %v656
  %855 = vmatpush.bf16.msra.mxu0 %v655
  %856 = vmatpush.bf16.msra.mxu0 %v654
  %857 = vmatpush.bf16.msra.mxu0 %v653
  %858 = vmatpush.bf16.msra.mxu0 %v652
  %859 = vmatpush.bf16.msra.mxu0 %v651
  %860 = vmatpush.bf16.msra.mxu0 %v650
  %861 = vmatmul.bf16.gmra.mxu0 %v293
  %v862 = vpop.f32.mrf.mxu0
  %v863 = vadd.f32 %v830, %v862
  %v864 = vpop.f32.mrf.mxu0
  %v865 = vadd.f32 %v832, %v864
  %866 = vmatmul.bf16.gmra.mxu0 %v301
  %v867 = vpop.f32.mrf.mxu0
  %v868 = vadd.f32 %v835, %v867
  %v869 = vpop.f32.mrf.mxu0
  %v870 = vadd.f32 %v837, %v869
  %871 = vmatmul.bf16.gmra.mxu0 %v309
  %v872 = vpop.f32.mrf.mxu0
  %v873 = vadd.f32 %v840, %v872
  %v874 = vpop.f32.mrf.mxu0
  %v875 = vadd.f32 %v842, %v874
  %876 = vmatmul.bf16.gmra.mxu0 %v317
  %v877 = vpop.f32.mrf.mxu0
  %v878 = vadd.f32 %v845, %v877
  %v879 = vpop.f32.mrf.mxu0
  %v880 = vadd.f32 %v847, %v879
  %881 = vmatmul.bf16.gmra.mxu0 %v325
  %v882 = vpop.f32.mrf.mxu0
  %v883 = vadd.f32 %v850, %v882
  %v884 = vpop.f32.mrf.mxu0
  %885 = vdwg.mxu0
  %886 = vmatpush.bf16.msra.mxu0 %v665
  %887 = vmatpush.bf16.msra.mxu0 %v664
  %888 = vmatpush.bf16.msra.mxu0 %v663
  %889 = vmatpush.bf16.msra.mxu0 %v662
  %890 = vmatpush.bf16.msra.mxu0 %v661
  %891 = vmatpush.bf16.msra.mxu0 %v660
  %892 = vmatpush.bf16.msra.mxu0 %v659
  %893 = vmatpush.bf16.msra.mxu0 %v658
  %894 = vmatmul.bf16.gmra.mxu0 %v294
  %v895 = vpop.f32.mrf.mxu0
  %v896 = vadd.f32 %v863, %v895
  %v897 = vpop.f32.mrf.mxu0
  %v898 = vadd.f32 %v865, %v897
  %899 = vmatmul.bf16.gmra.mxu0 %v302
  %v900 = vpop.f32.mrf.mxu0
  %v901 = vadd.f32 %v868, %v900
  %v902 = vpop.f32.mrf.mxu0
  %v903 = vadd.f32 %v870, %v902
  %904 = vmatmul.bf16.gmra.mxu0 %v310
  %v905 = vpop.f32.mrf.mxu0
  %v906 = vadd.f32 %v873, %v905
  %v907 = vpop.f32.mrf.mxu0
  %v908 = vadd.f32 %v875, %v907
  %909 = vmatmul.bf16.gmra.mxu0 %v318
  %v910 = vpop.f32.mrf.mxu0
  %v911 = vadd.f32 %v878, %v910
  %v912 = vpop.f32.mrf.mxu0
  %v913 = vadd.f32 %v880, %v912
  %914 = vmatmul.bf16.gmra.mxu0 %v326
  %v915 = vpop.f32.mrf.mxu0
  %v916 = vadd.f32 %v883, %v915
  %v917 = vpop.f32.mrf.mxu0
  %918 = vdwg.mxu0
  %919 = vmatpush.bf16.msra.mxu0 %v673
  %920 = vmatpush.bf16.msra.mxu0 %v672
  %921 = vmatpush.bf16.msra.mxu0 %v671
  %922 = vmatpush.bf16.msra.mxu0 %v670
  %923 = vmatpush.bf16.msra.mxu0 %v669
  %924 = vmatpush.bf16.msra.mxu0 %v668
  %925 = vmatpush.bf16.msra.mxu0 %v667
  %926 = vmatpush.bf16.msra.mxu0 %v666
  %927 = vmatmul.bf16.gmra.mxu0 %v295
  %v928 = vpop.f32.mrf.mxu0
  %v929 = vadd.f32 %v896, %v928
  %v930 = vpop.f32.mrf.mxu0
  %v931 = vadd.f32 %v898, %v930
  %932 = vmatmul.bf16.gmra.mxu0 %v303
  %v933 = vpop.f32.mrf.mxu0
  %v934 = vadd.f32 %v901, %v933
  %v935 = vpop.f32.mrf.mxu0
  %v936 = vadd.f32 %v903, %v935
  %937 = vmatmul.bf16.gmra.mxu0 %v311
  %v938 = vpop.f32.mrf.mxu0
  %v939 = vadd.f32 %v906, %v938
  %v940 = vpop.f32.mrf.mxu0
  %v941 = vadd.f32 %v908, %v940
  %942 = vmatmul.bf16.gmra.mxu0 %v319
  %v943 = vpop.f32.mrf.mxu0
  %v944 = vadd.f32 %v911, %v943
  %v945 = vpop.f32.mrf.mxu0
  %v946 = vadd.f32 %v913, %v945
  %947 = vmatmul.bf16.gmra.mxu0 %v327
  %v948 = vpop.f32.mrf.mxu0
  %v949 = vadd.f32 %v916, %v948
  %v950 = vpop.f32.mrf.mxu0
  %951 = vdwg.mxu0
  %952 = vmatpush.bf16.msra.mxu0 %v681
  %953 = vmatpush.bf16.msra.mxu0 %v680
  %954 = vmatpush.bf16.msra.mxu0 %v679
  %955 = vmatpush.bf16.msra.mxu0 %v678
  %956 = vmatpush.bf16.msra.mxu0 %v677
  %957 = vmatpush.bf16.msra.mxu0 %v676
  %958 = vmatpush.bf16.msra.mxu0 %v675
  %959 = vmatpush.bf16.msra.mxu0 %v674
  %960 = vmatmul.bf16.gmra.mxu0 %v296
  %v961 = vpop.f32.mrf.mxu0
  %v962 = vadd.f32 %v929, %v961
  %v963 = vpop.f32.mrf.mxu0
  %v964 = vadd.f32 %v931, %v963
  %965 = vmatmul.bf16.gmra.mxu0 %v304
  %v966 = vpop.f32.mrf.mxu0
  %v967 = vadd.f32 %v934, %v966
  %v968 = vpop.f32.mrf.mxu0
  %v969 = vadd.f32 %v936, %v968
  %970 = vmatmul.bf16.gmra.mxu0 %v312
  %v971 = vpop.f32.mrf.mxu0
  %v972 = vadd.f32 %v939, %v971
  %v973 = vpop.f32.mrf.mxu0
  %v974 = vadd.f32 %v941, %v973
  %975 = vmatmul.bf16.gmra.mxu0 %v320
  %v976 = vpop.f32.mrf.mxu0
  %v977 = vadd.f32 %v944, %v976
  %v978 = vpop.f32.mrf.mxu0
  %v979 = vadd.f32 %v946, %v978
  %980 = vmatmul.bf16.gmra.mxu0 %v328
  %v981 = vpop.f32.mrf.mxu0
  %v982 = vadd.f32 %v949, %v981
  %v983 = vpop.f32.mrf.mxu0
  %984 = vdwg.mxu0
  %985 = vmatpush.bf16.msra.mxu0 %v689
  %986 = vmatpush.bf16.msra.mxu0 %v688
  %987 = vmatpush.bf16.msra.mxu0 %v687
  %988 = vmatpush.bf16.msra.mxu0 %v686
  %989 = vmatpush.bf16.msra.mxu0 %v685
  %990 = vmatpush.bf16.msra.mxu0 %v684
  %991 = vmatpush.bf16.msra.mxu0 %v683
  %992 = vmatpush.bf16.msra.mxu0 %v682
  %993 = vmatmul.bf16.gmra.mxu0 %v297
  %v994 = vpop.f32.mrf.mxu0
  %v995 = vadd.f32 %v962, %v994
  %v996 = vpop.f32.mrf.mxu0
  %v997 = vadd.f32 %v964, %v996
  %998 = vmatmul.bf16.gmra.mxu0 %v305
  %v999 = vpop.f32.mrf.mxu0
  %v1000 = vadd.f32 %v967, %v999
  %v1001 = vpop.f32.mrf.mxu0
  %v1002 = vadd.f32 %v969, %v1001
  %1003 = vmatmul.bf16.gmra.mxu0 %v313
  %v1004 = vpop.f32.mrf.mxu0
  %v1005 = vadd.f32 %v972, %v1004
  %v1006 = vpop.f32.mrf.mxu0
  %v1007 = vadd.f32 %v974, %v1006
  %1008 = vmatmul.bf16.gmra.mxu0 %v321
  %v1009 = vpop.f32.mrf.mxu0
  %v1010 = vadd.f32 %v977, %v1009
  %v1011 = vpop.f32.mrf.mxu0
  %v1012 = vadd.f32 %v979, %v1011
  %1013 = vmatmul.bf16.gmra.mxu0 %v329
  %v1014 = vpop.f32.mrf.mxu0
  %v1015 = vadd.f32 %v982, %v1014
  %v1016 = vpop.f32.mrf.mxu0
  %1017 = vdwg.mxu0
  %v1018 = vmax.f32 %v995, 0.0
  %v1019 = vmax.f32 %v997, 0.0
  %v1020 = vmax.f32 %v1000, 0.0
  %v1021 = vmax.f32 %v1002, 0.0
  %v1022 = vmax.f32 %v1005, 0.0
  %v1023 = vmax.f32 %v1007, 0.0
  %v1024 = vmax.f32 %v1010, 0.0
  %v1025 = vmax.f32 %v1012, 0.0
  %v1026 = vmax.f32 %v1015, 0.0
  %1027 = vst [vmem:[%s3] sm:$0xff] %v1018
  %1028 = vst [vmem:[%s3 + $0x8] sm:$0xff] %v1019
  %1029 = vst [vmem:[%s3 + $0x10] sm:$0xff] %v1020
  %1030 = vst [vmem:[%s3 + $0x18] sm:$0xff] %v1021
  %1031 = vst [vmem:[%s3 + $0x20] sm:$0xff] %v1022
  %1032 = vst [vmem:[%s3 + $0x28] sm:$0xff] %v1023
  %1033 = vst [vmem:[%s3 + $0x30] sm:$0xff] %v1024
  %1034 = vst [vmem:[%s3 + $0x38] sm:$0xff] %v1025
  %1035 = vst [vmem:[%s3 + $0x40] sm:$0xff] %v1026
  // Predicated region
  $region14: #{encoder.7} parent=0 // pred_check
    _
  $region15: #{encoder.7} parent=0 // pred_check_branch
    %1037 = sbr.rel (0) target = $region17
  $region16: #{encoder.7} parent=0 // pred_region
    _
  $region17: #{encoder.7} parent=0 // pred_fallthru
    _
  // Predicated region
  $region18: #{encoder.7} parent=0 // pred_check
    _
  $region19: #{encoder.7} parent=0 // pred_check_branch
    %1039 = sbr.rel (0) target = $region21
  $region20: #{encoder.7} parent=0 // pred_region
    _
  $region21: #{encoder.7} parent=0 // pred_fallthru
    _

// kernel: encoder.8
$region0: #{encoder.8}
  #allocation0 [shape = 'u32[]', space=smem, size = 0x4, offset = 0x4, fixed_abs, tag = 'smem constant byte address 0x4 - core index']
  #allocation1 [shape = 'u32[72,128]{1,0:T(1,128)}', space=vmem, size = 0x9000, scoped, tag = 'internal scratch']
  %s0 = inlined_call_operand.vmem [shape: bf16[8,2048], index: 0, kind: input, shape index: {}]
  %s1 = inlined_call_operand.vmem [shape: bf16[2048,256], index: 1, kind: input, shape index: {}]
  %s2 = inlined_call_operand.vmem [shape: f32[1,256], index: 2, kind: input, shape index: {}]
  %s3 = inlined_call_operand.vmem [shape: f32[8,256], index: 3, kind: output, shape index: {}]
  %s4 = sld [smem:[#allocation0]]
  $region22: #{encoder.8} parent=0
    _
  %s6 = ssub.s32 1, %s4
  %s7 = scalar_select 0, %s6, %s4
  // Predicated region
  $region2: #{encoder.8} parent=0 // pred_check
    _
  $region3: #{encoder.8} parent=0 // pred_check_branch
    %9 = sbr.rel (0) target = $region5
  $region4: #{encoder.8} parent=0 // pred_region
    _
  $region5: #{encoder.8} parent=0 // pred_fallthru
    _
  // Predicated region
  $region6: #{encoder.8} parent=0 // pred_check
    _
  $region7: #{encoder.8} parent=0 // pred_check_branch
    %11 = sbr.rel (0) target = $region9
  $region8: #{encoder.8} parent=0 // pred_region
    _
  $region9: #{encoder.8} parent=0 // pred_fallthru
    _
  // Predicated region
  $region10: #{encoder.8} parent=0 // pred_check
    _
  $region11: #{encoder.8} parent=0 // pred_check_branch
    %13 = sbr.rel (0) target = $region13
  $region12: #{encoder.8} parent=0 // pred_region
    _
  $region13: #{encoder.8} parent=0 // pred_fallthru
    _
  %v14 = vld [vmem:[%s0] sm:$0xff]
  %v15 = vld [vmem:[%s0 + $0x8] sm:$0xff]
  %v16 = vld [vmem:[%s0 + $0x10] sm:$0xff]
  %v17 = vld [vmem:[%s0 + $0x18] sm:$0xff]
  %v18 = vld [vmem:[%s0 + $0x20] sm:$0xff]
  %v19 = vld [vmem:[%s0 + $0x28] sm:$0xff]
  %v20 = vld [vmem:[%s0 + $0x30] sm:$0xff]
  %v21 = vld [vmem:[%s0 + $0x38] sm:$0xff]
  %v22 = vld [vmem:[%s1] sm:$0xff]
  %v23 = vld [vmem:[%s1 + $0x8] sm:$0xff]
  %v24 = vld [vmem:[%s1 + $0x10] sm:$0xff]
  %v25 = vld [vmem:[%s1 + $0x18] sm:$0xff]
  %v26 = vld [vmem:[%s1 + $0x20] sm:$0xff]
  %v27 = vld [vmem:[%s1 + $0x28] sm:$0xff]
  %v28 = vld [vmem:[%s1 + $0x30] sm:$0xff]
  %v29 = vld [vmem:[%s1 + $0x38] sm:$0xff]
  %v30 = vld [vmem:[%s1 + $0x40] sm:$0xff]
  %v31 = vld [vmem:[%s1 + $0x48] sm:$0xff]
  %v32 = vld [vmem:[%s1 + $0x50] sm:$0xff]
  %v33 = vld [vmem:[%s1 + $0x58] sm:$0xff]
  %v34 = vld [vmem:[%s1 + $0x60] sm:$0xff]
  %v35 = vld [vmem:[%s1 + $0x68] sm:$0xff]
  %v36 = vld [vmem:[%s1 + $0x70] sm:$0xff]
  %v37 = vld [vmem:[%s1 + $0x78] sm:$0xff]
  %v38 = vld [vmem:[%s1 + $0x80] sm:$0xff]
  %v39 = vld [vmem:[%s1 + $0x88] sm:$0xff]
  %v40 = vld [vmem:[%s1 + $0x90] sm:$0xff]
  %v41 = vld [vmem:[%s1 + $0x98] sm:$0xff]
  %v42 = vld [vmem:[%s1 + $0xa0] sm:$0xff]
  %v43 = vld [vmem:[%s1 + $0xa8] sm:$0xff]
  %v44 = vld [vmem:[%s1 + $0xb0] sm:$0xff]
  %v45 = vld [vmem:[%s1 + $0xb8] sm:$0xff]
  %v46 = vld [vmem:[%s1 + $0xc0] sm:$0xff]
  %v47 = vld [vmem:[%s1 + $0xc8] sm:$0xff]
  %v48 = vld [vmem:[%s1 + $0xd0] sm:$0xff]
  %v49 = vld [vmem:[%s1 + $0xd8] sm:$0xff]
  %v50 = vld [vmem:[%s1 + $0xe0] sm:$0xff]
  %v51 = vld [vmem:[%s1 + $0xe8] sm:$0xff]
  %v52 = vld [vmem:[%s1 + $0xf0] sm:$0xff]
  %v53 = vld [vmem:[%s1 + $0xf8] sm:$0xff]
  %v54 = vld [vmem:[%s1 + $0x100] sm:$0xff]
  %v55 = vld [vmem:[%s1 + $0x108] sm:$0xff]
  %v56 = vld [vmem:[%s1 + $0x110] sm:$0xff]
  %v57 = vld [vmem:[%s1 + $0x118] sm:$0xff]
  %v58 = vld [vmem:[%s1 + $0x120] sm:$0xff]
  %v59 = vld [vmem:[%s1 + $0x128] sm:$0xff]
  %v60 = vld [vmem:[%s1 + $0x130] sm:$0xff]
  %v61 = vld [vmem:[%s1 + $0x138] sm:$0xff]
  %v62 = vld [vmem:[%s1 + $0x140] sm:$0xff]
  %v63 = vld [vmem:[%s1 + $0x148] sm:$0xff]
  %v64 = vld [vmem:[%s1 + $0x150] sm:$0xff]
  %v65 = vld [vmem:[%s1 + $0x158] sm:$0xff]
  %v66 = vld [vmem:[%s1 + $0x160] sm:$0xff]
  %v67 = vld [vmem:[%s1 + $0x168] sm:$0xff]
  %v68 = vld [vmem:[%s1 + $0x170] sm:$0xff]
  %v69 = vld [vmem:[%s1 + $0x178] sm:$0xff]
  %v70 = vld [vmem:[%s1 + $0x180] sm:$0xff]
  %v71 = vld [vmem:[%s1 + $0x188] sm:$0xff]
  %v72 = vld [vmem:[%s1 + $0x190] sm:$0xff]
  %v73 = vld [vmem:[%s1 + $0x198] sm:$0xff]
  %v74 = vld [vmem:[%s1 + $0x1a0] sm:$0xff]
  %v75 = vld [vmem:[%s1 + $0x1a8] sm:$0xff]
  %v76 = vld [vmem:[%s1 + $0x1b0] sm:$0xff]
  %v77 = vld [vmem:[%s1 + $0x1b8] sm:$0xff]
  %v78 = vld [vmem:[%s1 + $0x1c0] sm:$0xff]
  %v79 = vld [vmem:[%s1 + $0x1c8] sm:$0xff]
  %v80 = vld [vmem:[%s1 + $0x1d0] sm:$0xff]
  %v81 = vld [vmem:[%s1 + $0x1d8] sm:$0xff]
  %v82 = vld [vmem:[%s1 + $0x1e0] sm:$0xff]
  %v83 = vld [vmem:[%s1 + $0x1e8] sm:$0xff]
  %v84 = vld [vmem:[%s1 + $0x1f0] sm:$0xff]
  %v85 = vld [vmem:[%s1 + $0x1f8] sm:$0xff]
  %v86 = vld [vmem:[%s1 + $0x200] sm:$0xff]
  %v87 = vld [vmem:[%s1 + $0x208] sm:$0xff]
  %v88 = vld [vmem:[%s1 + $0x210] sm:$0xff]
  %v89 = vld [vmem:[%s1 + $0x218] sm:$0xff]
  %v90 = vld [vmem:[%s1 + $0x220] sm:$0xff]
  %v91 = vld [vmem:[%s1 + $0x228] sm:$0xff]
  %v92 = vld [vmem:[%s1 + $0x230] sm:$0xff]
  %v93 = vld [vmem:[%s1 + $0x238] sm:$0xff]
  %v94 = vld [vmem:[%s1 + $0x240] sm:$0xff]
  %v95 = vld [vmem:[%s1 + $0x248] sm:$0xff]
  %v96 = vld [vmem:[%s1 + $0x250] sm:$0xff]
  %v97 = vld [vmem:[%s1 + $0x258] sm:$0xff]
  %v98 = vld [vmem:[%s1 + $0x260] sm:$0xff]
  %v99 = vld [vmem:[%s1 + $0x268] sm:$0xff]
  %v100 = vld [vmem:[%s1 + $0x270] sm:$0xff]
  %v101 = vld [vmem:[%s1 + $0x278] sm:$0xff]
  %v102 = vld [vmem:[%s1 + $0x280] sm:$0xff]
  %v103 = vld [vmem:[%s1 + $0x288] sm:$0xff]
  %v104 = vld [vmem:[%s1 + $0x290] sm:$0xff]
  %v105 = vld [vmem:[%s1 + $0x298] sm:$0xff]
  %v106 = vld [vmem:[%s1 + $0x2a0] sm:$0xff]
  %v107 = vld [vmem:[%s1 + $0x2a8] sm:$0xff]
  %v108 = vld [vmem:[%s1 + $0x2b0] sm:$0xff]
  %v109 = vld [vmem:[%s1 + $0x2b8] sm:$0xff]
  %v110 = vld [vmem:[%s1 + $0x2c0] sm:$0xff]
  %v111 = vld [vmem:[%s1 + $0x2c8] sm:$0xff]
  %v112 = vld [vmem:[%s1 + $0x2d0] sm:$0xff]
  %v113 = vld [vmem:[%s1 + $0x2d8] sm:$0xff]
  %v114 = vld [vmem:[%s1 + $0x2e0] sm:$0xff]
  %v115 = vld [vmem:[%s1 + $0x2e8] sm:$0xff]
  %v116 = vld [vmem:[%s1 + $0x2f0] sm:$0xff]
  %v117 = vld [vmem:[%s1 + $0x2f8] sm:$0xff]
  %v118 = vld [vmem:[%s1 + $0x300] sm:$0xff]
  %v119 = vld [vmem:[%s1 + $0x308] sm:$0xff]
  %v120 = vld [vmem:[%s1 + $0x310] sm:$0xff]
  %v121 = vld [vmem:[%s1 + $0x318] sm:$0xff]
  %v122 = vld [vmem:[%s1 + $0x320] sm:$0xff]
  %v123 = vld [vmem:[%s1 + $0x328] sm:$0xff]
  %v124 = vld [vmem:[%s1 + $0x330] sm:$0xff]
  %v125 = vld [vmem:[%s1 + $0x338] sm:$0xff]
  %v126 = vld [vmem:[%s1 + $0x340] sm:$0xff]
  %v127 = vld [vmem:[%s1 + $0x348] sm:$0xff]
  %v128 = vld [vmem:[%s1 + $0x350] sm:$0xff]
  %v129 = vld [vmem:[%s1 + $0x358] sm:$0xff]
  %v130 = vld [vmem:[%s1 + $0x360] sm:$0xff]
  %v131 = vld [vmem:[%s1 + $0x368] sm:$0xff]
  %v132 = vld [vmem:[%s1 + $0x370] sm:$0xff]
  %v133 = vld [vmem:[%s1 + $0x378] sm:$0xff]
  %v134 = vld [vmem:[%s1 + $0x380] sm:$0xff]
  %v135 = vld [vmem:[%s1 + $0x388] sm:$0xff]
  %v136 = vld [vmem:[%s1 + $0x390] sm:$0xff]
  %v137 = vld [vmem:[%s1 + $0x398] sm:$0xff]
  %v138 = vld [vmem:[%s1 + $0x3a0] sm:$0xff]
  %v139 = vld [vmem:[%s1 + $0x3a8] sm:$0xff]
  %v140 = vld [vmem:[%s1 + $0x3b0] sm:$0xff]
  %v141 = vld [vmem:[%s1 + $0x3b8] sm:$0xff]
  %v142 = vld [vmem:[%s1 + $0x3c0] sm:$0xff]
  %v143 = vld [vmem:[%s1 + $0x3c8] sm:$0xff]
  %v144 = vld [vmem:[%s1 + $0x3d0] sm:$0xff]
  %v145 = vld [vmem:[%s1 + $0x3d8] sm:$0xff]
  %v146 = vld [vmem:[%s1 + $0x3e0] sm:$0xff]
  %v147 = vld [vmem:[%s1 + $0x3e8] sm:$0xff]
  %v148 = vld [vmem:[%s1 + $0x3f0] sm:$0xff]
  %v149 = vld [vmem:[%s1 + $0x3f8] sm:$0xff]
  %v150 = vld [vmem:[%s1 + $0x400] sm:$0xff]
  %v151 = vld [vmem:[%s1 + $0x408] sm:$0xff]
  %v152 = vld [vmem:[%s1 + $0x410] sm:$0xff]
  %v153 = vld [vmem:[%s1 + $0x418] sm:$0xff]
  %v154 = vld [vmem:[%s1 + $0x420] sm:$0xff]
  %v155 = vld [vmem:[%s1 + $0x428] sm:$0xff]
  %v156 = vld [vmem:[%s1 + $0x430] sm:$0xff]
  %v157 = vld [vmem:[%s1 + $0x438] sm:$0xff]
  %v158 = vld [vmem:[%s1 + $0x440] sm:$0xff]
  %v159 = vld [vmem:[%s1 + $0x448] sm:$0xff]
  %v160 = vld [vmem:[%s1 + $0x450] sm:$0xff]
  %v161 = vld [vmem:[%s1 + $0x458] sm:$0xff]
  %v162 = vld [vmem:[%s1 + $0x460] sm:$0xff]
  %v163 = vld [vmem:[%s1 + $0x468] sm:$0xff]
  %v164 = vld [vmem:[%s1 + $0x470] sm:$0xff]
  %v165 = vld [vmem:[%s1 + $0x478] sm:$0xff]
  %v166 = vld [vmem:[%s1 + $0x480] sm:$0xff]
  %v167 = vld [vmem:[%s1 + $0x488] sm:$0xff]
  %v168 = vld [vmem:[%s1 + $0x490] sm:$0xff]
  %v169 = vld [vmem:[%s1 + $0x498] sm:$0xff]
  %v170 = vld [vmem:[%s1 + $0x4a0] sm:$0xff]
  %v171 = vld [vmem:[%s1 + $0x4a8] sm:$0xff]
  %v172 = vld [vmem:[%s1 + $0x4b0] sm:$0xff]
  %v173 = vld [vmem:[%s1 + $0x4b8] sm:$0xff]
  %v174 = vld [vmem:[%s1 + $0x4c0] sm:$0xff]
  %v175 = vld [vmem:[%s1 + $0x4c8] sm:$0xff]
  %v176 = vld [vmem:[%s1 + $0x4d0] sm:$0xff]
  %v177 = vld [vmem:[%s1 + $0x4d8] sm:$0xff]
  %v178 = vld [vmem:[%s1 + $0x4e0] sm:$0xff]
  %v179 = vld [vmem:[%s1 + $0x4e8] sm:$0xff]
  %v180 = vld [vmem:[%s1 + $0x4f0] sm:$0xff]
  %v181 = vld [vmem:[%s1 + $0x4f8] sm:$0xff]
  %v182 = vld [vmem:[%s1 + $0x500] sm:$0xff]
  %v183 = vld [vmem:[%s1 + $0x508] sm:$0xff]
  %v184 = vld [vmem:[%s1 + $0x510] sm:$0xff]
  %v185 = vld [vmem:[%s1 + $0x518] sm:$0xff]
  %v186 = vld [vmem:[%s1 + $0x520] sm:$0xff]
  %v187 = vld [vmem:[%s1 + $0x528] sm:$0xff]
  %v188 = vld [vmem:[%s1 + $0x530] sm:$0xff]
  %v189 = vld [vmem:[%s1 + $0x538] sm:$0xff]
  %v190 = vld [vmem:[%s1 + $0x540] sm:$0xff]
  %v191 = vld [vmem:[%s1 + $0x548] sm:$0xff]
  %v192 = vld [vmem:[%s1 + $0x550] sm:$0xff]
  %v193 = vld [vmem:[%s1 + $0x558] sm:$0xff]
  %v194 = vld [vmem:[%s1 + $0x560] sm:$0xff]
  %v195 = vld [vmem:[%s1 + $0x568] sm:$0xff]
  %v196 = vld [vmem:[%s1 + $0x570] sm:$0xff]
  %v197 = vld [vmem:[%s1 + $0x578] sm:$0xff]
  %v198 = vld [vmem:[%s1 + $0x580] sm:$0xff]
  %v199 = vld [vmem:[%s1 + $0x588] sm:$0xff]
  %v200 = vld [vmem:[%s1 + $0x590] sm:$0xff]
  %v201 = vld [vmem:[%s1 + $0x598] sm:$0xff]
  %v202 = vld [vmem:[%s1 + $0x5a0] sm:$0xff]
  %v203 = vld [vmem:[%s1 + $0x5a8] sm:$0xff]
  %v204 = vld [vmem:[%s1 + $0x5b0] sm:$0xff]
  %v205 = vld [vmem:[%s1 + $0x5b8] sm:$0xff]
  %v206 = vld [vmem:[%s1 + $0x5c0] sm:$0xff]
  %v207 = vld [vmem:[%s1 + $0x5c8] sm:$0xff]
  %v208 = vld [vmem:[%s1 + $0x5d0] sm:$0xff]
  %v209 = vld [vmem:[%s1 + $0x5d8] sm:$0xff]
  %v210 = vld [vmem:[%s1 + $0x5e0] sm:$0xff]
  %v211 = vld [vmem:[%s1 + $0x5e8] sm:$0xff]
  %v212 = vld [vmem:[%s1 + $0x5f0] sm:$0xff]
  %v213 = vld [vmem:[%s1 + $0x5f8] sm:$0xff]
  %v214 = vld [vmem:[%s1 + $0x600] sm:$0xff]
  %v215 = vld [vmem:[%s1 + $0x608] sm:$0xff]
  %v216 = vld [vmem:[%s1 + $0x610] sm:$0xff]
  %v217 = vld [vmem:[%s1 + $0x618] sm:$0xff]
  %v218 = vld [vmem:[%s1 + $0x620] sm:$0xff]
  %v219 = vld [vmem:[%s1 + $0x628] sm:$0xff]
  %v220 = vld [vmem:[%s1 + $0x630] sm:$0xff]
  %v221 = vld [vmem:[%s1 + $0x638] sm:$0xff]
  %v222 = vld [vmem:[%s1 + $0x640] sm:$0xff]
  %v223 = vld [vmem:[%s1 + $0x648] sm:$0xff]
  %v224 = vld [vmem:[%s1 + $0x650] sm:$0xff]
  %v225 = vld [vmem:[%s1 + $0x658] sm:$0xff]
  %v226 = vld [vmem:[%s1 + $0x660] sm:$0xff]
  %v227 = vld [vmem:[%s1 + $0x668] sm:$0xff]
  %v228 = vld [vmem:[%s1 + $0x670] sm:$0xff]
  %v229 = vld [vmem:[%s1 + $0x678] sm:$0xff]
  %v230 = vld [vmem:[%s1 + $0x680] sm:$0xff]
  %v231 = vld [vmem:[%s1 + $0x688] sm:$0xff]
  %v232 = vld [vmem:[%s1 + $0x690] sm:$0xff]
  %v233 = vld [vmem:[%s1 + $0x698] sm:$0xff]
  %v234 = vld [vmem:[%s1 + $0x6a0] sm:$0xff]
  %v235 = vld [vmem:[%s1 + $0x6a8] sm:$0xff]
  %v236 = vld [vmem:[%s1 + $0x6b0] sm:$0xff]
  %v237 = vld [vmem:[%s1 + $0x6b8] sm:$0xff]
  %v238 = vld [vmem:[%s1 + $0x6c0] sm:$0xff]
  %v239 = vld [vmem:[%s1 + $0x6c8] sm:$0xff]
  %v240 = vld [vmem:[%s1 + $0x6d0] sm:$0xff]
  %v241 = vld [vmem:[%s1 + $0x6d8] sm:$0xff]
  %v242 = vld [vmem:[%s1 + $0x6e0] sm:$0xff]
  %v243 = vld [vmem:[%s1 + $0x6e8] sm:$0xff]
  %v244 = vld [vmem:[%s1 + $0x6f0] sm:$0xff]
  %v245 = vld [vmem:[%s1 + $0x6f8] sm:$0xff]
  %v246 = vld [vmem:[%s1 + $0x700] sm:$0xff]
  %v247 = vld [vmem:[%s1 + $0x708] sm:$0xff]
  %v248 = vld [vmem:[%s1 + $0x710] sm:$0xff]
  %v249 = vld [vmem:[%s1 + $0x718] sm:$0xff]
  %v250 = vld [vmem:[%s1 + $0x720] sm:$0xff]
  %v251 = vld [vmem:[%s1 + $0x728] sm:$0xff]
  %v252 = vld [vmem:[%s1 + $0x730] sm:$0xff]
  %v253 = vld [vmem:[%s1 + $0x738] sm:$0xff]
  %v254 = vld [vmem:[%s1 + $0x740] sm:$0xff]
  %v255 = vld [vmem:[%s1 + $0x748] sm:$0xff]
  %v256 = vld [vmem:[%s1 + $0x750] sm:$0xff]
  %v257 = vld [vmem:[%s1 + $0x758] sm:$0xff]
  %v258 = vld [vmem:[%s1 + $0x760] sm:$0xff]
  %v259 = vld [vmem:[%s1 + $0x768] sm:$0xff]
  %v260 = vld [vmem:[%s1 + $0x770] sm:$0xff]
  %v261 = vld [vmem:[%s1 + $0x778] sm:$0xff]
  %v262 = vld [vmem:[%s1 + $0x780] sm:$0xff]
  %v263 = vld [vmem:[%s1 + $0x788] sm:$0xff]
  %v264 = vld [vmem:[%s1 + $0x790] sm:$0xff]
  %v265 = vld [vmem:[%s1 + $0x798] sm:$0xff]
  %v266 = vld [vmem:[%s1 + $0x7a0] sm:$0xff]
  %v267 = vld [vmem:[%s1 + $0x7a8] sm:$0xff]
  %v268 = vld [vmem:[%s1 + $0x7b0] sm:$0xff]
  %v269 = vld [vmem:[%s1 + $0x7b8] sm:$0xff]
  %v270 = vld [vmem:[%s1 + $0x7c0] sm:$0xff]
  %v271 = vld [vmem:[%s1 + $0x7c8] sm:$0xff]
  %v272 = vld [vmem:[%s1 + $0x7d0] sm:$0xff]
  %v273 = vld [vmem:[%s1 + $0x7d8] sm:$0xff]
  %v274 = vld [vmem:[%s1 + $0x7e0] sm:$0xff]
  %v275 = vld [vmem:[%s1 + $0x7e8] sm:$0xff]
  %v276 = vld [vmem:[%s1 + $0x7f0] sm:$0xff]
  %v277 = vld [vmem:[%s1 + $0x7f8] sm:$0xff]
  %v278 = vld [vmem:[%s2] sm:$0x3]
  %v280 = vperm.slane %v278, 0
  %v281 = vperm.slane %v278, 1
  %v292 = vunpack.c.l.b16 %v14
  %v293 = vunpack.c.h.b16 %v14
  %v294 = vunpack.c.l.b16 %v15
  %v295 = vunpack.c.h.b16 %v15
  %v296 = vunpack.c.l.b16 %v16
  %v297 = vunpack.c.h.b16 %v16
  %v298 = vunpack.c.l.b16 %v17
  %v299 = vunpack.c.h.b16 %v17
  %v300 = vunpack.c.l.b16 %v18
  %v301 = vunpack.c.h.b16 %v18
  %v302 = vunpack.c.l.b16 %v19
  %v303 = vunpack.c.h.b16 %v19
  %v304 = vunpack.c.l.b16 %v20
  %v305 = vunpack.c.h.b16 %v20
  %v306 = vunpack.c.l.b16 %v21
  %v307 = vunpack.c.h.b16 %v21
  %v308 = vpack.c.b16 %v292, %v292
  %v309 = vpack.c.b16 %v293, %v293
  %v310 = vpack.c.b16 %v294, %v294
  %v311 = vpack.c.b16 %v295, %v295
  %v312 = vpack.c.b16 %v296, %v296
  %v313 = vpack.c.b16 %v297, %v297
  %v314 = vpack.c.b16 %v298, %v298
  %v315 = vpack.c.b16 %v299, %v299
  %v316 = vpack.c.b16 %v300, %v300
  %v317 = vpack.c.b16 %v301, %v301
  %v318 = vpack.c.b16 %v302, %v302
  %v319 = vpack.c.b16 %v303, %v303
  %v320 = vpack.c.b16 %v304, %v304
  %v321 = vpack.c.b16 %v305, %v305
  %v322 = vpack.c.b16 %v306, %v306
  %v323 = vpack.c.b16 %v307, %v307
  %v596 = vunpack.c.l.b16 %v22
  %v597 = vunpack.c.h.b16 %v22
  %v598 = vunpack.c.l.b16 %v23
  %v599 = vunpack.c.h.b16 %v23
  %v600 = vunpack.c.l.b16 %v24
  %v601 = vunpack.c.h.b16 %v24
  %v602 = vunpack.c.l.b16 %v25
  %v603 = vunpack.c.h.b16 %v25
  %v604 = vunpack.c.l.b16 %v26
  %v605 = vunpack.c.h.b16 %v26
  %v606 = vunpack.c.l.b16 %v27
  %v607 = vunpack.c.h.b16 %v27
  %v608 = vunpack.c.l.b16 %v28
  %v609 = vunpack.c.h.b16 %v28
  %v610 = vunpack.c.l.b16 %v29
  %v611 = vunpack.c.h.b16 %v29
  %v612 = vunpack.c.l.b16 %v30
  %v613 = vunpack.c.h.b16 %v30
  %v614 = vunpack.c.l.b16 %v31
  %v615 = vunpack.c.h.b16 %v31
  %v616 = vunpack.c.l.b16 %v32
  %v617 = vunpack.c.h.b16 %v32
  %v618 = vunpack.c.l.b16 %v33
  %v619 = vunpack.c.h.b16 %v33
  %v620 = vunpack.c.l.b16 %v34
  %v621 = vunpack.c.h.b16 %v34
  %v622 = vunpack.c.l.b16 %v35
  %v623 = vunpack.c.h.b16 %v35
  %v624 = vunpack.c.l.b16 %v36
  %v625 = vunpack.c.h.b16 %v36
  %v626 = vunpack.c.l.b16 %v37
  %v627 = vunpack.c.h.b16 %v37
  %v628 = vunpack.c.l.b16 %v38
  %v629 = vunpack.c.h.b16 %v38
  %v630 = vunpack.c.l.b16 %v39
  %v631 = vunpack.c.h.b16 %v39
  %v632 = vunpack.c.l.b16 %v40
  %v633 = vunpack.c.h.b16 %v40
  %v634 = vunpack.c.l.b16 %v41
  %v635 = vunpack.c.h.b16 %v41
  %v636 = vunpack.c.l.b16 %v42
  %v637 = vunpack.c.h.b16 %v42
  %v638 = vunpack.c.l.b16 %v43
  %v639 = vunpack.c.h.b16 %v43
  %v640 = vunpack.c.l.b16 %v44
  %v641 = vunpack.c.h.b16 %v44
  %v642 = vunpack.c.l.b16 %v45
  %v643 = vunpack.c.h.b16 %v45
  %v644 = vunpack.c.l.b16 %v46
  %v645 = vunpack.c.h.b16 %v46
  %v646 = vunpack.c.l.b16 %v47
  %v647 = vunpack.c.h.b16 %v47
  %v648 = vunpack.c.l.b16 %v48
  %v649 = vunpack.c.h.b16 %v48
  %v650 = vunpack.c.l.b16 %v49
  %v651 = vunpack.c.h.b16 %v49
  %v652 = vunpack.c.l.b16 %v50
  %v653 = vunpack.c.h.b16 %v50
  %v654 = vunpack.c.l.b16 %v51
  %v655 = vunpack.c.h.b16 %v51
  %v656 = vunpack.c.l.b16 %v52
  %v657 = vunpack.c.h.b16 %v52
  %v658 = vunpack.c.l.b16 %v53
  %v659 = vunpack.c.h.b16 %v53
  %v660 = vunpack.c.l.b16 %v54
  %v661 = vunpack.c.h.b16 %v54
  %v662 = vunpack.c.l.b16 %v55
  %v663 = vunpack.c.h.b16 %v55
  %v664 = vunpack.c.l.b16 %v56
  %v665 = vunpack.c.h.b16 %v56
  %v666 = vunpack.c.l.b16 %v57
  %v667 = vunpack.c.h.b16 %v57
  %v668 = vunpack.c.l.b16 %v58
  %v669 = vunpack.c.h.b16 %v58
  %v670 = vunpack.c.l.b16 %v59
  %v671 = vunpack.c.h.b16 %v59
  %v672 = vunpack.c.l.b16 %v60
  %v673 = vunpack.c.h.b16 %v60
  %v674 = vunpack.c.l.b16 %v61
  %v675 = vunpack.c.h.b16 %v61
  %v676 = vunpack.c.l.b16 %v62
  %v677 = vunpack.c.h.b16 %v62
  %v678 = vunpack.c.l.b16 %v63
  %v679 = vunpack.c.h.b16 %v63
  %v680 = vunpack.c.l.b16 %v64
  %v681 = vunpack.c.h.b16 %v64
  %v682 = vunpack.c.l.b16 %v65
  %v683 = vunpack.c.h.b16 %v65
  %v684 = vunpack.c.l.b16 %v66
  %v685 = vunpack.c.h.b16 %v66
  %v686 = vunpack.c.l.b16 %v67
  %v687 = vunpack.c.h.b16 %v67
  %v688 = vunpack.c.l.b16 %v68
  %v689 = vunpack.c.h.b16 %v68
  %v690 = vunpack.c.l.b16 %v69
  %v691 = vunpack.c.h.b16 %v69
  %v692 = vunpack.c.l.b16 %v70
  %v693 = vunpack.c.h.b16 %v70
  %v694 = vunpack.c.l.b16 %v71
  %v695 = vunpack.c.h.b16 %v71
  %v696 = vunpack.c.l.b16 %v72
  %v697 = vunpack.c.h.b16 %v72
  %v698 = vunpack.c.l.b16 %v73
  %v699 = vunpack.c.h.b16 %v73
  %v700 = vunpack.c.l.b16 %v74
  %v701 = vunpack.c.h.b16 %v74
  %v702 = vunpack.c.l.b16 %v75
  %v703 = vunpack.c.h.b16 %v75
  %v704 = vunpack.c.l.b16 %v76
  %v705 = vunpack.c.h.b16 %v76
  %v706 = vunpack.c.l.b16 %v77
  %v707 = vunpack.c.h.b16 %v77
  %v708 = vunpack.c.l.b16 %v78
  %v709 = vunpack.c.h.b16 %v78
  %v710 = vunpack.c.l.b16 %v79
  %v711 = vunpack.c.h.b16 %v79
  %v712 = vunpack.c.l.b16 %v80
  %v713 = vunpack.c.h.b16 %v80
  %v714 = vunpack.c.l.b16 %v81
  %v715 = vunpack.c.h.b16 %v81
  %v716 = vunpack.c.l.b16 %v82
  %v717 = vunpack.c.h.b16 %v82
  %v718 = vunpack.c.l.b16 %v83
  %v719 = vunpack.c.h.b16 %v83
  %v720 = vunpack.c.l.b16 %v84
  %v721 = vunpack.c.h.b16 %v84
  %v722 = vunpack.c.l.b16 %v85
  %v723 = vunpack.c.h.b16 %v85
  %v724 = vunpack.c.l.b16 %v86
  %v725 = vunpack.c.h.b16 %v86
  %v726 = vunpack.c.l.b16 %v87
  %v727 = vunpack.c.h.b16 %v87
  %v728 = vunpack.c.l.b16 %v88
  %v729 = vunpack.c.h.b16 %v88
  %v730 = vunpack.c.l.b16 %v89
  %v731 = vunpack.c.h.b16 %v89
  %v732 = vunpack.c.l.b16 %v90
  %v733 = vunpack.c.h.b16 %v90
  %v734 = vunpack.c.l.b16 %v91
  %v735 = vunpack.c.h.b16 %v91
  %v736 = vunpack.c.l.b16 %v92
  %v737 = vunpack.c.h.b16 %v92
  %v738 = vunpack.c.l.b16 %v93
  %v739 = vunpack.c.h.b16 %v93
  %v740 = vunpack.c.l.b16 %v94
  %v741 = vunpack.c.h.b16 %v94
  %v742 = vunpack.c.l.b16 %v95
  %v743 = vunpack.c.h.b16 %v95
  %v744 = vunpack.c.l.b16 %v96
  %v745 = vunpack.c.h.b16 %v96
  %v746 = vunpack.c.l.b16 %v97
  %v747 = vunpack.c.h.b16 %v97
  %v748 = vunpack.c.l.b16 %v98
  %v749 = vunpack.c.h.b16 %v98
  %v750 = vunpack.c.l.b16 %v99
  %v751 = vunpack.c.h.b16 %v99
  %v752 = vunpack.c.l.b16 %v100
  %v753 = vunpack.c.h.b16 %v100
  %v754 = vunpack.c.l.b16 %v101
  %v755 = vunpack.c.h.b16 %v101
  %v756 = vunpack.c.l.b16 %v102
  %v757 = vunpack.c.h.b16 %v102
  %v758 = vunpack.c.l.b16 %v103
  %v759 = vunpack.c.h.b16 %v103
  %v760 = vunpack.c.l.b16 %v104
  %v761 = vunpack.c.h.b16 %v104
  %v762 = vunpack.c.l.b16 %v105
  %v763 = vunpack.c.h.b16 %v105
  %v764 = vunpack.c.l.b16 %v106
  %v765 = vunpack.c.h.b16 %v106
  %v766 = vunpack.c.l.b16 %v107
  %v767 = vunpack.c.h.b16 %v107
  %v768 = vunpack.c.l.b16 %v108
  %v769 = vunpack.c.h.b16 %v108
  %v770 = vunpack.c.l.b16 %v109
  %v771 = vunpack.c.h.b16 %v109
  %v772 = vunpack.c.l.b16 %v110
  %v773 = vunpack.c.h.b16 %v110
  %v774 = vunpack.c.l.b16 %v111
  %v775 = vunpack.c.h.b16 %v111
  %v776 = vunpack.c.l.b16 %v112
  %v777 = vunpack.c.h.b16 %v112
  %v778 = vunpack.c.l.b16 %v113
  %v779 = vunpack.c.h.b16 %v113
  %v780 = vunpack.c.l.b16 %v114
  %v781 = vunpack.c.h.b16 %v114
  %v782 = vunpack.c.l.b16 %v115
  %v783 = vunpack.c.h.b16 %v115
  %v784 = vunpack.c.l.b16 %v116
  %v785 = vunpack.c.h.b16 %v116
  %v786 = vunpack.c.l.b16 %v117
  %v787 = vunpack.c.h.b16 %v117
  %v788 = vunpack.c.l.b16 %v118
  %v789 = vunpack.c.h.b16 %v118
  %v790 = vunpack.c.l.b16 %v119
  %v791 = vunpack.c.h.b16 %v119
  %v792 = vunpack.c.l.b16 %v120
  %v793 = vunpack.c.h.b16 %v120
  %v794 = vunpack.c.l.b16 %v121
  %v795 = vunpack.c.h.b16 %v121
  %v796 = vunpack.c.l.b16 %v122
  %v797 = vunpack.c.h.b16 %v122
  %v798 = vunpack.c.l.b16 %v123
  %v799 = vunpack.c.h.b16 %v123
  %v800 = vunpack.c.l.b16 %v124
  %v801 = vunpack.c.h.b16 %v124
  %v802 = vunpack.c.l.b16 %v125
  %v803 = vunpack.c.h.b16 %v125
  %v804 = vunpack.c.l.b16 %v126
  %v805 = vunpack.c.h.b16 %v126
  %v806 = vunpack.c.l.b16 %v127
  %v807 = vunpack.c.h.b16 %v127
  %v808 = vunpack.c.l.b16 %v128
  %v809 = vunpack.c.h.b16 %v128
  %v810 = vunpack.c.l.b16 %v129
  %v811 = vunpack.c.h.b16 %v129
  %v812 = vunpack.c.l.b16 %v130
  %v813 = vunpack.c.h.b16 %v130
  %v814 = vunpack.c.l.b16 %v131
  %v815 = vunpack.c.h.b16 %v131
  %v816 = vunpack.c.l.b16 %v132
  %v817 = vunpack.c.h.b16 %v132
  %v818 = vunpack.c.l.b16 %v133
  %v819 = vunpack.c.h.b16 %v133
  %v820 = vunpack.c.l.b16 %v134
  %v821 = vunpack.c.h.b16 %v134
  %v822 = vunpack.c.l.b16 %v135
  %v823 = vunpack.c.h.b16 %v135
  %v824 = vunpack.c.l.b16 %v136
  %v825 = vunpack.c.h.b16 %v136
  %v826 = vunpack.c.l.b16 %v137
  %v827 = vunpack.c.h.b16 %v137
  %v828 = vunpack.c.l.b16 %v138
  %v829 = vunpack.c.h.b16 %v138
  %v830 = vunpack.c.l.b16 %v139
  %v831 = vunpack.c.h.b16 %v139
  %v832 = vunpack.c.l.b16 %v140
  %v833 = vunpack.c.h.b16 %v140
  %v834 = vunpack.c.l.b16 %v141
  %v835 = vunpack.c.h.b16 %v141
  %v836 = vunpack.c.l.b16 %v142
  %v837 = vunpack.c.h.b16 %v142
  %v838 = vunpack.c.l.b16 %v143
  %v839 = vunpack.c.h.b16 %v143
  %v840 = vunpack.c.l.b16 %v144
  %v841 = vunpack.c.h.b16 %v144
  %v842 = vunpack.c.l.b16 %v145
  %v843 = vunpack.c.h.b16 %v145
  %v844 = vunpack.c.l.b16 %v146
  %v845 = vunpack.c.h.b16 %v146
  %v846 = vunpack.c.l.b16 %v147
  %v847 = vunpack.c.h.b16 %v147
  %v848 = vunpack.c.l.b16 %v148
  %v849 = vunpack.c.h.b16 %v148
  %v850 = vunpack.c.l.b16 %v149
  %v851 = vunpack.c.h.b16 %v149
  %v852 = vunpack.c.l.b16 %v150
  %v853 = vunpack.c.h.b16 %v150
  %v854 = vunpack.c.l.b16 %v151
  %v855 = vunpack.c.h.b16 %v151
  %v856 = vunpack.c.l.b16 %v152
  %v857 = vunpack.c.h.b16 %v152
  %v858 = vunpack.c.l.b16 %v153
  %v859 = vunpack.c.h.b16 %v153
  %v860 = vunpack.c.l.b16 %v154
  %v861 = vunpack.c.h.b16 %v154
  %v862 = vunpack.c.l.b16 %v155
  %v863 = vunpack.c.h.b16 %v155
  %v864 = vunpack.c.l.b16 %v156
  %v865 = vunpack.c.h.b16 %v156
  %v866 = vunpack.c.l.b16 %v157
  %v867 = vunpack.c.h.b16 %v157
  %v868 = vunpack.c.l.b16 %v158
  %v869 = vunpack.c.h.b16 %v158
  %v870 = vunpack.c.l.b16 %v159
  %v871 = vunpack.c.h.b16 %v159
  %v872 = vunpack.c.l.b16 %v160
  %v873 = vunpack.c.h.b16 %v160
  %v874 = vunpack.c.l.b16 %v161
  %v875 = vunpack.c.h.b16 %v161
  %v876 = vunpack.c.l.b16 %v162
  %v877 = vunpack.c.h.b16 %v162
  %v878 = vunpack.c.l.b16 %v163
  %v879 = vunpack.c.h.b16 %v163
  %v880 = vunpack.c.l.b16 %v164
  %v881 = vunpack.c.h.b16 %v164
  %v882 = vunpack.c.l.b16 %v165
  %v883 = vunpack.c.h.b16 %v165
  %v884 = vunpack.c.l.b16 %v166
  %v885 = vunpack.c.h.b16 %v166
  %v886 = vunpack.c.l.b16 %v167
  %v887 = vunpack.c.h.b16 %v167
  %v888 = vunpack.c.l.b16 %v168
  %v889 = vunpack.c.h.b16 %v168
  %v890 = vunpack.c.l.b16 %v169
  %v891 = vunpack.c.h.b16 %v169
  %v892 = vunpack.c.l.b16 %v170
  %v893 = vunpack.c.h.b16 %v170
  %v894 = vunpack.c.l.b16 %v171
  %v895 = vunpack.c.h.b16 %v171
  %v896 = vunpack.c.l.b16 %v172
  %v897 = vunpack.c.h.b16 %v172
  %v898 = vunpack.c.l.b16 %v173
  %v899 = vunpack.c.h.b16 %v173
  %v900 = vunpack.c.l.b16 %v174
  %v901 = vunpack.c.h.b16 %v174
  %v902 = vunpack.c.l.b16 %v175
  %v903 = vunpack.c.h.b16 %v175
  %v904 = vunpack.c.l.b16 %v176
  %v905 = vunpack.c.h.b16 %v176
  %v906 = vunpack.c.l.b16 %v177
  %v907 = vunpack.c.h.b16 %v177
  %v908 = vunpack.c.l.b16 %v178
  %v909 = vunpack.c.h.b16 %v178
  %v910 = vunpack.c.l.b16 %v179
  %v911 = vunpack.c.h.b16 %v179
  %v912 = vunpack.c.l.b16 %v180
  %v913 = vunpack.c.h.b16 %v180
  %v914 = vunpack.c.l.b16 %v181
  %v915 = vunpack.c.h.b16 %v181
  %v916 = vunpack.c.l.b16 %v182
  %v917 = vunpack.c.h.b16 %v182
  %v918 = vunpack.c.l.b16 %v183
  %v919 = vunpack.c.h.b16 %v183
  %v920 = vunpack.c.l.b16 %v184
  %v921 = vunpack.c.h.b16 %v184
  %v922 = vunpack.c.l.b16 %v185
  %v923 = vunpack.c.h.b16 %v185
  %v924 = vunpack.c.l.b16 %v186
  %v925 = vunpack.c.h.b16 %v186
  %v926 = vunpack.c.l.b16 %v187
  %v927 = vunpack.c.h.b16 %v187
  %v928 = vunpack.c.l.b16 %v188
  %v929 = vunpack.c.h.b16 %v188
  %v930 = vunpack.c.l.b16 %v189
  %v931 = vunpack.c.h.b16 %v189
  %v932 = vunpack.c.l.b16 %v190
  %v933 = vunpack.c.h.b16 %v190
  %v934 = vunpack.c.l.b16 %v191
  %v935 = vunpack.c.h.b16 %v191
  %v936 = vunpack.c.l.b16 %v192
  %v937 = vunpack.c.h.b16 %v192
  %v938 = vunpack.c.l.b16 %v193
  %v939 = vunpack.c.h.b16 %v193
  %v940 = vunpack.c.l.b16 %v194
  %v941 = vunpack.c.h.b16 %v194
  %v942 = vunpack.c.l.b16 %v195
  %v943 = vunpack.c.h.b16 %v195
  %v944 = vunpack.c.l.b16 %v196
  %v945 = vunpack.c.h.b16 %v196
  %v946 = vunpack.c.l.b16 %v197
  %v947 = vunpack.c.h.b16 %v197
  %v948 = vunpack.c.l.b16 %v198
  %v949 = vunpack.c.h.b16 %v198
  %v950 = vunpack.c.l.b16 %v199
  %v951 = vunpack.c.h.b16 %v199
  %v952 = vunpack.c.l.b16 %v200
  %v953 = vunpack.c.h.b16 %v200
  %v954 = vunpack.c.l.b16 %v201
  %v955 = vunpack.c.h.b16 %v201
  %v956 = vunpack.c.l.b16 %v202
  %v957 = vunpack.c.h.b16 %v202
  %v958 = vunpack.c.l.b16 %v203
  %v959 = vunpack.c.h.b16 %v203
  %v960 = vunpack.c.l.b16 %v204
  %v961 = vunpack.c.h.b16 %v204
  %v962 = vunpack.c.l.b16 %v205
  %v963 = vunpack.c.h.b16 %v205
  %v964 = vunpack.c.l.b16 %v206
  %v965 = vunpack.c.h.b16 %v206
  %v966 = vunpack.c.l.b16 %v207
  %v967 = vunpack.c.h.b16 %v207
  %v968 = vunpack.c.l.b16 %v208
  %v969 = vunpack.c.h.b16 %v208
  %v970 = vunpack.c.l.b16 %v209
  %v971 = vunpack.c.h.b16 %v209
  %v972 = vunpack.c.l.b16 %v210
  %v973 = vunpack.c.h.b16 %v210
  %v974 = vunpack.c.l.b16 %v211
  %v975 = vunpack.c.h.b16 %v211
  %v976 = vunpack.c.l.b16 %v212
  %v977 = vunpack.c.h.b16 %v212
  %v978 = vunpack.c.l.b16 %v213
  %v979 = vunpack.c.h.b16 %v213
  %v980 = vunpack.c.l.b16 %v214
  %v981 = vunpack.c.h.b16 %v214
  %v982 = vunpack.c.l.b16 %v215
  %v983 = vunpack.c.h.b16 %v215
  %v984 = vunpack.c.l.b16 %v216
  %v985 = vunpack.c.h.b16 %v216
  %v986 = vunpack.c.l.b16 %v217
  %v987 = vunpack.c.h.b16 %v217
  %v988 = vunpack.c.l.b16 %v218
  %v989 = vunpack.c.h.b16 %v218
  %v990 = vunpack.c.l.b16 %v219
  %v991 = vunpack.c.h.b16 %v219
  %v992 = vunpack.c.l.b16 %v220
  %v993 = vunpack.c.h.b16 %v220
  %v994 = vunpack.c.l.b16 %v221
  %v995 = vunpack.c.h.b16 %v221
  %v996 = vunpack.c.l.b16 %v222
  %v997 = vunpack.c.h.b16 %v222
  %v998 = vunpack.c.l.b16 %v223
  %v999 = vunpack.c.h.b16 %v223
  %v1000 = vunpack.c.l.b16 %v224
  %v1001 = vunpack.c.h.b16 %v224
  %v1002 = vunpack.c.l.b16 %v225
  %v1003 = vunpack.c.h.b16 %v225
  %v1004 = vunpack.c.l.b16 %v226
  %v1005 = vunpack.c.h.b16 %v226
  %v1006 = vunpack.c.l.b16 %v227
  %v1007 = vunpack.c.h.b16 %v227
  %v1008 = vunpack.c.l.b16 %v228
  %v1009 = vunpack.c.h.b16 %v228
  %v1010 = vunpack.c.l.b16 %v229
  %v1011 = vunpack.c.h.b16 %v229
  %v1012 = vunpack.c.l.b16 %v230
  %v1013 = vunpack.c.h.b16 %v230
  %v1014 = vunpack.c.l.b16 %v231
  %v1015 = vunpack.c.h.b16 %v231
  %v1016 = vunpack.c.l.b16 %v232
  %v1017 = vunpack.c.h.b16 %v232
  %v1018 = vunpack.c.l.b16 %v233
  %v1019 = vunpack.c.h.b16 %v233
  %v1020 = vunpack.c.l.b16 %v234
  %v1021 = vunpack.c.h.b16 %v234
  %v1022 = vunpack.c.l.b16 %v235
  %v1023 = vunpack.c.h.b16 %v235
  %v1024 = vunpack.c.l.b16 %v236
  %v1025 = vunpack.c.h.b16 %v236
  %v1026 = vunpack.c.l.b16 %v237
  %v1027 = vunpack.c.h.b16 %v237
  %v1028 = vunpack.c.l.b16 %v238
  %v1029 = vunpack.c.h.b16 %v238
  %v1030 = vunpack.c.l.b16 %v239
  %v1031 = vunpack.c.h.b16 %v239
  %v1032 = vunpack.c.l.b16 %v240
  %v1033 = vunpack.c.h.b16 %v240
  %v1034 = vunpack.c.l.b16 %v241
  %v1035 = vunpack.c.h.b16 %v241
  %v1036 = vunpack.c.l.b16 %v242
  %v1037 = vunpack.c.h.b16 %v242
  %v1038 = vunpack.c.l.b16 %v243
  %v1039 = vunpack.c.h.b16 %v243
  %v1040 = vunpack.c.l.b16 %v244
  %v1041 = vunpack.c.h.b16 %v244
  %v1042 = vunpack.c.l.b16 %v245
  %v1043 = vunpack.c.h.b16 %v245
  %v1044 = vunpack.c.l.b16 %v246
  %v1045 = vunpack.c.h.b16 %v246
  %v1046 = vunpack.c.l.b16 %v247
  %v1047 = vunpack.c.h.b16 %v247
  %v1048 = vunpack.c.l.b16 %v248
  %v1049 = vunpack.c.h.b16 %v248
  %v1050 = vunpack.c.l.b16 %v249
  %v1051 = vunpack.c.h.b16 %v249
  %v1052 = vunpack.c.l.b16 %v250
  %v1053 = vunpack.c.h.b16 %v250
  %v1054 = vunpack.c.l.b16 %v251
  %v1055 = vunpack.c.h.b16 %v251
  %v1056 = vunpack.c.l.b16 %v252
  %v1057 = vunpack.c.h.b16 %v252
  %v1058 = vunpack.c.l.b16 %v253
  %v1059 = vunpack.c.h.b16 %v253
  %v1060 = vunpack.c.l.b16 %v254
  %v1061 = vunpack.c.h.b16 %v254
  %v1062 = vunpack.c.l.b16 %v255
  %v1063 = vunpack.c.h.b16 %v255
  %v1064 = vunpack.c.l.b16 %v256
  %v1065 = vunpack.c.h.b16 %v256
  %v1066 = vunpack.c.l.b16 %v257
  %v1067 = vunpack.c.h.b16 %v257
  %v1068 = vunpack.c.l.b16 %v258
  %v1069 = vunpack.c.h.b16 %v258
  %v1070 = vunpack.c.l.b16 %v259
  %v1071 = vunpack.c.h.b16 %v259
  %v1072 = vunpack.c.l.b16 %v260
  %v1073 = vunpack.c.h.b16 %v260
  %v1074 = vunpack.c.l.b16 %v261
  %v1075 = vunpack.c.h.b16 %v261
  %v1076 = vunpack.c.l.b16 %v262
  %v1077 = vunpack.c.h.b16 %v262
  %v1078 = vunpack.c.l.b16 %v263
  %v1079 = vunpack.c.h.b16 %v263
  %v1080 = vunpack.c.l.b16 %v264
  %v1081 = vunpack.c.h.b16 %v264
  %v1082 = vunpack.c.l.b16 %v265
  %v1083 = vunpack.c.h.b16 %v265
  %v1084 = vunpack.c.l.b16 %v266
  %v1085 = vunpack.c.h.b16 %v266
  %v1086 = vunpack.c.l.b16 %v267
  %v1087 = vunpack.c.h.b16 %v267
  %v1088 = vunpack.c.l.b16 %v268
  %v1089 = vunpack.c.h.b16 %v268
  %v1090 = vunpack.c.l.b16 %v269
  %v1091 = vunpack.c.h.b16 %v269
  %v1092 = vunpack.c.l.b16 %v270
  %v1093 = vunpack.c.h.b16 %v270
  %v1094 = vunpack.c.l.b16 %v271
  %v1095 = vunpack.c.h.b16 %v271
  %v1096 = vunpack.c.l.b16 %v272
  %v1097 = vunpack.c.h.b16 %v272
  %v1098 = vunpack.c.l.b16 %v273
  %v1099 = vunpack.c.h.b16 %v273
  %v1100 = vunpack.c.l.b16 %v274
  %v1101 = vunpack.c.h.b16 %v274
  %v1102 = vunpack.c.l.b16 %v275
  %v1103 = vunpack.c.h.b16 %v275
  %v1104 = vunpack.c.l.b16 %v276
  %v1105 = vunpack.c.h.b16 %v276
  %v1106 = vunpack.c.l.b16 %v277
  %v1107 = vunpack.c.h.b16 %v277
  %v1108 = vpack.c.b16 %v598, %v596
  %v1109 = vpack.c.b16 %v599, %v597
  %v1110 = vpack.c.b16 %v602, %v600
  %v1111 = vpack.c.b16 %v603, %v601
  %v1112 = vpack.c.b16 %v606, %v604
  %v1113 = vpack.c.b16 %v607, %v605
  %v1114 = vpack.c.b16 %v610, %v608
  %v1115 = vpack.c.b16 %v611, %v609
  %v1116 = vpack.c.b16 %v614, %v612
  %v1117 = vpack.c.b16 %v615, %v613
  %v1118 = vpack.c.b16 %v618, %v616
  %v1119 = vpack.c.b16 %v619, %v617
  %v1120 = vpack.c.b16 %v622, %v620
  %v1121 = vpack.c.b16 %v623, %v621
  %v1122 = vpack.c.b16 %v626, %v624
  %v1123 = vpack.c.b16 %v627, %v625
  %v1124 = vpack.c.b16 %v630, %v628
  %v1125 = vpack.c.b16 %v631, %v629
  %v1126 = vpack.c.b16 %v634, %v632
  %v1127 = vpack.c.b16 %v635, %v633
  %v1128 = vpack.c.b16 %v638, %v636
  %v1129 = vpack.c.b16 %v639, %v637
  %v1130 = vpack.c.b16 %v642, %v640
  %v1131 = vpack.c.b16 %v643, %v641
  %v1132 = vpack.c.b16 %v646, %v644
  %v1133 = vpack.c.b16 %v647, %v645
  %v1134 = vpack.c.b16 %v650, %v648
  %v1135 = vpack.c.b16 %v651, %v649
  %v1136 = vpack.c.b16 %v654, %v652
  %v1137 = vpack.c.b16 %v655, %v653
  %v1138 = vpack.c.b16 %v658, %v656
  %v1139 = vpack.c.b16 %v659, %v657
  %v1140 = vpack.c.b16 %v662, %v660
  %v1141 = vpack.c.b16 %v663, %v661
  %v1142 = vpack.c.b16 %v666, %v664
  %v1143 = vpack.c.b16 %v667, %v665
  %v1144 = vpack.c.b16 %v670, %v668
  %v1145 = vpack.c.b16 %v671, %v669
  %v1146 = vpack.c.b16 %v674, %v672
  %v1147 = vpack.c.b16 %v675, %v673
  %v1148 = vpack.c.b16 %v678, %v676
  %v1149 = vpack.c.b16 %v679, %v677
  %v1150 = vpack.c.b16 %v682, %v680
  %v1151 = vpack.c.b16 %v683, %v681
  %v1152 = vpack.c.b16 %v686, %v684
  %v1153 = vpack.c.b16 %v687, %v685
  %v1154 = vpack.c.b16 %v690, %v688
  %v1155 = vpack.c.b16 %v691, %v689
  %v1156 = vpack.c.b16 %v694, %v692
  %v1157 = vpack.c.b16 %v695, %v693
  %v1158 = vpack.c.b16 %v698, %v696
  %v1159 = vpack.c.b16 %v699, %v697
  %v1160 = vpack.c.b16 %v702, %v700
  %v1161 = vpack.c.b16 %v703, %v701
  %v1162 = vpack.c.b16 %v706, %v704
  %v1163 = vpack.c.b16 %v707, %v705
  %v1164 = vpack.c.b16 %v710, %v708
  %v1165 = vpack.c.b16 %v711, %v709
  %v1166 = vpack.c.b16 %v714, %v712
  %v1167 = vpack.c.b16 %v715, %v713
  %v1168 = vpack.c.b16 %v718, %v716
  %v1169 = vpack.c.b16 %v719, %v717
  %v1170 = vpack.c.b16 %v722, %v720
  %v1171 = vpack.c.b16 %v723, %v721
  %v1172 = vpack.c.b16 %v726, %v724
  %v1173 = vpack.c.b16 %v727, %v725
  %v1174 = vpack.c.b16 %v730, %v728
  %v1175 = vpack.c.b16 %v731, %v729
  %v1176 = vpack.c.b16 %v734, %v732
  %v1177 = vpack.c.b16 %v735, %v733
  %v1178 = vpack.c.b16 %v738, %v736
  %v1179 = vpack.c.b16 %v739, %v737
  %v1180 = vpack.c.b16 %v742, %v740
  %v1181 = vpack.c.b16 %v743, %v741
  %v1182 = vpack.c.b16 %v746, %v744
  %v1183 = vpack.c.b16 %v747, %v745
  %v1184 = vpack.c.b16 %v750, %v748
  %v1185 = vpack.c.b16 %v751, %v749
  %v1186 = vpack.c.b16 %v754, %v752
  %v1187 = vpack.c.b16 %v755, %v753
  %v1188 = vpack.c.b16 %v758, %v756
  %v1189 = vpack.c.b16 %v759, %v757
  %v1190 = vpack.c.b16 %v762, %v760
  %v1191 = vpack.c.b16 %v763, %v761
  %v1192 = vpack.c.b16 %v766, %v764
  %v1193 = vpack.c.b16 %v767, %v765
  %v1194 = vpack.c.b16 %v770, %v768
  %v1195 = vpack.c.b16 %v771, %v769
  %v1196 = vpack.c.b16 %v774, %v772
  %v1197 = vpack.c.b16 %v775, %v773
  %v1198 = vpack.c.b16 %v778, %v776
  %v1199 = vpack.c.b16 %v779, %v777
  %v1200 = vpack.c.b16 %v782, %v780
  %v1201 = vpack.c.b16 %v783, %v781
  %v1202 = vpack.c.b16 %v786, %v784
  %v1203 = vpack.c.b16 %v787, %v785
  %v1204 = vpack.c.b16 %v790, %v788
  %v1205 = vpack.c.b16 %v791, %v789
  %v1206 = vpack.c.b16 %v794, %v792
  %v1207 = vpack.c.b16 %v795, %v793
  %v1208 = vpack.c.b16 %v798, %v796
  %v1209 = vpack.c.b16 %v799, %v797
  %v1210 = vpack.c.b16 %v802, %v800
  %v1211 = vpack.c.b16 %v803, %v801
  %v1212 = vpack.c.b16 %v806, %v804
  %v1213 = vpack.c.b16 %v807, %v805
  %v1214 = vpack.c.b16 %v810, %v808
  %v1215 = vpack.c.b16 %v811, %v809
  %v1216 = vpack.c.b16 %v814, %v812
  %v1217 = vpack.c.b16 %v815, %v813
  %v1218 = vpack.c.b16 %v818, %v816
  %v1219 = vpack.c.b16 %v819, %v817
  %v1220 = vpack.c.b16 %v822, %v820
  %v1221 = vpack.c.b16 %v823, %v821
  %v1222 = vpack.c.b16 %v826, %v824
  %v1223 = vpack.c.b16 %v827, %v825
  %v1224 = vpack.c.b16 %v830, %v828
  %v1225 = vpack.c.b16 %v831, %v829
  %v1226 = vpack.c.b16 %v834, %v832
  %v1227 = vpack.c.b16 %v835, %v833
  %v1228 = vpack.c.b16 %v838, %v836
  %v1229 = vpack.c.b16 %v839, %v837
  %v1230 = vpack.c.b16 %v842, %v840
  %v1231 = vpack.c.b16 %v843, %v841
  %v1232 = vpack.c.b16 %v846, %v844
  %v1233 = vpack.c.b16 %v847, %v845
  %v1234 = vpack.c.b16 %v850, %v848
  %v1235 = vpack.c.b16 %v851, %v849
  %v1236 = vpack.c.b16 %v854, %v852
  %v1237 = vpack.c.b16 %v855, %v853
  %v1238 = vpack.c.b16 %v858, %v856
  %v1239 = vpack.c.b16 %v859, %v857
  %v1240 = vpack.c.b16 %v862, %v860
  %v1241 = vpack.c.b16 %v863, %v861
  %v1242 = vpack.c.b16 %v866, %v864
  %v1243 = vpack.c.b16 %v867, %v865
  %v1244 = vpack.c.b16 %v870, %v868
  %v1245 = vpack.c.b16 %v871, %v869
  %v1246 = vpack.c.b16 %v874, %v872
  %v1247 = vpack.c.b16 %v875, %v873
  %v1248 = vpack.c.b16 %v878, %v876
  %v1249 = vpack.c.b16 %v879, %v877
  %v1250 = vpack.c.b16 %v882, %v880
  %v1251 = vpack.c.b16 %v883, %v881
  %v1252 = vpack.c.b16 %v886, %v884
  %v1253 = vpack.c.b16 %v887, %v885
  %v1254 = vpack.c.b16 %v890, %v888
  %v1255 = vpack.c.b16 %v891, %v889
  %v1256 = vpack.c.b16 %v894, %v892
  %v1257 = vpack.c.b16 %v895, %v893
  %v1258 = vpack.c.b16 %v898, %v896
  %v1259 = vpack.c.b16 %v899, %v897
  %v1260 = vpack.c.b16 %v902, %v900
  %v1261 = vpack.c.b16 %v903, %v901
  %v1262 = vpack.c.b16 %v906, %v904
  %v1263 = vpack.c.b16 %v907, %v905
  %v1264 = vpack.c.b16 %v910, %v908
  %v1265 = vpack.c.b16 %v911, %v909
  %v1266 = vpack.c.b16 %v914, %v912
  %v1267 = vpack.c.b16 %v915, %v913
  %v1268 = vpack.c.b16 %v918, %v916
  %v1269 = vpack.c.b16 %v919, %v917
  %v1270 = vpack.c.b16 %v922, %v920
  %v1271 = vpack.c.b16 %v923, %v921
  %v1272 = vpack.c.b16 %v926, %v924
  %v1273 = vpack.c.b16 %v927, %v925
  %v1274 = vpack.c.b16 %v930, %v928
  %v1275 = vpack.c.b16 %v931, %v929
  %v1276 = vpack.c.b16 %v934, %v932
  %v1277 = vpack.c.b16 %v935, %v933
  %v1278 = vpack.c.b16 %v938, %v936
  %v1279 = vpack.c.b16 %v939, %v937
  %v1280 = vpack.c.b16 %v942, %v940
  %v1281 = vpack.c.b16 %v943, %v941
  %v1282 = vpack.c.b16 %v946, %v944
  %v1283 = vpack.c.b16 %v947, %v945
  %v1284 = vpack.c.b16 %v950, %v948
  %v1285 = vpack.c.b16 %v951, %v949
  %v1286 = vpack.c.b16 %v954, %v952
  %v1287 = vpack.c.b16 %v955, %v953
  %v1288 = vpack.c.b16 %v958, %v956
  %v1289 = vpack.c.b16 %v959, %v957
  %v1290 = vpack.c.b16 %v962, %v960
  %v1291 = vpack.c.b16 %v963, %v961
  %v1292 = vpack.c.b16 %v966, %v964
  %v1293 = vpack.c.b16 %v967, %v965
  %v1294 = vpack.c.b16 %v970, %v968
  %v1295 = vpack.c.b16 %v971, %v969
  %v1296 = vpack.c.b16 %v974, %v972
  %v1297 = vpack.c.b16 %v975, %v973
  %v1298 = vpack.c.b16 %v978, %v976
  %v1299 = vpack.c.b16 %v979, %v977
  %v1300 = vpack.c.b16 %v982, %v980
  %v1301 = vpack.c.b16 %v983, %v981
  %v1302 = vpack.c.b16 %v986, %v984
  %v1303 = vpack.c.b16 %v987, %v985
  %v1304 = vpack.c.b16 %v990, %v988
  %v1305 = vpack.c.b16 %v991, %v989
  %v1306 = vpack.c.b16 %v994, %v992
  %v1307 = vpack.c.b16 %v995, %v993
  %v1308 = vpack.c.b16 %v998, %v996
  %v1309 = vpack.c.b16 %v999, %v997
  %v1310 = vpack.c.b16 %v1002, %v1000
  %v1311 = vpack.c.b16 %v1003, %v1001
  %v1312 = vpack.c.b16 %v1006, %v1004
  %v1313 = vpack.c.b16 %v1007, %v1005
  %v1314 = vpack.c.b16 %v1010, %v1008
  %v1315 = vpack.c.b16 %v1011, %v1009
  %v1316 = vpack.c.b16 %v1014, %v1012
  %v1317 = vpack.c.b16 %v1015, %v1013
  %v1318 = vpack.c.b16 %v1018, %v1016
  %v1319 = vpack.c.b16 %v1019, %v1017
  %v1320 = vpack.c.b16 %v1022, %v1020
  %v1321 = vpack.c.b16 %v1023, %v1021
  %v1322 = vpack.c.b16 %v1026, %v1024
  %v1323 = vpack.c.b16 %v1027, %v1025
  %v1324 = vpack.c.b16 %v1030, %v1028
  %v1325 = vpack.c.b16 %v1031, %v1029
  %v1326 = vpack.c.b16 %v1034, %v1032
  %v1327 = vpack.c.b16 %v1035, %v1033
  %v1328 = vpack.c.b16 %v1038, %v1036
  %v1329 = vpack.c.b16 %v1039, %v1037
  %v1330 = vpack.c.b16 %v1042, %v1040
  %v1331 = vpack.c.b16 %v1043, %v1041
  %v1332 = vpack.c.b16 %v1046, %v1044
  %v1333 = vpack.c.b16 %v1047, %v1045
  %v1334 = vpack.c.b16 %v1050, %v1048
  %v1335 = vpack.c.b16 %v1051, %v1049
  %v1336 = vpack.c.b16 %v1054, %v1052
  %v1337 = vpack.c.b16 %v1055, %v1053
  %v1338 = vpack.c.b16 %v1058, %v1056
  %v1339 = vpack.c.b16 %v1059, %v1057
  %v1340 = vpack.c.b16 %v1062, %v1060
  %v1341 = vpack.c.b16 %v1063, %v1061
  %v1342 = vpack.c.b16 %v1066, %v1064
  %v1343 = vpack.c.b16 %v1067, %v1065
  %v1344 = vpack.c.b16 %v1070, %v1068
  %v1345 = vpack.c.b16 %v1071, %v1069
  %v1346 = vpack.c.b16 %v1074, %v1072
  %v1347 = vpack.c.b16 %v1075, %v1073
  %v1348 = vpack.c.b16 %v1078, %v1076
  %v1349 = vpack.c.b16 %v1079, %v1077
  %v1350 = vpack.c.b16 %v1082, %v1080
  %v1351 = vpack.c.b16 %v1083, %v1081
  %v1352 = vpack.c.b16 %v1086, %v1084
  %v1353 = vpack.c.b16 %v1087, %v1085
  %v1354 = vpack.c.b16 %v1090, %v1088
  %v1355 = vpack.c.b16 %v1091, %v1089
  %v1356 = vpack.c.b16 %v1094, %v1092
  %v1357 = vpack.c.b16 %v1095, %v1093
  %v1358 = vpack.c.b16 %v1098, %v1096
  %v1359 = vpack.c.b16 %v1099, %v1097
  %v1360 = vpack.c.b16 %v1102, %v1100
  %v1361 = vpack.c.b16 %v1103, %v1101
  %v1362 = vpack.c.b16 %v1106, %v1104
  %v1363 = vpack.c.b16 %v1107, %v1105
  %1620 = vmatpush.bf16.msra.mxu0 %v1122
  %1621 = vmatpush.bf16.msra.mxu0 %v1120
  %1622 = vmatpush.bf16.msra.mxu0 %v1118
  %1623 = vmatpush.bf16.msra.mxu0 %v1116
  %1624 = vmatpush.bf16.msra.mxu0 %v1114
  %1625 = vmatpush.bf16.msra.mxu0 %v1112
  %1626 = vmatpush.bf16.msra.mxu0 %v1110
  %1627 = vmatpush.bf16.msra.mxu0 %v1108
  %1628 = vmatmul.bf16.gmra.mxu0 %v308
  %v1629 = vpop.f32.mrf.mxu0
  %v1630 = vadd.f32 %v280, %v1629
  %v1631 = vpop.f32.mrf.mxu0
  %1632 = vdwg.mxu0
  %1633 = vmatpush.bf16.msra.mxu0 %v1138
  %1634 = vmatpush.bf16.msra.mxu0 %v1136
  %1635 = vmatpush.bf16.msra.mxu0 %v1134
  %1636 = vmatpush.bf16.msra.mxu0 %v1132
  %1637 = vmatpush.bf16.msra.mxu0 %v1130
  %1638 = vmatpush.bf16.msra.mxu0 %v1128
  %1639 = vmatpush.bf16.msra.mxu0 %v1126
  %1640 = vmatpush.bf16.msra.mxu0 %v1124
  %1641 = vmatmul.bf16.gmra.mxu0 %v309
  %v1642 = vpop.f32.mrf.mxu0
  %v1643 = vadd.f32 %v1630, %v1642
  %v1644 = vpop.f32.mrf.mxu0
  %1645 = vdwg.mxu0
  %1646 = vmatpush.bf16.msra.mxu0 %v1154
  %1647 = vmatpush.bf16.msra.mxu0 %v1152
  %1648 = vmatpush.bf16.msra.mxu0 %v1150
  %1649 = vmatpush.bf16.msra.mxu0 %v1148
  %1650 = vmatpush.bf16.msra.mxu0 %v1146
  %1651 = vmatpush.bf16.msra.mxu0 %v1144
  %1652 = vmatpush.bf16.msra.mxu0 %v1142
  %1653 = vmatpush.bf16.msra.mxu0 %v1140
  %1654 = vmatmul.bf16.gmra.mxu0 %v310
  %v1655 = vpop.f32.mrf.mxu0
  %v1656 = vadd.f32 %v1643, %v1655
  %v1657 = vpop.f32.mrf.mxu0
  %1658 = vdwg.mxu0
  %1659 = vmatpush.bf16.msra.mxu0 %v1170
  %1660 = vmatpush.bf16.msra.mxu0 %v1168
  %1661 = vmatpush.bf16.msra.mxu0 %v1166
  %1662 = vmatpush.bf16.msra.mxu0 %v1164
  %1663 = vmatpush.bf16.msra.mxu0 %v1162
  %1664 = vmatpush.bf16.msra.mxu0 %v1160
  %1665 = vmatpush.bf16.msra.mxu0 %v1158
  %1666 = vmatpush.bf16.msra.mxu0 %v1156
  %1667 = vmatmul.bf16.gmra.mxu0 %v311
  %v1668 = vpop.f32.mrf.mxu0
  %v1669 = vadd.f32 %v1656, %v1668
  %v1670 = vpop.f32.mrf.mxu0
  %1671 = vdwg.mxu0
  %1672 = vmatpush.bf16.msra.mxu0 %v1186
  %1673 = vmatpush.bf16.msra.mxu0 %v1184
  %1674 = vmatpush.bf16.msra.mxu0 %v1182
  %1675 = vmatpush.bf16.msra.mxu0 %v1180
  %1676 = vmatpush.bf16.msra.mxu0 %v1178
  %1677 = vmatpush.bf16.msra.mxu0 %v1176
  %1678 = vmatpush.bf16.msra.mxu0 %v1174
  %1679 = vmatpush.bf16.msra.mxu0 %v1172
  %1680 = vmatmul.bf16.gmra.mxu0 %v312
  %v1681 = vpop.f32.mrf.mxu0
  %v1682 = vadd.f32 %v1669, %v1681
  %v1683 = vpop.f32.mrf.mxu0
  %1684 = vdwg.mxu0
  %1685 = vmatpush.bf16.msra.mxu0 %v1202
  %1686 = vmatpush.bf16.msra.mxu0 %v1200
  %1687 = vmatpush.bf16.msra.mxu0 %v1198
  %1688 = vmatpush.bf16.msra.mxu0 %v1196
  %1689 = vmatpush.bf16.msra.mxu0 %v1194
  %1690 = vmatpush.bf16.msra.mxu0 %v1192
  %1691 = vmatpush.bf16.msra.mxu0 %v1190
  %1692 = vmatpush.bf16.msra.mxu0 %v1188
  %1693 = vmatmul.bf16.gmra.mxu0 %v313
  %v1694 = vpop.f32.mrf.mxu0
  %v1695 = vadd.f32 %v1682, %v1694
  %v1696 = vpop.f32.mrf.mxu0
  %1697 = vdwg.mxu0
  %1698 = vmatpush.bf16.msra.mxu0 %v1218
  %1699 = vmatpush.bf16.msra.mxu0 %v1216
  %1700 = vmatpush.bf16.msra.mxu0 %v1214
  %1701 = vmatpush.bf16.msra.mxu0 %v1212
  %1702 = vmatpush.bf16.msra.mxu0 %v1210
  %1703 = vmatpush.bf16.msra.mxu0 %v1208
  %1704 = vmatpush.bf16.msra.mxu0 %v1206
  %1705 = vmatpush.bf16.msra.mxu0 %v1204
  %1706 = vmatmul.bf16.gmra.mxu0 %v314
  %v1707 = vpop.f32.mrf.mxu0
  %v1708 = vadd.f32 %v1695, %v1707
  %v1709 = vpop.f32.mrf.mxu0
  %1710 = vdwg.mxu0
  %1711 = vmatpush.bf16.msra.mxu0 %v1234
  %1712 = vmatpush.bf16.msra.mxu0 %v1232
  %1713 = vmatpush.bf16.msra.mxu0 %v1230
  %1714 = vmatpush.bf16.msra.mxu0 %v1228
  %1715 = vmatpush.bf16.msra.mxu0 %v1226
  %1716 = vmatpush.bf16.msra.mxu0 %v1224
  %1717 = vmatpush.bf16.msra.mxu0 %v1222
  %1718 = vmatpush.bf16.msra.mxu0 %v1220
  %1719 = vmatmul.bf16.gmra.mxu0 %v315
  %v1720 = vpop.f32.mrf.mxu0
  %v1721 = vadd.f32 %v1708, %v1720
  %v1722 = vpop.f32.mrf.mxu0
  %1723 = vdwg.mxu0
  %1724 = vmatpush.bf16.msra.mxu0 %v1250
  %1725 = vmatpush.bf16.msra.mxu0 %v1248
  %1726 = vmatpush.bf16.msra.mxu0 %v1246
  %1727 = vmatpush.bf16.msra.mxu0 %v1244
  %1728 = vmatpush.bf16.msra.mxu0 %v1242
  %1729 = vmatpush.bf16.msra.mxu0 %v1240
  %1730 = vmatpush.bf16.msra.mxu0 %v1238
  %1731 = vmatpush.bf16.msra.mxu0 %v1236
  %1732 = vmatmul.bf16.gmra.mxu0 %v316
  %v1733 = vpop.f32.mrf.mxu0
  %v1734 = vadd.f32 %v1721, %v1733
  %v1735 = vpop.f32.mrf.mxu0
  %1736 = vdwg.mxu0
  %1737 = vmatpush.bf16.msra.mxu0 %v1266
  %1738 = vmatpush.bf16.msra.mxu0 %v1264
  %1739 = vmatpush.bf16.msra.mxu0 %v1262
  %1740 = vmatpush.bf16.msra.mxu0 %v1260
  %1741 = vmatpush.bf16.msra.mxu0 %v1258
  %1742 = vmatpush.bf16.msra.mxu0 %v1256
  %1743 = vmatpush.bf16.msra.mxu0 %v1254
  %1744 = vmatpush.bf16.msra.mxu0 %v1252
  %1745 = vmatmul.bf16.gmra.mxu0 %v317
  %v1746 = vpop.f32.mrf.mxu0
  %v1747 = vadd.f32 %v1734, %v1746
  %v1748 = vpop.f32.mrf.mxu0
  %1749 = vdwg.mxu0
  %1750 = vmatpush.bf16.msra.mxu0 %v1282
  %1751 = vmatpush.bf16.msra.mxu0 %v1280
  %1752 = vmatpush.bf16.msra.mxu0 %v1278
  %1753 = vmatpush.bf16.msra.mxu0 %v1276
  %1754 = vmatpush.bf16.msra.mxu0 %v1274
  %1755 = vmatpush.bf16.msra.mxu0 %v1272
  %1756 = vmatpush.bf16.msra.mxu0 %v1270
  %1757 = vmatpush.bf16.msra.mxu0 %v1268
  %1758 = vmatmul.bf16.gmra.mxu0 %v318
  %v1759 = vpop.f32.mrf.mxu0
  %v1760 = vadd.f32 %v1747, %v1759
  %v1761 = vpop.f32.mrf.mxu0
  %1762 = vdwg.mxu0
  %1763 = vmatpush.bf16.msra.mxu0 %v1298
  %1764 = vmatpush.bf16.msra.mxu0 %v1296
  %1765 = vmatpush.bf16.msra.mxu0 %v1294
  %1766 = vmatpush.bf16.msra.mxu0 %v1292
  %1767 = vmatpush.bf16.msra.mxu0 %v1290
  %1768 = vmatpush.bf16.msra.mxu0 %v1288
  %1769 = vmatpush.bf16.msra.mxu0 %v1286
  %1770 = vmatpush.bf16.msra.mxu0 %v1284
  %1771 = vmatmul.bf16.gmra.mxu0 %v319
  %v1772 = vpop.f32.mrf.mxu0
  %v1773 = vadd.f32 %v1760, %v1772
  %v1774 = vpop.f32.mrf.mxu0
  %1775 = vdwg.mxu0
  %1776 = vmatpush.bf16.msra.mxu0 %v1314
  %1777 = vmatpush.bf16.msra.mxu0 %v1312
  %1778 = vmatpush.bf16.msra.mxu0 %v1310
  %1779 = vmatpush.bf16.msra.mxu0 %v1308
  %1780 = vmatpush.bf16.msra.mxu0 %v1306
  %1781 = vmatpush.bf16.msra.mxu0 %v1304
  %1782 = vmatpush.bf16.msra.mxu0 %v1302
  %1783 = vmatpush.bf16.msra.mxu0 %v1300
  %1784 = vmatmul.bf16.gmra.mxu0 %v320
  %v1785 = vpop.f32.mrf.mxu0
  %v1786 = vadd.f32 %v1773, %v1785
  %v1787 = vpop.f32.mrf.mxu0
  %1788 = vdwg.mxu0
  %1789 = vmatpush.bf16.msra.mxu0 %v1330
  %1790 = vmatpush.bf16.msra.mxu0 %v1328
  %1791 = vmatpush.bf16.msra.mxu0 %v1326
  %1792 = vmatpush.bf16.msra.mxu0 %v1324
  %1793 = vmatpush.bf16.msra.mxu0 %v1322
  %1794 = vmatpush.bf16.msra.mxu0 %v1320
  %1795 = vmatpush.bf16.msra.mxu0 %v1318
  %1796 = vmatpush.bf16.msra.mxu0 %v1316
  %1797 = vmatmul.bf16.gmra.mxu0 %v321
  %v1798 = vpop.f32.mrf.mxu0
  %v1799 = vadd.f32 %v1786, %v1798
  %v1800 = vpop.f32.mrf.mxu0
  %1801 = vdwg.mxu0
  %1802 = vmatpush.bf16.msra.mxu0 %v1346
  %1803 = vmatpush.bf16.msra.mxu0 %v1344
  %1804 = vmatpush.bf16.msra.mxu0 %v1342
  %1805 = vmatpush.bf16.msra.mxu0 %v1340
  %1806 = vmatpush.bf16.msra.mxu0 %v1338
  %1807 = vmatpush.bf16.msra.mxu0 %v1336
  %1808 = vmatpush.bf16.msra.mxu0 %v1334
  %1809 = vmatpush.bf16.msra.mxu0 %v1332
  %1810 = vmatmul.bf16.gmra.mxu0 %v322
  %v1811 = vpop.f32.mrf.mxu0
  %v1812 = vadd.f32 %v1799, %v1811
  %v1813 = vpop.f32.mrf.mxu0
  %1814 = vdwg.mxu0
  %1815 = vmatpush.bf16.msra.mxu0 %v1362
  %1816 = vmatpush.bf16.msra.mxu0 %v1360
  %1817 = vmatpush.bf16.msra.mxu0 %v1358
  %1818 = vmatpush.bf16.msra.mxu0 %v1356
  %1819 = vmatpush.bf16.msra.mxu0 %v1354
  %1820 = vmatpush.bf16.msra.mxu0 %v1352
  %1821 = vmatpush.bf16.msra.mxu0 %v1350
  %1822 = vmatpush.bf16.msra.mxu0 %v1348
  %1823 = vmatmul.bf16.gmra.mxu0 %v323
  %v1824 = vpop.f32.mrf.mxu0
  %v1825 = vadd.f32 %v1812, %v1824
  %v1826 = vpop.f32.mrf.mxu0
  %1827 = vdwg.mxu0
  %1828 = vmatpush.bf16.msra.mxu0 %v1123
  %1829 = vmatpush.bf16.msra.mxu0 %v1121
  %1830 = vmatpush.bf16.msra.mxu0 %v1119
  %1831 = vmatpush.bf16.msra.mxu0 %v1117
  %1832 = vmatpush.bf16.msra.mxu0 %v1115
  %1833 = vmatpush.bf16.msra.mxu0 %v1113
  %1834 = vmatpush.bf16.msra.mxu0 %v1111
  %1835 = vmatpush.bf16.msra.mxu0 %v1109
  %1836 = vmatmul.bf16.gmra.mxu0 %v308
  %v1837 = vpop.f32.mrf.mxu0
  %v1838 = vadd.f32 %v281, %v1837
  %v1839 = vpop.f32.mrf.mxu0
  %1840 = vdwg.mxu0
  %1841 = vmatpush.bf16.msra.mxu0 %v1139
  %1842 = vmatpush.bf16.msra.mxu0 %v1137
  %1843 = vmatpush.bf16.msra.mxu0 %v1135
  %1844 = vmatpush.bf16.msra.mxu0 %v1133
  %1845 = vmatpush.bf16.msra.mxu0 %v1131
  %1846 = vmatpush.bf16.msra.mxu0 %v1129
  %1847 = vmatpush.bf16.msra.mxu0 %v1127
  %1848 = vmatpush.bf16.msra.mxu0 %v1125
  %1849 = vmatmul.bf16.gmra.mxu0 %v309
  %v1850 = vpop.f32.mrf.mxu0
  %v1851 = vadd.f32 %v1838, %v1850
  %v1852 = vpop.f32.mrf.mxu0
  %1853 = vdwg.mxu0
  %1854 = vmatpush.bf16.msra.mxu0 %v1155
  %1855 = vmatpush.bf16.msra.mxu0 %v1153
  %1856 = vmatpush.bf16.msra.mxu0 %v1151
  %1857 = vmatpush.bf16.msra.mxu0 %v1149
  %1858 = vmatpush.bf16.msra.mxu0 %v1147
  %1859 = vmatpush.bf16.msra.mxu0 %v1145
  %1860 = vmatpush.bf16.msra.mxu0 %v1143
  %1861 = vmatpush.bf16.msra.mxu0 %v1141
  %1862 = vmatmul.bf16.gmra.mxu0 %v310
  %v1863 = vpop.f32.mrf.mxu0
  %v1864 = vadd.f32 %v1851, %v1863
  %v1865 = vpop.f32.mrf.mxu0
  %1866 = vdwg.mxu0
  %1867 = vmatpush.bf16.msra.mxu0 %v1171
  %1868 = vmatpush.bf16.msra.mxu0 %v1169
  %1869 = vmatpush.bf16.msra.mxu0 %v1167
  %1870 = vmatpush.bf16.msra.mxu0 %v1165
  %1871 = vmatpush.bf16.msra.mxu0 %v1163
  %1872 = vmatpush.bf16.msra.mxu0 %v1161
  %1873 = vmatpush.bf16.msra.mxu0 %v1159
  %1874 = vmatpush.bf16.msra.mxu0 %v1157
  %1875 = vmatmul.bf16.gmra.mxu0 %v311
  %v1876 = vpop.f32.mrf.mxu0
  %v1877 = vadd.f32 %v1864, %v1876
  %v1878 = vpop.f32.mrf.mxu0
  %1879 = vdwg.mxu0
  %1880 = vmatpush.bf16.msra.mxu0 %v1187
  %1881 = vmatpush.bf16.msra.mxu0 %v1185
  %1882 = vmatpush.bf16.msra.mxu0 %v1183
  %1883 = vmatpush.bf16.msra.mxu0 %v1181
  %1884 = vmatpush.bf16.msra.mxu0 %v1179
  %1885 = vmatpush.bf16.msra.mxu0 %v1177
  %1886 = vmatpush.bf16.msra.mxu0 %v1175
  %1887 = vmatpush.bf16.msra.mxu0 %v1173
  %1888 = vmatmul.bf16.gmra.mxu0 %v312
  %v1889 = vpop.f32.mrf.mxu0
  %v1890 = vadd.f32 %v1877, %v1889
  %v1891 = vpop.f32.mrf.mxu0
  %1892 = vdwg.mxu0
  %1893 = vmatpush.bf16.msra.mxu0 %v1203
  %1894 = vmatpush.bf16.msra.mxu0 %v1201
  %1895 = vmatpush.bf16.msra.mxu0 %v1199
  %1896 = vmatpush.bf16.msra.mxu0 %v1197
  %1897 = vmatpush.bf16.msra.mxu0 %v1195
  %1898 = vmatpush.bf16.msra.mxu0 %v1193
  %1899 = vmatpush.bf16.msra.mxu0 %v1191
  %1900 = vmatpush.bf16.msra.mxu0 %v1189
  %1901 = vmatmul.bf16.gmra.mxu0 %v313
  %v1902 = vpop.f32.mrf.mxu0
  %v1903 = vadd.f32 %v1890, %v1902
  %v1904 = vpop.f32.mrf.mxu0
  %1905 = vdwg.mxu0
  %1906 = vmatpush.bf16.msra.mxu0 %v1219
  %1907 = vmatpush.bf16.msra.mxu0 %v1217
  %1908 = vmatpush.bf16.msra.mxu0 %v1215
  %1909 = vmatpush.bf16.msra.mxu0 %v1213
  %1910 = vmatpush.bf16.msra.mxu0 %v1211
  %1911 = vmatpush.bf16.msra.mxu0 %v1209
  %1912 = vmatpush.bf16.msra.mxu0 %v1207
  %1913 = vmatpush.bf16.msra.mxu0 %v1205
  %1914 = vmatmul.bf16.gmra.mxu0 %v314
  %v1915 = vpop.f32.mrf.mxu0
  %v1916 = vadd.f32 %v1903, %v1915
  %v1917 = vpop.f32.mrf.mxu0
  %1918 = vdwg.mxu0
  %1919 = vmatpush.bf16.msra.mxu0 %v1235
  %1920 = vmatpush.bf16.msra.mxu0 %v1233
  %1921 = vmatpush.bf16.msra.mxu0 %v1231
  %1922 = vmatpush.bf16.msra.mxu0 %v1229
  %1923 = vmatpush.bf16.msra.mxu0 %v1227
  %1924 = vmatpush.bf16.msra.mxu0 %v1225
  %1925 = vmatpush.bf16.msra.mxu0 %v1223
  %1926 = vmatpush.bf16.msra.mxu0 %v1221
  %1927 = vmatmul.bf16.gmra.mxu0 %v315
  %v1928 = vpop.f32.mrf.mxu0
  %v1929 = vadd.f32 %v1916, %v1928
  %v1930 = vpop.f32.mrf.mxu0
  %1931 = vdwg.mxu0
  %1932 = vmatpush.bf16.msra.mxu0 %v1251
  %1933 = vmatpush.bf16.msra.mxu0 %v1249
  %1934 = vmatpush.bf16.msra.mxu0 %v1247
  %1935 = vmatpush.bf16.msra.mxu0 %v1245
  %1936 = vmatpush.bf16.msra.mxu0 %v1243
  %1937 = vmatpush.bf16.msra.mxu0 %v1241
  %1938 = vmatpush.bf16.msra.mxu0 %v1239
  %1939 = vmatpush.bf16.msra.mxu0 %v1237
  %1940 = vmatmul.bf16.gmra.mxu0 %v316
  %v1941 = vpop.f32.mrf.mxu0
  %v1942 = vadd.f32 %v1929, %v1941
  %v1943 = vpop.f32.mrf.mxu0
  %1944 = vdwg.mxu0
  %1945 = vmatpush.bf16.msra.mxu0 %v1267
  %1946 = vmatpush.bf16.msra.mxu0 %v1265
  %1947 = vmatpush.bf16.msra.mxu0 %v1263
  %1948 = vmatpush.bf16.msra.mxu0 %v1261
  %1949 = vmatpush.bf16.msra.mxu0 %v1259
  %1950 = vmatpush.bf16.msra.mxu0 %v1257
  %1951 = vmatpush.bf16.msra.mxu0 %v1255
  %1952 = vmatpush.bf16.msra.mxu0 %v1253
  %1953 = vmatmul.bf16.gmra.mxu0 %v317
  %v1954 = vpop.f32.mrf.mxu0
  %v1955 = vadd.f32 %v1942, %v1954
  %v1956 = vpop.f32.mrf.mxu0
  %1957 = vdwg.mxu0
  %1958 = vmatpush.bf16.msra.mxu0 %v1283
  %1959 = vmatpush.bf16.msra.mxu0 %v1281
  %1960 = vmatpush.bf16.msra.mxu0 %v1279
  %1961 = vmatpush.bf16.msra.mxu0 %v1277
  %1962 = vmatpush.bf16.msra.mxu0 %v1275
  %1963 = vmatpush.bf16.msra.mxu0 %v1273
  %1964 = vmatpush.bf16.msra.mxu0 %v1271
  %1965 = vmatpush.bf16.msra.mxu0 %v1269
  %1966 = vmatmul.bf16.gmra.mxu0 %v318
  %v1967 = vpop.f32.mrf.mxu0
  %v1968 = vadd.f32 %v1955, %v1967
  %v1969 = vpop.f32.mrf.mxu0
  %1970 = vdwg.mxu0
  %1971 = vmatpush.bf16.msra.mxu0 %v1299
  %1972 = vmatpush.bf16.msra.mxu0 %v1297
  %1973 = vmatpush.bf16.msra.mxu0 %v1295
  %1974 = vmatpush.bf16.msra.mxu0 %v1293
  %1975 = vmatpush.bf16.msra.mxu0 %v1291
  %1976 = vmatpush.bf16.msra.mxu0 %v1289
  %1977 = vmatpush.bf16.msra.mxu0 %v1287
  %1978 = vmatpush.bf16.msra.mxu0 %v1285
  %1979 = vmatmul.bf16.gmra.mxu0 %v319
  %v1980 = vpop.f32.mrf.mxu0
  %v1981 = vadd.f32 %v1968, %v1980
  %v1982 = vpop.f32.mrf.mxu0
  %1983 = vdwg.mxu0
  %1984 = vmatpush.bf16.msra.mxu0 %v1315
  %1985 = vmatpush.bf16.msra.mxu0 %v1313
  %1986 = vmatpush.bf16.msra.mxu0 %v1311
  %1987 = vmatpush.bf16.msra.mxu0 %v1309
  %1988 = vmatpush.bf16.msra.mxu0 %v1307
  %1989 = vmatpush.bf16.msra.mxu0 %v1305
  %1990 = vmatpush.bf16.msra.mxu0 %v1303
  %1991 = vmatpush.bf16.msra.mxu0 %v1301
  %1992 = vmatmul.bf16.gmra.mxu0 %v320
  %v1993 = vpop.f32.mrf.mxu0
  %v1994 = vadd.f32 %v1981, %v1993
  %v1995 = vpop.f32.mrf.mxu0
  %1996 = vdwg.mxu0
  %1997 = vmatpush.bf16.msra.mxu0 %v1331
  %1998 = vmatpush.bf16.msra.mxu0 %v1329
  %1999 = vmatpush.bf16.msra.mxu0 %v1327
  %2000 = vmatpush.bf16.msra.mxu0 %v1325
  %2001 = vmatpush.bf16.msra.mxu0 %v1323
  %2002 = vmatpush.bf16.msra.mxu0 %v1321
  %2003 = vmatpush.bf16.msra.mxu0 %v1319
  %2004 = vmatpush.bf16.msra.mxu0 %v1317
  %2005 = vmatmul.bf16.gmra.mxu0 %v321
  %v2006 = vpop.f32.mrf.mxu0
  %v2007 = vadd.f32 %v1994, %v2006
  %v2008 = vpop.f32.mrf.mxu0
  %2009 = vdwg.mxu0
  %2010 = vmatpush.bf16.msra.mxu0 %v1347
  %2011 = vmatpush.bf16.msra.mxu0 %v1345
  %2012 = vmatpush.bf16.msra.mxu0 %v1343
  %2013 = vmatpush.bf16.msra.mxu0 %v1341
  %2014 = vmatpush.bf16.msra.mxu0 %v1339
  %2015 = vmatpush.bf16.msra.mxu0 %v1337
  %2016 = vmatpush.bf16.msra.mxu0 %v1335
  %2017 = vmatpush.bf16.msra.mxu0 %v1333
  %2018 = vmatmul.bf16.gmra.mxu0 %v322
  %v2019 = vpop.f32.mrf.mxu0
  %v2020 = vadd.f32 %v2007, %v2019
  %v2021 = vpop.f32.mrf.mxu0
  %2022 = vdwg.mxu0
  %2023 = vmatpush.bf16.msra.mxu0 %v1363
  %2024 = vmatpush.bf16.msra.mxu0 %v1361
  %2025 = vmatpush.bf16.msra.mxu0 %v1359
  %2026 = vmatpush.bf16.msra.mxu0 %v1357
  %2027 = vmatpush.bf16.msra.mxu0 %v1355
  %2028 = vmatpush.bf16.msra.mxu0 %v1353
  %2029 = vmatpush.bf16.msra.mxu0 %v1351
  %2030 = vmatpush.bf16.msra.mxu0 %v1349
  %2031 = vmatmul.bf16.gmra.mxu0 %v323
  %v2032 = vpop.f32.mrf.mxu0
  %v2033 = vadd.f32 %v2020, %v2032
  %v2034 = vpop.f32.mrf.mxu0
  %2035 = vdwg.mxu0
  %v2036 = vmax.f32 %v1825, 0.0
  %v2037 = vmax.f32 %v2033, 0.0
  %2038 = vst [vmem:[%s3] sm:$0xff] %v2036
  %2039 = vst [vmem:[%s3 + $0x8] sm:$0xff] %v2037
  // Predicated region
  $region14: #{encoder.8} parent=0 // pred_check
    _
  $region15: #{encoder.8} parent=0 // pred_check_branch
    %2041 = sbr.rel (0) target = $region17
  $region16: #{encoder.8} parent=0 // pred_region
    _
  $region17: #{encoder.8} parent=0 // pred_fallthru
    _
  // Predicated region
  $region18: #{encoder.8} parent=0 // pred_check
    _
  $region19: #{encoder.8} parent=0 // pred_check_branch
    %2043 = sbr.rel (0) target = $region21
  $region20: #{encoder.8} parent=0 // pred_region
    _
  $region21: #{encoder.8} parent=0 // pred_fallthru
    _

// kernel: encoder.9
$region0: #{encoder.9}
  #allocation0 [shape = 'u32[]', space=smem, size = 0x4, offset = 0x4, fixed_abs, tag = 'smem constant byte address 0x4 - core index']
  #allocation1 [shape = 'u32[72,128]{1,0:T(1,128)}', space=vmem, size = 0x9000, scoped, tag = 'internal scratch']
  %s0 = inlined_call_operand.vmem [shape: bf16[2,1024], index: 0, kind: input, shape index: {}]
  %s1 = inlined_call_operand.vmem [shape: bf16[1024,2], index: 1, kind: input, shape index: {}]
  %s2 = inlined_call_operand.vmem [shape: f32[1,2], index: 2, kind: input, shape index: {}]
  %s3 = inlined_call_operand.hbm [shape: f32[2,2], index: 3, kind: output, shape index: {}]
  %s4 = sld [smem:[#allocation0]]
  $region22: #{encoder.9} parent=0
    _
  %s6 = ssub.s32 1, %s4
  %s7 = scalar_select 0, %s6, %s4
  $region1: #{encoder.9} parent=0
    #allocation2 [shape = 'u8[1024]{0}', space=vmem, size = 0x400, scoped, tag = 'output window, operand 0, single buffered']
    #allocation3 [shape = 's32[1]{0}', space=sflag, size = 0x4, scoped, tag = 'scoped memory for encoder.9']
    %8 = vsyncpa [#allocation3], 0
    // Predicated region
    $region2: #{encoder.9} parent=1 // pred_check
      _
    $region3: #{encoder.9} parent=1 // pred_check_branch
      %10 = sbr.rel (0) target = $region5
    $region4: #{encoder.9} parent=1 // pred_region
      _
    $region5: #{encoder.9} parent=1 // pred_fallthru
      _
    // Predicated region
    $region6: #{encoder.9} parent=1 // pred_check
      _
    $region7: #{encoder.9} parent=1 // pred_check_branch
      %12 = sbr.rel (0) target = $region9
    $region8: #{encoder.9} parent=1 // pred_region
      _
    $region9: #{encoder.9} parent=1 // pred_fallthru
      _
    // Predicated region
    $region10: #{encoder.9} parent=1 // pred_check
      _
    $region11: #{encoder.9} parent=1 // pred_check_branch
      %14 = sbr.rel (0) target = $region13
    $region12: #{encoder.9} parent=1 // pred_region
      _
    $region13: #{encoder.9} parent=1 // pred_fallthru
      _
    %v15 = vld [vmem:[%s0] sm:$0xff]
    %v16 = vld [vmem:[%s1] sm:$0xf]
    %v17 = vld [vmem:[%s1 + $0x4] sm:$0xf]
    %v18 = vld [vmem:[%s1 + $0x8] sm:$0xf]
    %v19 = vld [vmem:[%s1 + $0xc] sm:$0xf]
    %v20 = vld [vmem:[%s1 + $0x10] sm:$0xf]
    %v21 = vld [vmem:[%s1 + $0x14] sm:$0xf]
    %v22 = vld [vmem:[%s1 + $0x18] sm:$0xf]
    %v23 = vld [vmem:[%s1 + $0x1c] sm:$0xf]
    %v24 = vld [vmem:[%s1 + $0x20] sm:$0xf]
    %v25 = vld [vmem:[%s1 + $0x24] sm:$0xf]
    %v26 = vld [vmem:[%s1 + $0x28] sm:$0xf]
    %v27 = vld [vmem:[%s1 + $0x2c] sm:$0xf]
    %v28 = vld [vmem:[%s1 + $0x30] sm:$0xf]
    %v29 = vld [vmem:[%s1 + $0x34] sm:$0xf]
    %v30 = vld [vmem:[%s1 + $0x38] sm:$0xf]
    %v31 = vld [vmem:[%s1 + $0x3c] sm:$0xf]
    %v32 = vld [vmem:[%s1 + $0x40] sm:$0xf]
    %v33 = vld [vmem:[%s1 + $0x44] sm:$0xf]
    %v34 = vld [vmem:[%s1 + $0x48] sm:$0xf]
    %v35 = vld [vmem:[%s1 + $0x4c] sm:$0xf]
    %v36 = vld [vmem:[%s1 + $0x50] sm:$0xf]
    %v37 = vld [vmem:[%s1 + $0x54] sm:$0xf]
    %v38 = vld [vmem:[%s1 + $0x58] sm:$0xf]
    %v39 = vld [vmem:[%s1 + $0x5c] sm:$0xf]
    %v40 = vld [vmem:[%s1 + $0x60] sm:$0xf]
    %v41 = vld [vmem:[%s1 + $0x64] sm:$0xf]
    %v42 = vld [vmem:[%s1 + $0x68] sm:$0xf]
    %v43 = vld [vmem:[%s1 + $0x6c] sm:$0xf]
    %v44 = vld [vmem:[%s1 + $0x70] sm:$0xf]
    %v45 = vld [vmem:[%s1 + $0x74] sm:$0xf]
    %v46 = vld [vmem:[%s1 + $0x78] sm:$0xf]
    %v47 = vld [vmem:[%s1 + $0x7c] sm:$0xf]
    %v48 = vld [vmem:[%s1 + $0x80] sm:$0xf]
    %v49 = vld [vmem:[%s1 + $0x84] sm:$0xf]
    %v50 = vld [vmem:[%s1 + $0x88] sm:$0xf]
    %v51 = vld [vmem:[%s1 + $0x8c] sm:$0xf]
    %v52 = vld [vmem:[%s1 + $0x90] sm:$0xf]
    %v53 = vld [vmem:[%s1 + $0x94] sm:$0xf]
    %v54 = vld [vmem:[%s1 + $0x98] sm:$0xf]
    %v55 = vld [vmem:[%s1 + $0x9c] sm:$0xf]
    %v56 = vld [vmem:[%s1 + $0xa0] sm:$0xf]
    %v57 = vld [vmem:[%s1 + $0xa4] sm:$0xf]
    %v58 = vld [vmem:[%s1 + $0xa8] sm:$0xf]
    %v59 = vld [vmem:[%s1 + $0xac] sm:$0xf]
    %v60 = vld [vmem:[%s1 + $0xb0] sm:$0xf]
    %v61 = vld [vmem:[%s1 + $0xb4] sm:$0xf]
    %v62 = vld [vmem:[%s1 + $0xb8] sm:$0xf]
    %v63 = vld [vmem:[%s1 + $0xbc] sm:$0xf]
    %v64 = vld [vmem:[%s1 + $0xc0] sm:$0xf]
    %v65 = vld [vmem:[%s1 + $0xc4] sm:$0xf]
    %v66 = vld [vmem:[%s1 + $0xc8] sm:$0xf]
    %v67 = vld [vmem:[%s1 + $0xcc] sm:$0xf]
    %v68 = vld [vmem:[%s1 + $0xd0] sm:$0xf]
    %v69 = vld [vmem:[%s1 + $0xd4] sm:$0xf]
    %v70 = vld [vmem:[%s1 + $0xd8] sm:$0xf]
    %v71 = vld [vmem:[%s1 + $0xdc] sm:$0xf]
    %v72 = vld [vmem:[%s1 + $0xe0] sm:$0xf]
    %v73 = vld [vmem:[%s1 + $0xe4] sm:$0xf]
    %v74 = vld [vmem:[%s1 + $0xe8] sm:$0xf]
    %v75 = vld [vmem:[%s1 + $0xec] sm:$0xf]
    %v76 = vld [vmem:[%s1 + $0xf0] sm:$0xf]
    %v77 = vld [vmem:[%s1 + $0xf4] sm:$0xf]
    %v78 = vld [vmem:[%s1 + $0xf8] sm:$0xf]
    %v79 = vld [vmem:[%s1 + $0xfc] sm:$0xf]
    %v80 = vld [vmem:[%s1 + $0x100] sm:$0xf]
    %v81 = vld [vmem:[%s1 + $0x104] sm:$0xf]
    %v82 = vld [vmem:[%s1 + $0x108] sm:$0xf]
    %v83 = vld [vmem:[%s1 + $0x10c] sm:$0xf]
    %v84 = vld [vmem:[%s1 + $0x110] sm:$0xf]
    %v85 = vld [vmem:[%s1 + $0x114] sm:$0xf]
    %v86 = vld [vmem:[%s1 + $0x118] sm:$0xf]
    %v87 = vld [vmem:[%s1 + $0x11c] sm:$0xf]
    %v88 = vld [vmem:[%s1 + $0x120] sm:$0xf]
    %v89 = vld [vmem:[%s1 + $0x124] sm:$0xf]
    %v90 = vld [vmem:[%s1 + $0x128] sm:$0xf]
    %v91 = vld [vmem:[%s1 + $0x12c] sm:$0xf]
    %v92 = vld [vmem:[%s1 + $0x130] sm:$0xf]
    %v93 = vld [vmem:[%s1 + $0x134] sm:$0xf]
    %v94 = vld [vmem:[%s1 + $0x138] sm:$0xf]
    %v95 = vld [vmem:[%s1 + $0x13c] sm:$0xf]
    %v96 = vld [vmem:[%s1 + $0x140] sm:$0xf]
    %v97 = vld [vmem:[%s1 + $0x144] sm:$0xf]
    %v98 = vld [vmem:[%s1 + $0x148] sm:$0xf]
    %v99 = vld [vmem:[%s1 + $0x14c] sm:$0xf]
    %v100 = vld [vmem:[%s1 + $0x150] sm:$0xf]
    %v101 = vld [vmem:[%s1 + $0x154] sm:$0xf]
    %v102 = vld [vmem:[%s1 + $0x158] sm:$0xf]
    %v103 = vld [vmem:[%s1 + $0x15c] sm:$0xf]
    %v104 = vld [vmem:[%s1 + $0x160] sm:$0xf]
    %v105 = vld [vmem:[%s1 + $0x164] sm:$0xf]
    %v106 = vld [vmem:[%s1 + $0x168] sm:$0xf]
    %v107 = vld [vmem:[%s1 + $0x16c] sm:$0xf]
    %v108 = vld [vmem:[%s1 + $0x170] sm:$0xf]
    %v109 = vld [vmem:[%s1 + $0x174] sm:$0xf]
    %v110 = vld [vmem:[%s1 + $0x178] sm:$0xf]
    %v111 = vld [vmem:[%s1 + $0x17c] sm:$0xf]
    %v112 = vld [vmem:[%s1 + $0x180] sm:$0xf]
    %v113 = vld [vmem:[%s1 + $0x184] sm:$0xf]
    %v114 = vld [vmem:[%s1 + $0x188] sm:$0xf]
    %v115 = vld [vmem:[%s1 + $0x18c] sm:$0xf]
    %v116 = vld [vmem:[%s1 + $0x190] sm:$0xf]
    %v117 = vld [vmem:[%s1 + $0x194] sm:$0xf]
    %v118 = vld [vmem:[%s1 + $0x198] sm:$0xf]
    %v119 = vld [vmem:[%s1 + $0x19c] sm:$0xf]
    %v120 = vld [vmem:[%s1 + $0x1a0] sm:$0xf]
    %v121 = vld [vmem:[%s1 + $0x1a4] sm:$0xf]
    %v122 = vld [vmem:[%s1 + $0x1a8] sm:$0xf]
    %v123 = vld [vmem:[%s1 + $0x1ac] sm:$0xf]
    %v124 = vld [vmem:[%s1 + $0x1b0] sm:$0xf]
    %v125 = vld [vmem:[%s1 + $0x1b4] sm:$0xf]
    %v126 = vld [vmem:[%s1 + $0x1b8] sm:$0xf]
    %v127 = vld [vmem:[%s1 + $0x1bc] sm:$0xf]
    %v128 = vld [vmem:[%s1 + $0x1c0] sm:$0xf]
    %v129 = vld [vmem:[%s1 + $0x1c4] sm:$0xf]
    %v130 = vld [vmem:[%s1 + $0x1c8] sm:$0xf]
    %v131 = vld [vmem:[%s1 + $0x1cc] sm:$0xf]
    %v132 = vld [vmem:[%s1 + $0x1d0] sm:$0xf]
    %v133 = vld [vmem:[%s1 + $0x1d4] sm:$0xf]
    %v134 = vld [vmem:[%s1 + $0x1d8] sm:$0xf]
    %v135 = vld [vmem:[%s1 + $0x1dc] sm:$0xf]
    %v136 = vld [vmem:[%s1 + $0x1e0] sm:$0xf]
    %v137 = vld [vmem:[%s1 + $0x1e4] sm:$0xf]
    %v138 = vld [vmem:[%s1 + $0x1e8] sm:$0xf]
    %v139 = vld [vmem:[%s1 + $0x1ec] sm:$0xf]
    %v140 = vld [vmem:[%s1 + $0x1f0] sm:$0xf]
    %v141 = vld [vmem:[%s1 + $0x1f4] sm:$0xf]
    %v142 = vld [vmem:[%s1 + $0x1f8] sm:$0xf]
    %v143 = vld [vmem:[%s1 + $0x1fc] sm:$0xf]
    %v144 = vld [vmem:[%s2] sm:$0x1]
    %v146 = vperm.slane %v144, 0
    %149 = vst [vmem:[#allocation1] ss:$9 sm:$0xff] %v15
    %v150 = vld [vmem:[#allocation1] sm:$0xff]
    %v151 = vld [vmem:[#allocation1 + $0x9] sm:$0xff]
    %v152 = vld [vmem:[#allocation1 + $0x12] sm:$0xff]
    %v153 = vld [vmem:[#allocation1 + $0x1b] sm:$0xff]
    %v154 = vld [vmem:[#allocation1 + $0x24] sm:$0xff]
    %v155 = vld [vmem:[#allocation1 + $0x2d] sm:$0xff]
    %v156 = vld [vmem:[#allocation1 + $0x36] sm:$0xff]
    %v157 = vld [vmem:[#allocation1 + $0x3f] sm:$0xff]
    %v294 = vunpack.c.l.b16 %v16
    %v295 = vunpack.c.l.b16 %v17
    %v296 = vunpack.c.l.b16 %v18
    %v297 = vunpack.c.l.b16 %v19
    %v298 = vunpack.c.l.b16 %v20
    %v299 = vunpack.c.l.b16 %v21
    %v300 = vunpack.c.l.b16 %v22
    %v301 = vunpack.c.l.b16 %v23
    %v302 = vunpack.c.l.b16 %v24
    %v303 = vunpack.c.l.b16 %v25
    %v304 = vunpack.c.l.b16 %v26
    %v305 = vunpack.c.l.b16 %v27
    %v306 = vunpack.c.l.b16 %v28
    %v307 = vunpack.c.l.b16 %v29
    %v308 = vunpack.c.l.b16 %v30
    %v309 = vunpack.c.l.b16 %v31
    %v310 = vunpack.c.l.b16 %v32
    %v311 = vunpack.c.l.b16 %v33
    %v312 = vunpack.c.l.b16 %v34
    %v313 = vunpack.c.l.b16 %v35
    %v314 = vunpack.c.l.b16 %v36
    %v315 = vunpack.c.l.b16 %v37
    %v316 = vunpack.c.l.b16 %v38
    %v317 = vunpack.c.l.b16 %v39
    %v318 = vunpack.c.l.b16 %v40
    %v319 = vunpack.c.l.b16 %v41
    %v320 = vunpack.c.l.b16 %v42
    %v321 = vunpack.c.l.b16 %v43
    %v322 = vunpack.c.l.b16 %v44
    %v323 = vunpack.c.l.b16 %v45
    %v324 = vunpack.c.l.b16 %v46
    %v325 = vunpack.c.l.b16 %v47
    %v326 = vunpack.c.l.b16 %v48
    %v327 = vunpack.c.l.b16 %v49
    %v328 = vunpack.c.l.b16 %v50
    %v329 = vunpack.c.l.b16 %v51
    %v330 = vunpack.c.l.b16 %v52
    %v331 = vunpack.c.l.b16 %v53
    %v332 = vunpack.c.l.b16 %v54
    %v333 = vunpack.c.l.b16 %v55
    %v334 = vunpack.c.l.b16 %v56
    %v335 = vunpack.c.l.b16 %v57
    %v336 = vunpack.c.l.b16 %v58
    %v337 = vunpack.c.l.b16 %v59
    %v338 = vunpack.c.l.b16 %v60
    %v339 = vunpack.c.l.b16 %v61
    %v340 = vunpack.c.l.b16 %v62
    %v341 = vunpack.c.l.b16 %v63
    %v342 = vunpack.c.l.b16 %v64
    %v343 = vunpack.c.l.b16 %v65
    %v344 = vunpack.c.l.b16 %v66
    %v345 = vunpack.c.l.b16 %v67
    %v346 = vunpack.c.l.b16 %v68
    %v347 = vunpack.c.l.b16 %v69
    %v348 = vunpack.c.l.b16 %v70
    %v349 = vunpack.c.l.b16 %v71
    %v350 = vunpack.c.l.b16 %v72
    %v351 = vunpack.c.l.b16 %v73
    %v352 = vunpack.c.l.b16 %v74
    %v353 = vunpack.c.l.b16 %v75
    %v354 = vunpack.c.l.b16 %v76
    %v355 = vunpack.c.l.b16 %v77
    %v356 = vunpack.c.l.b16 %v78
    %v357 = vunpack.c.l.b16 %v79
    %v358 = vunpack.c.l.b16 %v80
    %v359 = vunpack.c.l.b16 %v81
    %v360 = vunpack.c.l.b16 %v82
    %v361 = vunpack.c.l.b16 %v83
    %v362 = vunpack.c.l.b16 %v84
    %v363 = vunpack.c.l.b16 %v85
    %v364 = vunpack.c.l.b16 %v86
    %v365 = vunpack.c.l.b16 %v87
    %v366 = vunpack.c.l.b16 %v88
    %v367 = vunpack.c.l.b16 %v89
    %v368 = vunpack.c.l.b16 %v90
    %v369 = vunpack.c.l.b16 %v91
    %v370 = vunpack.c.l.b16 %v92
    %v371 = vunpack.c.l.b16 %v93
    %v372 = vunpack.c.l.b16 %v94
    %v373 = vunpack.c.l.b16 %v95
    %v374 = vunpack.c.l.b16 %v96
    %v375 = vunpack.c.l.b16 %v97
    %v376 = vunpack.c.l.b16 %v98
    %v377 = vunpack.c.l.b16 %v99
    %v378 = vunpack.c.l.b16 %v100
    %v379 = vunpack.c.l.b16 %v101
    %v380 = vunpack.c.l.b16 %v102
    %v381 = vunpack.c.l.b16 %v103
    %v382 = vunpack.c.l.b16 %v104
    %v383 = vunpack.c.l.b16 %v105
    %v384 = vunpack.c.l.b16 %v106
    %v385 = vunpack.c.l.b16 %v107
    %v386 = vunpack.c.l.b16 %v108
    %v387 = vunpack.c.l.b16 %v109
    %v388 = vunpack.c.l.b16 %v110
    %v389 = vunpack.c.l.b16 %v111
    %v390 = vunpack.c.l.b16 %v112
    %v391 = vunpack.c.l.b16 %v113
    %v392 = vunpack.c.l.b16 %v114
    %v393 = vunpack.c.l.b16 %v115
    %v394 = vunpack.c.l.b16 %v116
    %v395 = vunpack.c.l.b16 %v117
    %v396 = vunpack.c.l.b16 %v118
    %v397 = vunpack.c.l.b16 %v119
    %v398 = vunpack.c.l.b16 %v120
    %v399 = vunpack.c.l.b16 %v121
    %v400 = vunpack.c.l.b16 %v122
    %v401 = vunpack.c.l.b16 %v123
    %v402 = vunpack.c.l.b16 %v124
    %v403 = vunpack.c.l.b16 %v125
    %v404 = vunpack.c.l.b16 %v126
    %v405 = vunpack.c.l.b16 %v127
    %v406 = vunpack.c.l.b16 %v128
    %v407 = vunpack.c.l.b16 %v129
    %v408 = vunpack.c.l.b16 %v130
    %v409 = vunpack.c.l.b16 %v131
    %v410 = vunpack.c.l.b16 %v132
    %v411 = vunpack.c.l.b16 %v133
    %v412 = vunpack.c.l.b16 %v134
    %v413 = vunpack.c.l.b16 %v135
    %v414 = vunpack.c.l.b16 %v136
    %v415 = vunpack.c.l.b16 %v137
    %v416 = vunpack.c.l.b16 %v138
    %v417 = vunpack.c.l.b16 %v139
    %v418 = vunpack.c.l.b16 %v140
    %v419 = vunpack.c.l.b16 %v141
    %v420 = vunpack.c.l.b16 %v142
    %v421 = vunpack.c.l.b16 %v143
    %v422 = vpack.c.b16 %v295, %v294
    %v423 = vpack.c.b16 %v297, %v296
    %v424 = vpack.c.b16 %v299, %v298
    %v425 = vpack.c.b16 %v301, %v300
    %v426 = vpack.c.b16 %v303, %v302
    %v427 = vpack.c.b16 %v305, %v304
    %v428 = vpack.c.b16 %v307, %v306
    %v429 = vpack.c.b16 %v309, %v308
    %v430 = vpack.c.b16 %v311, %v310
    %v431 = vpack.c.b16 %v313, %v312
    %v432 = vpack.c.b16 %v315, %v314
    %v433 = vpack.c.b16 %v317, %v316
    %v434 = vpack.c.b16 %v319, %v318
    %v435 = vpack.c.b16 %v321, %v320
    %v436 = vpack.c.b16 %v323, %v322
    %v437 = vpack.c.b16 %v325, %v324
    %v438 = vpack.c.b16 %v327, %v326
    %v439 = vpack.c.b16 %v329, %v328
    %v440 = vpack.c.b16 %v331, %v330
    %v441 = vpack.c.b16 %v333, %v332
    %v442 = vpack.c.b16 %v335, %v334
    %v443 = vpack.c.b16 %v337, %v336
    %v444 = vpack.c.b16 %v339, %v338
    %v445 = vpack.c.b16 %v341, %v340
    %v446 = vpack.c.b16 %v343, %v342
    %v447 = vpack.c.b16 %v345, %v344
    %v448 = vpack.c.b16 %v347, %v346
    %v449 = vpack.c.b16 %v349, %v348
    %v450 = vpack.c.b16 %v351, %v350
    %v451 = vpack.c.b16 %v353, %v352
    %v452 = vpack.c.b16 %v355, %v354
    %v453 = vpack.c.b16 %v357, %v356
    %v454 = vpack.c.b16 %v359, %v358
    %v455 = vpack.c.b16 %v361, %v360
    %v456 = vpack.c.b16 %v363, %v362
    %v457 = vpack.c.b16 %v365, %v364
    %v458 = vpack.c.b16 %v367, %v366
    %v459 = vpack.c.b16 %v369, %v368
    %v460 = vpack.c.b16 %v371, %v370
    %v461 = vpack.c.b16 %v373, %v372
    %v462 = vpack.c.b16 %v375, %v374
    %v463 = vpack.c.b16 %v377, %v376
    %v464 = vpack.c.b16 %v379, %v378
    %v465 = vpack.c.b16 %v381, %v380
    %v466 = vpack.c.b16 %v383, %v382
    %v467 = vpack.c.b16 %v385, %v384
    %v468 = vpack.c.b16 %v387, %v386
    %v469 = vpack.c.b16 %v389, %v388
    %v470 = vpack.c.b16 %v391, %v390
    %v471 = vpack.c.b16 %v393, %v392
    %v472 = vpack.c.b16 %v395, %v394
    %v473 = vpack.c.b16 %v397, %v396
    %v474 = vpack.c.b16 %v399, %v398
    %v475 = vpack.c.b16 %v401, %v400
    %v476 = vpack.c.b16 %v403, %v402
    %v477 = vpack.c.b16 %v405, %v404
    %v478 = vpack.c.b16 %v407, %v406
    %v479 = vpack.c.b16 %v409, %v408
    %v480 = vpack.c.b16 %v411, %v410
    %v481 = vpack.c.b16 %v413, %v412
    %v482 = vpack.c.b16 %v415, %v414
    %v483 = vpack.c.b16 %v417, %v416
    %v484 = vpack.c.b16 %v419, %v418
    %v485 = vpack.c.b16 %v421, %v420
    %550 = vmatpush.bf16.msra.mxu0 %v429
    %551 = vmatpush.bf16.msra.mxu0 %v428
    %552 = vmatpush.bf16.msra.mxu0 %v427
    %553 = vmatpush.bf16.msra.mxu0 %v426
    %554 = vmatpush.bf16.msra.mxu0 %v425
    %555 = vmatpush.bf16.msra.mxu0 %v424
    %556 = vmatpush.bf16.msra.mxu0 %v423
    %557 = vmatpush.bf16.msra.mxu0 %v422
    %558 = vmatmul.bf16.gmra.mxu0 %v150
    %v559 = vpop.f32.mrf.mxu0
    %v560 = vadd.f32 %v146, %v559
    %v561 = vpop.f32.mrf.mxu0
    %562 = vdwg.mxu0
    %563 = vmatpush.bf16.msra.mxu0 %v437
    %564 = vmatpush.bf16.msra.mxu0 %v436
    %565 = vmatpush.bf16.msra.mxu0 %v435
    %566 = vmatpush.bf16.msra.mxu0 %v434
    %567 = vmatpush.bf16.msra.mxu0 %v433
    %568 = vmatpush.bf16.msra.mxu0 %v432
    %569 = vmatpush.bf16.msra.mxu0 %v431
    %570 = vmatpush.bf16.msra.mxu0 %v430
    %571 = vmatmul.bf16.gmra.mxu0 %v151
    %v572 = vpop.f32.mrf.mxu0
    %v573 = vadd.f32 %v560, %v572
    %v574 = vpop.f32.mrf.mxu0
    %575 = vdwg.mxu0
    %576 = vmatpush.bf16.msra.mxu0 %v445
    %577 = vmatpush.bf16.msra.mxu0 %v444
    %578 = vmatpush.bf16.msra.mxu0 %v443
    %579 = vmatpush.bf16.msra.mxu0 %v442
    %580 = vmatpush.bf16.msra.mxu0 %v441
    %581 = vmatpush.bf16.msra.mxu0 %v440
    %582 = vmatpush.bf16.msra.mxu0 %v439
    %583 = vmatpush.bf16.msra.mxu0 %v438
    %584 = vmatmul.bf16.gmra.mxu0 %v152
    %v585 = vpop.f32.mrf.mxu0
    %v586 = vadd.f32 %v573, %v585
    %v587 = vpop.f32.mrf.mxu0
    %588 = vdwg.mxu0
    %589 = vmatpush.bf16.msra.mxu0 %v453
    %590 = vmatpush.bf16.msra.mxu0 %v452
    %591 = vmatpush.bf16.msra.mxu0 %v451
    %592 = vmatpush.bf16.msra.mxu0 %v450
    %593 = vmatpush.bf16.msra.mxu0 %v449
    %594 = vmatpush.bf16.msra.mxu0 %v448
    %595 = vmatpush.bf16.msra.mxu0 %v447
    %596 = vmatpush.bf16.msra.mxu0 %v446
    %597 = vmatmul.bf16.gmra.mxu0 %v153
    %v598 = vpop.f32.mrf.mxu0
    %v599 = vadd.f32 %v586, %v598
    %v600 = vpop.f32.mrf.mxu0
    %601 = vdwg.mxu0
    %602 = vmatpush.bf16.msra.mxu0 %v461
    %603 = vmatpush.bf16.msra.mxu0 %v460
    %604 = vmatpush.bf16.msra.mxu0 %v459
    %605 = vmatpush.bf16.msra.mxu0 %v458
    %606 = vmatpush.bf16.msra.mxu0 %v457
    %607 = vmatpush.bf16.msra.mxu0 %v456
    %608 = vmatpush.bf16.msra.mxu0 %v455
    %609 = vmatpush.bf16.msra.mxu0 %v454
    %610 = vmatmul.bf16.gmra.mxu0 %v154
    %v611 = vpop.f32.mrf.mxu0
    %v612 = vadd.f32 %v599, %v611
    %v613 = vpop.f32.mrf.mxu0
    %614 = vdwg.mxu0
    %615 = vmatpush.bf16.msra.mxu0 %v469
    %616 = vmatpush.bf16.msra.mxu0 %v468
    %617 = vmatpush.bf16.msra.mxu0 %v467
    %618 = vmatpush.bf16.msra.mxu0 %v466
    %619 = vmatpush.bf16.msra.mxu0 %v465
    %620 = vmatpush.bf16.msra.mxu0 %v464
    %621 = vmatpush.bf16.msra.mxu0 %v463
    %622 = vmatpush.bf16.msra.mxu0 %v462
    %623 = vmatmul.bf16.gmra.mxu0 %v155
    %v624 = vpop.f32.mrf.mxu0
    %v625 = vadd.f32 %v612, %v624
    %v626 = vpop.f32.mrf.mxu0
    %627 = vdwg.mxu0
    %628 = vmatpush.bf16.msra.mxu0 %v477
    %629 = vmatpush.bf16.msra.mxu0 %v476
    %630 = vmatpush.bf16.msra.mxu0 %v475
    %631 = vmatpush.bf16.msra.mxu0 %v474
    %632 = vmatpush.bf16.msra.mxu0 %v473
    %633 = vmatpush.bf16.msra.mxu0 %v472
    %634 = vmatpush.bf16.msra.mxu0 %v471
    %635 = vmatpush.bf16.msra.mxu0 %v470
    %636 = vmatmul.bf16.gmra.mxu0 %v156
    %v637 = vpop.f32.mrf.mxu0
    %v638 = vadd.f32 %v625, %v637
    %v639 = vpop.f32.mrf.mxu0
    %640 = vdwg.mxu0
    %641 = vmatpush.bf16.msra.mxu0 %v485
    %642 = vmatpush.bf16.msra.mxu0 %v484
    %643 = vmatpush.bf16.msra.mxu0 %v483
    %644 = vmatpush.bf16.msra.mxu0 %v482
    %645 = vmatpush.bf16.msra.mxu0 %v481
    %646 = vmatpush.bf16.msra.mxu0 %v480
    %647 = vmatpush.bf16.msra.mxu0 %v479
    %648 = vmatpush.bf16.msra.mxu0 %v478
    %649 = vmatmul.bf16.gmra.mxu0 %v157
    %v650 = vpop.f32.mrf.mxu0
    %v651 = vadd.f32 %v638, %v650
    %v652 = vpop.f32.mrf.mxu0
    %653 = vdwg.mxu0
    %v654 = vmul.f32 %v651, %v651
    %vm655 = vcmask 9216
    %v656 = vsel %vm655, %v654, 0.0
    %657 = vadd.xlane.f32.xlu0 %v656
    %v658 = vpop.xlane.xlu0 %657
    %v659 = vrot.slane %v658, 4
    %v660 = vadd.f32 %v658, %v659
    %v661 = vrot.slane %v660, 2
    %v662 = vadd.f32 %v660, %v661
    %v663 = vrot.slane %v662, 1
    %v664 = vadd.f32 %v662, %v663
    %s665 = vtos %v664
    %v666 = vstv %s665
    %v667 = vrsqrt.pop %v666
    %v668 = vmul.f32 %v667, %v666
    %v669 = vmul.f32 %v668, %v667
    %v670 = vmul.f32 0.5, %v669
    %v671 = vsub.f32 1.5, %v670
    %v672 = vmul.f32 %v667, %v671
    %v673 = vmul.f32 %v666, %v672
    %vm674 = vcmp.eq.f32.partialorder %v666, inf
    %v675 = vsel %vm674, %v666, %v673
    %vm676 = vcmp.eq.f32.partialorder %v666, 0.0
    %v677 = vand.u32 %v666, 2147483648
    %v678 = vsel %vm676, %v677, %v675
    %v679 = vrcp.pop %v678
    %v680 = vmul.f32 %v678, %v679
    %v681 = vsub.f32 1.0, %v680
    %v682 = vmul.f32 %v679, %v681
    %v683 = vadd.f32 %v679, %v682
    %vm684 = vweird.f32 %v678
    %vm685 = vweird.f32 %v679
    %vm686 = vmor %vm684, %vm685
    %v687 = vsel %vm686, %v679, %v683
    %v688 = vand.u32 2147483647, %v678
    %vm689 = vcmp.eq.f32.partialorder %v688, 8.507059e+37
    %v690 = vand.u32 %v678, 2147483648
    %v691 = vor.u32 1.1754944e-38, %v690
    %v692 = vsel %vm689, %v691, %v687
    %v693 = vmul.f32 %v651, %v692
    %694 = vst.msk [vmem:[#allocation2] sm:$0x3] %vm655, %v693
    // Predicated region
    $region14: #{encoder.9} parent=1 // pred_check
      _
    $region15: #{encoder.9} parent=1 // pred_check_branch
      %696 = sbr.rel (0) target = $region17
    $region16: #{encoder.9} parent=1 // pred_region
      %698 = vsyncadd [#allocation3], 0
      %s700 = sshll.u32 [#allocation2], 4
      %s701 = int_to_ptr.vmem [resolvable:$true] %s700
      %s702 = sshll.u32 %s3, 4
      %s703 = int_to_ptr.hbm [resolvable:$true] %s702
      %705 = dma.vmem_to_hbm [thread:$0]  %s701, 32, %s703, [#allocation3]
    $region17: #{encoder.9} parent=1 // pred_fallthru
      _
    // Predicated region
    $region18: #{encoder.9} parent=1 // pred_check
      _
    $region19: #{encoder.9} parent=1 // pred_check_branch
      %707 = sbr.rel (0) target = $region21
    $region20: #{encoder.9} parent=1 // pred_region
      %709 = dma.done [#allocation3], 32
    $region21: #{encoder.9} parent=1 // pred_fallthru
      _
    %710 = vsyncpa [#allocation3], 1

</llo_original>
